<compile_context>
chip_gen: v7x
topology: tpu7x:2x2x1
jax: 0.10.0
libtpu: 0.0.40
codegen_flags: <defaults>
</compile_context>

<pallas_src>
import functools

import jax
import jax.numpy as jnp
from jax.experimental import pallas as pl
from jax.experimental.pallas import tpu as pltpu


def _round_up(x, m):
    return (x + m - 1) // m * m


# ----------------------------------------------------------------------------
# Pallas kernel.  Grid = (NC, Cout_tiles // NC); the outer axis is the megacore
# ('parallel') split of the Cout-tile axis, the inner axis walks Cout tiles.
#   x_ref   : (B, H, W, Cin_p)     input images (channel-padded NHWC, bf16)
#   wdw_ref : (3, 3, Cin_p)        depthwise weights, BN1 scale folded in (f32)
#   b1_ref  : (1, 1, Cin_p)        BN1 folded bias (f32)
#   wpw_ref : (Cin_p, TN)          pointwise weight tile, BN2 scale folded (bf16)
#   b2_ref  : (1, TN)              BN2 folded bias tile (f32)
#   o_ref   : (B*Ho*Wo, TN)        output tile (lane-dense 2-D slab)
#   xp_ref  : (H+2, W+2, Cin_p)    VMEM scratch: image with 1-px zero halo (bf16)
#   h_ref   : (B*Ho*Wo, Cin_p)     VMEM scratch: depthwise+BN1+ReLU result (bf16)
# ----------------------------------------------------------------------------
def block_kernel(x_ref, wdw_ref, b1_ref, wpw_ref, b2_ref, o_ref,
                 xp_ref, h_ref, *, stride):
    B, H, W, Cin_p = x_ref.shape
    M, TN = o_ref.shape                       # M = B * Ho * Wo
    Ho = (H + 2 - 3) // stride + 1
    Wo = (W + 2 - 3) // stride + 1
    HoWo = Ho * Wo

    # ---- depthwise 3x3 + BN1 bias + ReLU for the WHOLE batch.
    #      Runs once per core (the inner Cout-tile axis is sequential per core);
    #      every Cout tile afterwards reuses h_ref straight from VMEM.
    @pl.when(pl.program_id(1) == 0)
    def _():
        # Zero only the four 1-px border strips of the halo scratch; the
        # interior is fully overwritten below for every batch image.
        zrow = jnp.zeros((1, W + 2, Cin_p), xp_ref.dtype)
        zcol = jnp.zeros((H + 2, 1, Cin_p), xp_ref.dtype)
        xp_ref[0:1, :, :] = zrow
        xp_ref[H + 1:H + 2, :, :] = zrow
        xp_ref[:, 0:1, :] = zcol
        xp_ref[:, W + 1:W + 2, :] = zcol

        wdw = wdw_ref[...]                    # (3, 3, Cin_p) f32, BN1 scale folded
        b1 = b1_ref[...]                      # (1, 1, Cin_p) f32

        for b in range(B):                    # static unroll over the batch
            xp_ref[1:1 + H, 1:1 + W, :] = x_ref[b]      # bf16 interior copy

            def tap(kh, kw, th, tw):
                # bf16 load, upcast at the multiply -> accumulation stays f32.
                return xp_ref[kh:kh + th, kw:kw + tw, :].astype(jnp.float32)

            if stride == 1:
                acc = tap(0, 0, Ho, Wo) * wdw[0, 0, :]
                for kh in range(3):
                    for kw in range(3):
                        if kh == 0 and kw == 0:
                            continue
                        acc = acc + tap(kh, kw, Ho, Wo) * wdw[kh, kw, :]
                h = jnp.maximum(acc + b1, 0.0)
            else:
                # Dense 9-tap accumulate, then a SINGLE even-row/even-column
                # selection (instead of nine sublane-strided tap loads).
                acc = tap(0, 0, H, W) * wdw[0, 0, :]
                for kh in range(3):
                    for kw in range(3):
                        if kh == 0 and kw == 0:
                            continue
                        acc = acc + tap(kh, kw, H, W) * wdw[kh, kw, :]
                h = jnp.maximum(acc + b1, 0.0)[::stride, ::stride, :]

            h_ref[b * HoWo:(b + 1) * HoWo, :] = (
                h.reshape(HoWo, Cin_p).astype(h_ref.dtype))

    # ---- pointwise 1x1 conv for this Cout tile: bf16 x bf16 MXU, f32 acc.
    #      M = B*Ho*Wo fills the MXU; the output store is a lane-dense 2-D slab.
    pw = jnp.dot(h_ref[...], wpw_ref[...], preferred_element_type=jnp.float32)
    o_ref[...] = jnp.maximum(pw + b2_ref[...], 0.0).astype(o_ref.dtype)


# ----------------------------------------------------------------------------
# Wrapper: PyTorch-convention NCHW tensors / parameters in, NCHW out
# (matching Block.forward in eval mode).  BN is folded into the conv weights,
# channels are zero-padded to lane-dense multiples of 128.
# ----------------------------------------------------------------------------
def mobilenet_block_pallas(x_nchw, wdw_oihw, wpw_oihw,
                           g1, be1, m1, v1, g2, be2, m2, v2,
                           *, stride=1, eps=1e-5):
    B, Cin, H, W = x_nchw.shape
    Cout = wpw_oihw.shape[0]
    Cin_p = _round_up(Cin, 128)
    Cout_p = _round_up(Cout, 128)
    Ho = (H + 2 - 3) // stride + 1
    Wo = (W + 2 - 3) // stride + 1
    M = B * Ho * Wo

    # MXU-friendly Cout tile. (On v6e, 128 MiB VMEM, this could be raised to 512
    # for deep layers; keep <= 256 for v7x's 64 MiB VMEM.)
    TN = 256 if Cout_p % 256 == 0 else 128
    nJ = Cout_p // TN
    NC = 2 if nJ % 2 == 0 else 1          # megacore split of the Cout-tile axis
    nJi = nJ // NC

    # ---- fold BN (eval mode) into the conv weights; keep only bias adds.
    inv1 = g1 * jax.lax.rsqrt(v1 + eps)                  # (Cin,)
    inv2 = g2 * jax.lax.rsqrt(v2 + eps)                  # (Cout,)
    b1 = be1 - m1 * inv1                                 # (Cin,)
    b2 = be2 - m2 * inv2                                 # (Cout,)
    wdw = jnp.transpose(wdw_oihw[:, 0], (1, 2, 0)) * inv1            # (3,3,Cin)
    wpw = (wpw_oihw[:, :, 0, 0] * inv2[:, None]).T                   # (Cin,Cout)

    # ---- zero-pad channels to lane-dense sizes (padding is numerically inert).
    wdw_p = jnp.pad(wdw, ((0, 0), (0, 0), (0, Cin_p - Cin))).astype(jnp.float32)
    b1_p = jnp.pad(b1, (0, Cin_p - Cin)).reshape(1, 1, Cin_p).astype(jnp.float32)
    wpw_p = jnp.pad(wpw, ((0, Cin_p - Cin), (0, Cout_p - Cout))).astype(jnp.bfloat16)
    b2_p = jnp.pad(b2, (0, Cout_p - Cout)).reshape(1, Cout_p).astype(jnp.float32)

    # NCHW -> NHWC + channel pad + bf16 cast in one fused XLA copy.  The 3x3
    # spatial halo is built inside the kernel (VMEM), not in HBM.
    x_nhwc = jnp.pad(jnp.transpose(x_nchw, (0, 2, 3, 1)),
                     ((0, 0), (0, 0), (0, 0), (0, Cin_p - Cin))
                     ).astype(jnp.bfloat16)

    kern = functools.partial(block_kernel, stride=stride)

    # Advisory cost estimate for XLA's scheduling of the surrounding copies:
    # weight tiles streamed once, image streamed ~once per core, depthwise
    # recomputed once per core, f32 output writeback.
    flops = 2 * M * Cin_p * (9 * NC + Cout_p)
    bytes_accessed = (x_nhwc.size * 2 * NC + wdw_p.size * 4 + b1_p.size * 4
                      + wpw_p.size * 2 + b2_p.size * 4 + M * Cout_p * 4)

    # Explicit scoped-VMEM budget (with headroom) instead of the per-chip
    # default (16 MiB on v5e / 32 MiB on v6e,v7x).
    vmem_need = (2 * x_nhwc.size * 2                 # image, double-buffered bf16
                 + 2 * Cin_p * TN * 2                # wpw tile, double-buffered
                 + 2 * 1 * TN * 4                    # b2 tile, double-buffered
                 + 2 * M * TN * 4                    # out tile, double-buffered
                 + (H + 2) * (W + 2) * Cin_p * 2     # halo scratch (bf16)
                 + M * Cin_p * 2                     # depthwise result (bf16)
                 + wdw_p.size * 4 + b1_p.size * 4)
    vmem_limit = min(max(int(vmem_need * 3 // 2) + (2 << 20), 16 << 20), 48 << 20)

    # TODO(synk): for large feature maps (e.g. 112x112, Cin_p=128, batch > 1) add
    # an output-row grid axis with a 2-row halo DMA; at those sizes the fully
    # resident image/output buffers exceed v7x's 64 MiB (and v5e's scoped) VMEM.
    out = pl.pallas_call(
        kern,
        out_shape=jax.ShapeDtypeStruct((M, Cout_p), x_nchw.dtype),
        grid=(NC, nJi),
        in_specs=[
            pl.BlockSpec((B, H, W, Cin_p), lambda c, j: (0, 0, 0, 0)),
            pl.BlockSpec((3, 3, Cin_p), lambda c, j: (0, 0, 0)),
            pl.BlockSpec((1, 1, Cin_p), lambda c, j: (0, 0, 0)),
            pl.BlockSpec((Cin_p, TN), lambda c, j: (0, c * nJi + j)),
            pl.BlockSpec((1, TN), lambda c, j: (0, c * nJi + j)),
        ],
        out_specs=pl.BlockSpec((M, TN), lambda c, j: (0, c * nJi + j)),
        scratch_shapes=[
            pltpu.VMEM((H + 2, W + 2, Cin_p), jnp.bfloat16),   # halo'd image
            pltpu.VMEM((M, Cin_p), jnp.bfloat16),              # depthwise result
        ],
        compiler_params=pltpu.CompilerParams(
            dimension_semantics=("parallel", "arbitrary"),
            vmem_limit_bytes=vmem_limit),
        cost_estimate=pl.CostEstimate(flops=flops, transcendentals=0,
                                      bytes_accessed=bytes_accessed),
    )(x_nhwc, wdw_p, b1_p, wpw_p, b2_p)

    # (B*Ho*Wo, Cout_p) -> (B, Ho, Wo, Cout) -> NCHW (slice+transpose fuse in XLA).
    out = out.reshape(B, Ho, Wo, Cout_p)[..., :Cout]
    return jnp.transpose(out, (0, 3, 1, 2))


# ----------------------------------------------------------------------------
# Pure-JAX reference (mirrors the PyTorch forward in eval mode).
# ----------------------------------------------------------------------------
def block_ref_nchw(x, wdw_oihw, wpw_oihw, g1, be1, m1, v1, g2, be2, m2, v2,
                   *, stride=1, eps=1e-5):
    Cin = x.shape[1]
    y = jax.lax.conv_general_dilated(
        x, wdw_oihw, (stride, stride), ((1, 1), (1, 1)),
        feature_group_count=Cin,
        dimension_numbers=("NCHW", "OIHW", "NCHW"))
    y = (y - m1[None, :, None, None]) * jax.lax.rsqrt(v1 + eps)[None, :, None, None]
    y = y * g1[None, :, None, None] + be1[None, :, None, None]
    y = jnp.maximum(y, 0.0)

    y = jax.lax.conv_general_dilated(
        y, wpw_oihw, (1, 1), ((0, 0), (0, 0)),
        dimension_numbers=("NCHW", "OIHW", "NCHW"))
    y = (y - m2[None, :, None, None]) * jax.lax.rsqrt(v2 + eps)[None, :, None, None]
    y = y * g2[None, :, None, None] + be2[None, :, None, None]
    return jnp.maximum(y, 0.0)


if __name__ == "__main__":
    key = jax.random.PRNGKey(0)
    ks = jax.random.split(key, 12)

    B, Cin, H, W = 2, 4, 16, 16
    Cout = 8
    stride = 1
    eps = 1e-5

    # PyTorch-convention parameter shapes.
    x_nchw = jax.random.normal(ks[0], (B, Cin, H, W), jnp.float32)
    wdw_oihw = jax.random.normal(ks[1], (Cin, 1, 3, 3), jnp.float32) * 0.3
    wpw_oihw = jax.random.normal(ks[2], (Cout, Cin, 1, 1), jnp.float32) * 0.3

    g1 = jax.random.normal(ks[3], (Cin,), jnp.float32) * 0.1 + 1.0
    be1 = jax.random.normal(ks[4], (Cin,), jnp.float32) * 0.1
    m1 = jax.random.normal(ks[5], (Cin,), jnp.float32) * 0.1
    v1 = jnp.abs(jax.random.normal(ks[6], (Cin,), jnp.float32)) * 0.5 + 0.5

    g2 = jax.random.normal(ks[7], (Cout,), jnp.float32) * 0.1 + 1.0
    be2 = jax.random.normal(ks[8], (Cout,), jnp.float32) * 0.1
    m2 = jax.random.normal(ks[9], (Cout,), jnp.float32) * 0.1
    v2 = jnp.abs(jax.random.normal(ks[10], (Cout,), jnp.float32)) * 0.5 + 0.5

    out_nchw = mobilenet_block_pallas(
        x_nchw, wdw_oihw, wpw_oihw, g1, be1, m1, v1, g2, be2, m2, v2,
        stride=stride, eps=eps)
    out_nchw = jax.block_until_ready(out_nchw)

    ref = block_ref_nchw(x_nchw, wdw_oihw, wpw_oihw,
                         g1, be1, m1, v1, g2, be2, m2, v2,
                         stride=stride, eps=eps)
    ref = jax.block_until_ready(ref)

    assert out_nchw.shape == ref.shape == (B, Cout, H // stride, W // stride)
    # bf16 image, bf16 depthwise result and bf16 pointwise weights (f32
    # accumulation everywhere) -> relaxed tolerance vs. the f32 reference.
    max_err = float(jnp.max(jnp.abs(out_nchw - ref)))
    assert jnp.allclose(out_nchw, ref, rtol=5e-2, atol=8e-2), max_err

    print("KERNEL_OK")
</pallas_src>

<mosaic_0001>
module attributes {stable_mosaic.version = 11 : i64} {
  func.func @block_kernel(%arg0: i32, %arg1: i32, %arg2: memref<2x16x16x128xbf16, #tpu.memory_space<vmem>>, %arg3: memref<3x3x128xf32, #tpu.memory_space<vmem>>, %arg4: memref<1x1x128xf32, #tpu.memory_space<vmem>>, %arg5: memref<128x128xbf16, #tpu.memory_space<vmem>>, %arg6: memref<1x128xf32, #tpu.memory_space<vmem>>, %arg7: memref<512x128xf32, #tpu.memory_space<vmem>>, %arg8: memref<18x18x128xbf16, #tpu.memory_space<vmem>>, %arg9: memref<512x128xbf16, #tpu.memory_space<vmem>>) attributes {dimension_semantics = [#tpu.dimension_semantics<parallel>, #tpu.dimension_semantics<arbitrary>], iteration_bounds = array<i64: 1, 1>, scalar_prefetch = 0 : i64, scratch_operands = 2 : i64, tpu.core_type = #tpu.core_type<tc>, window_params = [{pipeline_mode = #tpu.pipeline_mode<synchronous>, transform_indices = @transform_0, window_bounds = array<i64: 2, 16, 16, 128>}, {pipeline_mode = #tpu.pipeline_mode<synchronous>, transform_indices = @transform_1, window_bounds = array<i64: 3, 3, 128>}, {pipeline_mode = #tpu.pipeline_mode<synchronous>, transform_indices = @transform_2, window_bounds = array<i64: 1, 1, 128>}, {transform_indices = @transform_3, window_bounds = array<i64: 128, 128>}, {transform_indices = @transform_4, window_bounds = array<i64: 1, 128>}, {transform_indices = @transform_5, window_bounds = array<i64: 512, 128>}]} {
    %c0_i32 = arith.constant 0 : i32
    %0 = arith.cmpi eq, %arg1, %c0_i32 : i32
    %1 = arith.extui %0 : i1 to i32
    %c0_i32_0 = arith.constant 0 : i32
    %2 = arith.cmpi ne, %1, %c0_i32_0 : i32
    scf.if %2 {
      %cst_9 = arith.constant 0.000000e+00 : bf16
      %12 = vector.broadcast %cst_9 : bf16 to vector<1x18x128xbf16>
      %cst_10 = arith.constant 0.000000e+00 : bf16
      %13 = vector.broadcast %cst_10 : bf16 to vector<18x1x128xbf16>
      %c0_11 = arith.constant 0 : index
      %c0_12 = arith.constant 0 : index
      %c0_13 = arith.constant 0 : index
      %14 = vector.load %arg8[%c0_11, %c0_12, %c0_13] : memref<18x18x128xbf16, #tpu.memory_space<vmem>>, vector<1x18x128xbf16>
      tpu.vector_store %arg8[%c0_11, %c0_12, %c0_13], %12 {strides = array<i32>} : memref<18x18x128xbf16, #tpu.memory_space<vmem>>, vector<1x18x128xbf16>,
      %c17 = arith.constant 17 : index
      %c0_14 = arith.constant 0 : index
      %c0_15 = arith.constant 0 : index
      %15 = vector.load %arg8[%c17, %c0_14, %c0_15] : memref<18x18x128xbf16, #tpu.memory_space<vmem>>, vector<1x18x128xbf16>
      tpu.vector_store %arg8[%c17, %c0_14, %c0_15], %12 {strides = array<i32>} : memref<18x18x128xbf16, #tpu.memory_space<vmem>>, vector<1x18x128xbf16>,
      %c0_16 = arith.constant 0 : index
      %c0_17 = arith.constant 0 : index
      %c0_18 = arith.constant 0 : index
      %16 = vector.load %arg8[%c0_16, %c0_17, %c0_18] : memref<18x18x128xbf16, #tpu.memory_space<vmem>>, vector<18x1x128xbf16>
      tpu.vector_store %arg8[%c0_16, %c0_17, %c0_18], %13 {strides = array<i32>} : memref<18x18x128xbf16, #tpu.memory_space<vmem>>, vector<18x1x128xbf16>,
      %c0_19 = arith.constant 0 : index
      %c17_20 = arith.constant 17 : index
      %c0_21 = arith.constant 0 : index
      %17 = vector.load %arg8[%c0_19, %c17_20, %c0_21] : memref<18x18x128xbf16, #tpu.memory_space<vmem>>, vector<18x1x128xbf16>
      tpu.vector_store %arg8[%c0_19, %c17_20, %c0_21], %13 {strides = array<i32>} : memref<18x18x128xbf16, #tpu.memory_space<vmem>>, vector<18x1x128xbf16>,
      %c0_22 = arith.constant 0 : index
      %c0_23 = arith.constant 0 : index
      %c0_24 = arith.constant 0 : index
      %18 = vector.load %arg3[%c0_22, %c0_23, %c0_24] : memref<3x3x128xf32, #tpu.memory_space<vmem>>, vector<3x3x128xf32>
      %c0_25 = arith.constant 0 : index
      %c0_26 = arith.constant 0 : index
      %c0_27 = arith.constant 0 : index
      %19 = vector.load %arg4[%c0_25, %c0_26, %c0_27] : memref<1x1x128xf32, #tpu.memory_space<vmem>>, vector<1x1x128xf32>
      %c0_28 = arith.constant 0 : index
      %c0_29 = arith.constant 0 : index
      %c0_30 = arith.constant 0 : index
      %c0_31 = arith.constant 0 : index
      %20 = vector.load %arg2[%c0_28, %c0_29, %c0_30, %c0_31] : memref<2x16x16x128xbf16, #tpu.memory_space<vmem>>, vector<1x16x16x128xbf16>
      %21 = vector.shape_cast %20 : vector<1x16x16x128xbf16> to vector<16x16x128xbf16>
      %c1 = arith.constant 1 : index
      %c1_32 = arith.constant 1 : index
      %c0_33 = arith.constant 0 : index
      %22 = vector.load %arg8[%c1, %c1_32, %c0_33] : memref<18x18x128xbf16, #tpu.memory_space<vmem>>, vector<16x16x128xbf16>
      tpu.vector_store %arg8[%c1, %c1_32, %c0_33], %21 {strides = array<i32>} : memref<18x18x128xbf16, #tpu.memory_space<vmem>>, vector<16x16x128xbf16>,
      %c0_34 = arith.constant 0 : index
      %c0_35 = arith.constant 0 : index
      %c0_36 = arith.constant 0 : index
      %23 = vector.load %arg8[%c0_34, %c0_35, %c0_36] : memref<18x18x128xbf16, #tpu.memory_space<vmem>>, vector<16x16x128xbf16>
      %24 = arith.extf %23 : vector<16x16x128xbf16> to vector<16x16x128xf32>
      %25 = vector.extract_strided_slice %18 {offsets = [0, 0, 0], sizes = [1, 1, 128], strides = [1, 1, 1]} : vector<3x3x128xf32> to vector<1x1x128xf32>
      %26 = vector.shape_cast %25 : vector<1x1x128xf32> to vector<128xf32>
      %27 = vector.shape_cast %26 : vector<128xf32> to vector<1x1x128xf32>
      %28 = vector.broadcast %27 : vector<1x1x128xf32> to vector<16x16x128xf32>
      %29 = arith.mulf %24, %28 : vector<16x16x128xf32>
      %c0_37 = arith.constant 0 : index
      %c1_38 = arith.constant 1 : index
      %c0_39 = arith.constant 0 : index
      %30 = vector.load %arg8[%c0_37, %c1_38, %c0_39] : memref<18x18x128xbf16, #tpu.memory_space<vmem>>, vector<16x16x128xbf16>
      %31 = arith.extf %30 : vector<16x16x128xbf16> to vector<16x16x128xf32>
      %32 = vector.extract_strided_slice %18 {offsets = [0, 1, 0], sizes = [1, 1, 128], strides = [1, 1, 1]} : vector<3x3x128xf32> to vector<1x1x128xf32>
      %33 = vector.shape_cast %32 : vector<1x1x128xf32> to vector<128xf32>
      %34 = vector.shape_cast %33 : vector<128xf32> to vector<1x1x128xf32>
      %35 = vector.broadcast %34 : vector<1x1x128xf32> to vector<16x16x128xf32>
      %36 = arith.mulf %31, %35 : vector<16x16x128xf32>
      %37 = arith.addf %29, %36 : vector<16x16x128xf32>
      %c0_40 = arith.constant 0 : index
      %c2 = arith.constant 2 : index
      %c0_41 = arith.constant 0 : index
      %38 = vector.load %arg8[%c0_40, %c2, %c0_41] : memref<18x18x128xbf16, #tpu.memory_space<vmem>>, vector<16x16x128xbf16>
      %39 = arith.extf %38 : vector<16x16x128xbf16> to vector<16x16x128xf32>
      %40 = vector.extract_strided_slice %18 {offsets = [0, 2, 0], sizes = [1, 1, 128], strides = [1, 1, 1]} : vector<3x3x128xf32> to vector<1x1x128xf32>
      %41 = vector.shape_cast %40 : vector<1x1x128xf32> to vector<128xf32>
      %42 = vector.shape_cast %41 : vector<128xf32> to vector<1x1x128xf32>
      %43 = vector.broadcast %42 : vector<1x1x128xf32> to vector<16x16x128xf32>
      %44 = arith.mulf %39, %43 : vector<16x16x128xf32>
      %45 = arith.addf %37, %44 : vector<16x16x128xf32>
      %c1_42 = arith.constant 1 : index
      %c0_43 = arith.constant 0 : index
      %c0_44 = arith.constant 0 : index
      %46 = vector.load %arg8[%c1_42, %c0_43, %c0_44] : memref<18x18x128xbf16, #tpu.memory_space<vmem>>, vector<16x16x128xbf16>
      %47 = arith.extf %46 : vector<16x16x128xbf16> to vector<16x16x128xf32>
      %48 = vector.extract_strided_slice %18 {offsets = [1, 0, 0], sizes = [1, 1, 128], strides = [1, 1, 1]} : vector<3x3x128xf32> to vector<1x1x128xf32>
      %49 = vector.shape_cast %48 : vector<1x1x128xf32> to vector<128xf32>
      %50 = vector.shape_cast %49 : vector<128xf32> to vector<1x1x128xf32>
      %51 = vector.broadcast %50 : vector<1x1x128xf32> to vector<16x16x128xf32>
      %52 = arith.mulf %47, %51 : vector<16x16x128xf32>
      %53 = arith.addf %45, %52 : vector<16x16x128xf32>
      %c1_45 = arith.constant 1 : index
      %c1_46 = arith.constant 1 : index
      %c0_47 = arith.constant 0 : index
      %54 = vector.load %arg8[%c1_45, %c1_46, %c0_47] : memref<18x18x128xbf16, #tpu.memory_space<vmem>>, vector<16x16x128xbf16>
      %55 = arith.extf %54 : vector<16x16x128xbf16> to vector<16x16x128xf32>
      %56 = vector.extract_strided_slice %18 {offsets = [1, 1, 0], sizes = [1, 1, 128], strides = [1, 1, 1]} : vector<3x3x128xf32> to vector<1x1x128xf32>
      %57 = vector.shape_cast %56 : vector<1x1x128xf32> to vector<128xf32>
      %58 = vector.shape_cast %57 : vector<128xf32> to vector<1x1x128xf32>
      %59 = vector.broadcast %58 : vector<1x1x128xf32> to vector<16x16x128xf32>
      %60 = arith.mulf %55, %59 : vector<16x16x128xf32>
      %61 = arith.addf %53, %60 : vector<16x16x128xf32>
      %c1_48 = arith.constant 1 : index
      %c2_49 = arith.constant 2 : index
      %c0_50 = arith.constant 0 : index
      %62 = vector.load %arg8[%c1_48, %c2_49, %c0_50] : memref<18x18x128xbf16, #tpu.memory_space<vmem>>, vector<16x16x128xbf16>
      %63 = arith.extf %62 : vector<16x16x128xbf16> to vector<16x16x128xf32>
      %64 = vector.extract_strided_slice %18 {offsets = [1, 2, 0], sizes = [1, 1, 128], strides = [1, 1, 1]} : vector<3x3x128xf32> to vector<1x1x128xf32>
      %65 = vector.shape_cast %64 : vector<1x1x128xf32> to vector<128xf32>
      %66 = vector.shape_cast %65 : vector<128xf32> to vector<1x1x128xf32>
      %67 = vector.broadcast %66 : vector<1x1x128xf32> to vector<16x16x128xf32>
      %68 = arith.mulf %63, %67 : vector<16x16x128xf32>
      %69 = arith.addf %61, %68 : vector<16x16x128xf32>
      %c2_51 = arith.constant 2 : index
      %c0_52 = arith.constant 0 : index
      %c0_53 = arith.constant 0 : index
      %70 = vector.load %arg8[%c2_51, %c0_52, %c0_53] : memref<18x18x128xbf16, #tpu.memory_space<vmem>>, vector<16x16x128xbf16>
      %71 = arith.extf %70 : vector<16x16x128xbf16> to vector<16x16x128xf32>
      %72 = vector.extract_strided_slice %18 {offsets = [2, 0, 0], sizes = [1, 1, 128], strides = [1, 1, 1]} : vector<3x3x128xf32> to vector<1x1x128xf32>
      %73 = vector.shape_cast %72 : vector<1x1x128xf32> to vector<128xf32>
      %74 = vector.shape_cast %73 : vector<128xf32> to vector<1x1x128xf32>
      %75 = vector.broadcast %74 : vector<1x1x128xf32> to vector<16x16x128xf32>
      %76 = arith.mulf %71, %75 : vector<16x16x128xf32>
      %77 = arith.addf %69, %76 : vector<16x16x128xf32>
      %c2_54 = arith.constant 2 : index
      %c1_55 = arith.constant 1 : index
      %c0_56 = arith.constant 0 : index
      %78 = vector.load %arg8[%c2_54, %c1_55, %c0_56] : memref<18x18x128xbf16, #tpu.memory_space<vmem>>, vector<16x16x128xbf16>
      %79 = arith.extf %78 : vector<16x16x128xbf16> to vector<16x16x128xf32>
      %80 = vector.extract_strided_slice %18 {offsets = [2, 1, 0], sizes = [1, 1, 128], strides = [1, 1, 1]} : vector<3x3x128xf32> to vector<1x1x128xf32>
      %81 = vector.shape_cast %80 : vector<1x1x128xf32> to vector<128xf32>
      %82 = vector.shape_cast %81 : vector<128xf32> to vector<1x1x128xf32>
      %83 = vector.broadcast %82 : vector<1x1x128xf32> to vector<16x16x128xf32>
      %84 = arith.mulf %79, %83 : vector<16x16x128xf32>
      %85 = arith.addf %77, %84 : vector<16x16x128xf32>
      %c2_57 = arith.constant 2 : index
      %c2_58 = arith.constant 2 : index
      %c0_59 = arith.constant 0 : index
      %86 = vector.load %arg8[%c2_57, %c2_58, %c0_59] : memref<18x18x128xbf16, #tpu.memory_space<vmem>>, vector<16x16x128xbf16>
      %87 = arith.extf %86 : vector<16x16x128xbf16> to vector<16x16x128xf32>
      %88 = vector.extract_strided_slice %18 {offsets = [2, 2, 0], sizes = [1, 1, 128], strides = [1, 1, 1]} : vector<3x3x128xf32> to vector<1x1x128xf32>
      %89 = vector.shape_cast %88 : vector<1x1x128xf32> to vector<128xf32>
      %90 = vector.shape_cast %89 : vector<128xf32> to vector<1x1x128xf32>
      %91 = vector.broadcast %90 : vector<1x1x128xf32> to vector<16x16x128xf32>
      %92 = arith.mulf %87, %91 : vector<16x16x128xf32>
      %93 = arith.addf %85, %92 : vector<16x16x128xf32>
      %94 = vector.broadcast %19 : vector<1x1x128xf32> to vector<16x16x128xf32>
      %95 = arith.addf %93, %94 : vector<16x16x128xf32>
      %cst_60 = arith.constant 0.000000e+00 : f32
      %96 = vector.broadcast %cst_60 : f32 to vector<16x16x128xf32>
      %97 = arith.maximumf %95, %96 : vector<16x16x128xf32>
      %98 = vector.shape_cast %97 : vector<16x16x128xf32> to vector<256x128xf32>
      %99 = arith.truncf %98 : vector<256x128xf32> to vector<256x128xbf16>
      %c0_61 = arith.constant 0 : index
      %c0_62 = arith.constant 0 : index
      %100 = vector.load %arg9[%c0_61, %c0_62] : memref<512x128xbf16, #tpu.memory_space<vmem>>, vector<256x128xbf16>
      tpu.vector_store %arg9[%c0_61, %c0_62], %99 {strides = array<i32>} : memref<512x128xbf16, #tpu.memory_space<vmem>>, vector<256x128xbf16>,
      %c1_63 = arith.constant 1 : index
      %c0_64 = arith.constant 0 : index
      %c0_65 = arith.constant 0 : index
      %c0_66 = arith.constant 0 : index
      %101 = vector.load %arg2[%c1_63, %c0_64, %c0_65, %c0_66] : memref<2x16x16x128xbf16, #tpu.memory_space<vmem>>, vector<1x16x16x128xbf16>
      %102 = vector.shape_cast %101 : vector<1x16x16x128xbf16> to vector<16x16x128xbf16>
      %c1_67 = arith.constant 1 : index
      %c1_68 = arith.constant 1 : index
      %c0_69 = arith.constant 0 : index
      %103 = vector.load %arg8[%c1_67, %c1_68, %c0_69] : memref<18x18x128xbf16, #tpu.memory_space<vmem>>, vector<16x16x128xbf16>
      tpu.vector_store %arg8[%c1_67, %c1_68, %c0_69], %102 {strides = array<i32>} : memref<18x18x128xbf16, #tpu.memory_space<vmem>>, vector<16x16x128xbf16>,
      %c0_70 = arith.constant 0 : index
      %c0_71 = arith.constant 0 : index
      %c0_72 = arith.constant 0 : index
      %104 = vector.load %arg8[%c0_70, %c0_71, %c0_72] : memref<18x18x128xbf16, #tpu.memory_space<vmem>>, vector<16x16x128xbf16>
      %105 = arith.extf %104 : vector<16x16x128xbf16> to vector<16x16x128xf32>
      %106 = vector.extract_strided_slice %18 {offsets = [0, 0, 0], sizes = [1, 1, 128], strides = [1, 1, 1]} : vector<3x3x128xf32> to vector<1x1x128xf32>
      %107 = vector.shape_cast %106 : vector<1x1x128xf32> to vector<128xf32>
      %108 = vector.shape_cast %107 : vector<128xf32> to vector<1x1x128xf32>
      %109 = vector.broadcast %108 : vector<1x1x128xf32> to vector<16x16x128xf32>
      %110 = arith.mulf %105, %109 : vector<16x16x128xf32>
      %c0_73 = arith.constant 0 : index
      %c1_74 = arith.constant 1 : index
      %c0_75 = arith.constant 0 : index
      %111 = vector.load %arg8[%c0_73, %c1_74, %c0_75] : memref<18x18x128xbf16, #tpu.memory_space<vmem>>, vector<16x16x128xbf16>
      %112 = arith.extf %111 : vector<16x16x128xbf16> to vector<16x16x128xf32>
      %113 = vector.extract_strided_slice %18 {offsets = [0, 1, 0], sizes = [1, 1, 128], strides = [1, 1, 1]} : vector<3x3x128xf32> to vector<1x1x128xf32>
      %114 = vector.shape_cast %113 : vector<1x1x128xf32> to vector<128xf32>
      %115 = vector.shape_cast %114 : vector<128xf32> to vector<1x1x128xf32>
      %116 = vector.broadcast %115 : vector<1x1x128xf32> to vector<16x16x128xf32>
      %117 = arith.mulf %112, %116 : vector<16x16x128xf32>
      %118 = arith.addf %110, %117 : vector<16x16x128xf32>
      %c0_76 = arith.constant 0 : index
      %c2_77 = arith.constant 2 : index
      %c0_78 = arith.constant 0 : index
      %119 = vector.load %arg8[%c0_76, %c2_77, %c0_78] : memref<18x18x128xbf16, #tpu.memory_space<vmem>>, vector<16x16x128xbf16>
      %120 = arith.extf %119 : vector<16x16x128xbf16> to vector<16x16x128xf32>
      %121 = vector.extract_strided_slice %18 {offsets = [0, 2, 0], sizes = [1, 1, 128], strides = [1, 1, 1]} : vector<3x3x128xf32> to vector<1x1x128xf32>
      %122 = vector.shape_cast %121 : vector<1x1x128xf32> to vector<128xf32>
      %123 = vector.shape_cast %122 : vector<128xf32> to vector<1x1x128xf32>
      %124 = vector.broadcast %123 : vector<1x1x128xf32> to vector<16x16x128xf32>
      %125 = arith.mulf %120, %124 : vector<16x16x128xf32>
      %126 = arith.addf %118, %125 : vector<16x16x128xf32>
      %c1_79 = arith.constant 1 : index
      %c0_80 = arith.constant 0 : index
      %c0_81 = arith.constant 0 : index
      %127 = vector.load %arg8[%c1_79, %c0_80, %c0_81] : memref<18x18x128xbf16, #tpu.memory_space<vmem>>, vector<16x16x128xbf16>
      %128 = arith.extf %127 : vector<16x16x128xbf16> to vector<16x16x128xf32>
      %129 = vector.extract_strided_slice %18 {offsets = [1, 0, 0], sizes = [1, 1, 128], strides = [1, 1, 1]} : vector<3x3x128xf32> to vector<1x1x128xf32>
      %130 = vector.shape_cast %129 : vector<1x1x128xf32> to vector<128xf32>
      %131 = vector.shape_cast %130 : vector<128xf32> to vector<1x1x128xf32>
      %132 = vector.broadcast %131 : vector<1x1x128xf32> to vector<16x16x128xf32>
      %133 = arith.mulf %128, %132 : vector<16x16x128xf32>
      %134 = arith.addf %126, %133 : vector<16x16x128xf32>
      %c1_82 = arith.constant 1 : index
      %c1_83 = arith.constant 1 : index
      %c0_84 = arith.constant 0 : index
      %135 = vector.load %arg8[%c1_82, %c1_83, %c0_84] : memref<18x18x128xbf16, #tpu.memory_space<vmem>>, vector<16x16x128xbf16>
      %136 = arith.extf %135 : vector<16x16x128xbf16> to vector<16x16x128xf32>
      %137 = vector.extract_strided_slice %18 {offsets = [1, 1, 0], sizes = [1, 1, 128], strides = [1, 1, 1]} : vector<3x3x128xf32> to vector<1x1x128xf32>
      %138 = vector.shape_cast %137 : vector<1x1x128xf32> to vector<128xf32>
      %139 = vector.shape_cast %138 : vector<128xf32> to vector<1x1x128xf32>
      %140 = vector.broadcast %139 : vector<1x1x128xf32> to vector<16x16x128xf32>
      %141 = arith.mulf %136, %140 : vector<16x16x128xf32>
      %142 = arith.addf %134, %141 : vector<16x16x128xf32>
      %c1_85 = arith.constant 1 : index
      %c2_86 = arith.constant 2 : index
      %c0_87 = arith.constant 0 : index
      %143 = vector.load %arg8[%c1_85, %c2_86, %c0_87] : memref<18x18x128xbf16, #tpu.memory_space<vmem>>, vector<16x16x128xbf16>
      %144 = arith.extf %143 : vector<16x16x128xbf16> to vector<16x16x128xf32>
      %145 = vector.extract_strided_slice %18 {offsets = [1, 2, 0], sizes = [1, 1, 128], strides = [1, 1, 1]} : vector<3x3x128xf32> to vector<1x1x128xf32>
      %146 = vector.shape_cast %145 : vector<1x1x128xf32> to vector<128xf32>
      %147 = vector.shape_cast %146 : vector<128xf32> to vector<1x1x128xf32>
      %148 = vector.broadcast %147 : vector<1x1x128xf32> to vector<16x16x128xf32>
      %149 = arith.mulf %144, %148 : vector<16x16x128xf32>
      %150 = arith.addf %142, %149 : vector<16x16x128xf32>
      %c2_88 = arith.constant 2 : index
      %c0_89 = arith.constant 0 : index
      %c0_90 = arith.constant 0 : index
      %151 = vector.load %arg8[%c2_88, %c0_89, %c0_90] : memref<18x18x128xbf16, #tpu.memory_space<vmem>>, vector<16x16x128xbf16>
      %152 = arith.extf %151 : vector<16x16x128xbf16> to vector<16x16x128xf32>
      %153 = vector.extract_strided_slice %18 {offsets = [2, 0, 0], sizes = [1, 1, 128], strides = [1, 1, 1]} : vector<3x3x128xf32> to vector<1x1x128xf32>
      %154 = vector.shape_cast %153 : vector<1x1x128xf32> to vector<128xf32>
      %155 = vector.shape_cast %154 : vector<128xf32> to vector<1x1x128xf32>
      %156 = vector.broadcast %155 : vector<1x1x128xf32> to vector<16x16x128xf32>
      %157 = arith.mulf %152, %156 : vector<16x16x128xf32>
      %158 = arith.addf %150, %157 : vector<16x16x128xf32>
      %c2_91 = arith.constant 2 : index
      %c1_92 = arith.constant 1 : index
      %c0_93 = arith.constant 0 : index
      %159 = vector.load %arg8[%c2_91, %c1_92, %c0_93] : memref<18x18x128xbf16, #tpu.memory_space<vmem>>, vector<16x16x128xbf16>
      %160 = arith.extf %159 : vector<16x16x128xbf16> to vector<16x16x128xf32>
      %161 = vector.extract_strided_slice %18 {offsets = [2, 1, 0], sizes = [1, 1, 128], strides = [1, 1, 1]} : vector<3x3x128xf32> to vector<1x1x128xf32>
      %162 = vector.shape_cast %161 : vector<1x1x128xf32> to vector<128xf32>
      %163 = vector.shape_cast %162 : vector<128xf32> to vector<1x1x128xf32>
      %164 = vector.broadcast %163 : vector<1x1x128xf32> to vector<16x16x128xf32>
      %165 = arith.mulf %160, %164 : vector<16x16x128xf32>
      %166 = arith.addf %158, %165 : vector<16x16x128xf32>
      %c2_94 = arith.constant 2 : index
      %c2_95 = arith.constant 2 : index
      %c0_96 = arith.constant 0 : index
      %167 = vector.load %arg8[%c2_94, %c2_95, %c0_96] : memref<18x18x128xbf16, #tpu.memory_space<vmem>>, vector<16x16x128xbf16>
      %168 = arith.extf %167 : vector<16x16x128xbf16> to vector<16x16x128xf32>
      %169 = vector.extract_strided_slice %18 {offsets = [2, 2, 0], sizes = [1, 1, 128], strides = [1, 1, 1]} : vector<3x3x128xf32> to vector<1x1x128xf32>
      %170 = vector.shape_cast %169 : vector<1x1x128xf32> to vector<128xf32>
      %171 = vector.shape_cast %170 : vector<128xf32> to vector<1x1x128xf32>
      %172 = vector.broadcast %171 : vector<1x1x128xf32> to vector<16x16x128xf32>
      %173 = arith.mulf %168, %172 : vector<16x16x128xf32>
      %174 = arith.addf %166, %173 : vector<16x16x128xf32>
      %175 = vector.broadcast %19 : vector<1x1x128xf32> to vector<16x16x128xf32>
      %176 = arith.addf %174, %175 : vector<16x16x128xf32>
      %cst_97 = arith.constant 0.000000e+00 : f32
      %177 = vector.broadcast %cst_97 : f32 to vector<16x16x128xf32>
      %178 = arith.maximumf %176, %177 : vector<16x16x128xf32>
      %179 = vector.shape_cast %178 : vector<16x16x128xf32> to vector<256x128xf32>
      %180 = arith.truncf %179 : vector<256x128xf32> to vector<256x128xbf16>
      %c256 = arith.constant 256 : index
      %c0_98 = arith.constant 0 : index
      %181 = vector.load %arg9[%c256, %c0_98] : memref<512x128xbf16, #tpu.memory_space<vmem>>, vector<256x128xbf16>
      tpu.vector_store %arg9[%c256, %c0_98], %180 {strides = array<i32>} : memref<512x128xbf16, #tpu.memory_space<vmem>>, vector<256x128xbf16>,
    } else {
    }
    %c0 = arith.constant 0 : index
    %c0_1 = arith.constant 0 : index
    %3 = vector.load %arg9[%c0, %c0_1] : memref<512x128xbf16, #tpu.memory_space<vmem>>, vector<512x128xbf16>
    %c0_2 = arith.constant 0 : index
    %c0_3 = arith.constant 0 : index
    %4 = vector.load %arg5[%c0_2, %c0_3] : memref<128x128xbf16, #tpu.memory_space<vmem>>, vector<128x128xbf16>
    %cst = arith.constant dense<0.000000e+00> : vector<512x128xf32>
    %5 = tpu.matmul %3, %4, %cst {dimension_numbers = #tpu.dot_dimension_numbers<[1], [0], [0], [1], [0, 0, 1, 1], [], []>} : vector<512x128xbf16>, vector<128x128xbf16>, vector<512x128xf32> -> vector<512x128xf32>
    %c0_4 = arith.constant 0 : index
    %c0_5 = arith.constant 0 : index
    %6 = vector.load %arg6[%c0_4, %c0_5] : memref<1x128xf32, #tpu.memory_space<vmem>>, vector<1x128xf32>
    %7 = vector.broadcast %6 : vector<1x128xf32> to vector<512x128xf32>
    %8 = arith.addf %5, %7 : vector<512x128xf32>
    %cst_6 = arith.constant 0.000000e+00 : f32
    %9 = vector.broadcast %cst_6 : f32 to vector<512x128xf32>
    %10 = arith.maximumf %8, %9 : vector<512x128xf32>
    %c0_7 = arith.constant 0 : index
    %c0_8 = arith.constant 0 : index
    %11 = vector.load %arg7[%c0_7, %c0_8] : memref<512x128xf32, #tpu.memory_space<vmem>>, vector<512x128xf32>
    tpu.vector_store %arg7[%c0_7, %c0_8], %10 {strides = array<i32>} : memref<512x128xf32, #tpu.memory_space<vmem>>, vector<512x128xf32>,
    return
  }
  func.func @transform_0(%arg0: i32, %arg1: i32) -> (i32, i32, i32, i32) {
    %c0_i32 = arith.constant 0 : i32
    %c0_i32_0 = arith.constant 0 : i32
    %c0_i32_1 = arith.constant 0 : i32
    %c0_i32_2 = arith.constant 0 : i32
    %c0_i32_3 = arith.constant 0 : i32
    return %c0_i32, %c0_i32_0, %c0_i32_1, %c0_i32_2 : i32, i32, i32, i32
  }
  func.func @transform_1(%arg0: i32, %arg1: i32) -> (i32, i32, i32) {
    %c0_i32 = arith.constant 0 : i32
    %c0_i32_0 = arith.constant 0 : i32
    %c0_i32_1 = arith.constant 0 : i32
    %c0_i32_2 = arith.constant 0 : i32
    return %c0_i32, %c0_i32_0, %c0_i32_1 : i32, i32, i32
  }
  func.func @transform_2(%arg0: i32, %arg1: i32) -> (i32, i32, i32) {
    %c0_i32 = arith.constant 0 : i32
    %c0_i32_0 = arith.constant 0 : i32
    %c0_i32_1 = arith.constant 0 : i32
    %c0_i32_2 = arith.constant 0 : i32
    return %c0_i32, %c0_i32_0, %c0_i32_1 : i32, i32, i32
  }
  func.func @transform_3(%arg0: i32, %arg1: i32) -> (i32, i32) {
    %c1_i32 = arith.constant 1 : i32
    %0 = arith.muli %arg0, %c1_i32 : i32
    %1 = arith.addi %0, %arg1 : i32
    %c0_i32 = arith.constant 0 : i32
    %c0_i32_0 = arith.constant 0 : i32
    return %c0_i32, %1 : i32, i32
  }
  func.func @transform_4(%arg0: i32, %arg1: i32) -> (i32, i32) {
    %c1_i32 = arith.constant 1 : i32
    %0 = arith.muli %arg0, %c1_i32 : i32
    %1 = arith.addi %0, %arg1 : i32
    %c0_i32 = arith.constant 0 : i32
    %c0_i32_0 = arith.constant 0 : i32
    return %c0_i32, %1 : i32, i32
  }
  func.func @transform_5(%arg0: i32, %arg1: i32) -> (i32, i32) {
    %c1_i32 = arith.constant 1 : i32
    %0 = arith.muli %arg0, %c1_i32 : i32
    %1 = arith.addi %0, %arg1 : i32
    %c0_i32 = arith.constant 0 : i32
    %c0_i32_0 = arith.constant 0 : i32
    return %c0_i32, %1 : i32, i32
  }
}

</mosaic_0001>

<llo_original>
// kernel: tpu_custom_call.1
$region0: #{tpu_custom_call.1}
  #allocation0 [shape = 'u32[]', space=smem, size = 0x4, offset = 0x4, fixed_abs, tag = 'smem constant byte address 0x4 - core index']
  #allocation1 [shape = 'u32[144,128]{1,0:T(1,128)}', space=vmem, size = 0x12000, scoped, tag = 'internal scratch']
  #allocation2 [shape = 'bf16[18,18,128]{2,1,0:T(8,128)(2,1)}', space=vmem, size = 0x1b000, scoped, tag = 'scratch operand']
  #allocation3 [shape = 'bf16[512,128]{1,0:T(16,128)(2,1)}', space=vmem, size = 0x20000, scoped, tag = 'scratch operand']
  %s0 = inlined_call_operand.hbm [shape: bf16[2,16,16,128], index: 0, kind: input, shape index: {}]
  %s1 = inlined_call_operand.hbm [shape: f32[3,3,128], index: 1, kind: input, shape index: {}]
  %s2 = inlined_call_operand.vmem [shape: f32[1,1,128], index: 2, kind: input, shape index: {}]
  %s3 = inlined_call_operand.hbm [shape: bf16[128,128], index: 3, kind: input, shape index: {}]
  %s4 = inlined_call_operand.vmem [shape: f32[1,128], index: 4, kind: input, shape index: {}]
  %s5 = inlined_call_operand.hbm [shape: f32[512,128], index: 5, kind: output, shape index: {}]
  %s6 = sld [smem:[#allocation0]]
  $region46: #{tpu_custom_call.1} parent=0
    _
  %s8 = ssub.s32 1, %s6
  %s9 = scalar_select 0, %s8, %s6
  $region1: #{tpu_custom_call.1} parent=0
    #allocation4 [shape = 'u8[131072]{0}', space=vmem, size = 0x20000, scoped, tag = 'input window, operand 0, single buffered']
    #allocation5 [shape = 's32[1]{0}', space=sflag, size = 0x4, scoped, tag = 'scoped memory for tpu_custom_call.1']
    #allocation6 [shape = 's32[1]{0}', space=sflag, size = 0x4, scoped, tag = 'scoped memory for tpu_custom_call.1']
    #allocation7 [shape = 'u8[6144]{0}', space=vmem, size = 0x1800, scoped, tag = 'input window, operand 1, single buffered']
    #allocation8 [shape = 's32[1]{0}', space=sflag, size = 0x4, scoped, tag = 'scoped memory for tpu_custom_call.1']
    #allocation9 [shape = 'u8[32768]{0}', space=vmem, size = 0x8000, scoped, tag = 'input window, operand 3, single buffered']
    #allocation10 [shape = 'u8[262144]{0}', space=vmem, size = 0x40000, scoped, tag = 'output window, operand 0, single buffered']
    %10 = vsyncpa [#allocation5], 0
    %11 = vsyncpa [#allocation8], 0
    %12 = vsyncpa [#allocation6], 0
    // Predicated region
    $region2: #{tpu_custom_call.1} parent=1 // pred_check
      _
    $region3: #{tpu_custom_call.1} parent=1 // pred_check_branch
      %14 = sbr.rel (0) target = $region5
    $region4: #{tpu_custom_call.1} parent=1 // pred_region
      %s16 = ssub.s32 4096, 4096
      %17 = vsyncadd [#allocation5], %s16
      %s18 = sshll.u32 [#allocation4], 4
      %s19 = int_to_ptr.vmem [resolvable:$true] %s18
      %24 = dma.hbm_to_vmem [thread:$0]  %s0, 4096, %s19, [#allocation5], 64, 64, 4
    $region5: #{tpu_custom_call.1} parent=1 // pred_fallthru
      _
    // Predicated region
    $region6: #{tpu_custom_call.1} parent=1 // pred_check
      _
    $region7: #{tpu_custom_call.1} parent=1 // pred_check_branch
      %26 = sbr.rel (0) target = $region9
    $region8: #{tpu_custom_call.1} parent=1 // pred_region
      %s28 = ssub.s32 192, 192
      %29 = vsyncadd [#allocation8], %s28
      %s30 = sshll.u32 [#allocation7], 4
      %s31 = int_to_ptr.vmem [resolvable:$true] %s30
      %36 = dma.hbm_to_vmem [thread:$0]  %s1, 192, %s31, [#allocation8], 64, 64, 4
    $region9: #{tpu_custom_call.1} parent=1 // pred_fallthru
      _
    // Predicated region
    $region10: #{tpu_custom_call.1} parent=1 // pred_check
      _
    $region11: #{tpu_custom_call.1} parent=1 // pred_check_branch
      %38 = sbr.rel (0) target = $region13
    $region12: #{tpu_custom_call.1} parent=1 // pred_region
      _
    $region13: #{tpu_custom_call.1} parent=1 // pred_fallthru
      _
    // Predicated region
    $region14: #{tpu_custom_call.1} parent=1 // pred_check
      _
    $region15: #{tpu_custom_call.1} parent=1 // pred_check_branch
      %40 = sbr.rel (0) target = $region17
    $region16: #{tpu_custom_call.1} parent=1 // pred_region
      %s41 = sadd.s32 0, 0
      %s43 = ssub.s32 1024, 1024
      %44 = vsyncadd [#allocation8], %s43
      %s45 = smul.addr %s41, 64
      %s46 = scalar_lea.hbm %s3, %s45
      %s47 = sshll.u32 [#allocation9], 4
      %s48 = int_to_ptr.vmem [resolvable:$true] %s47
      %53 = dma.hbm_to_vmem [thread:$0]  %s46, 1024, %s48, [#allocation8], 64, 64, 4
    $region17: #{tpu_custom_call.1} parent=1 // pred_fallthru
      _
    // Predicated region
    $region18: #{tpu_custom_call.1} parent=1 // pred_check
      _
    $region19: #{tpu_custom_call.1} parent=1 // pred_check_branch
      %55 = sbr.rel (0) target = $region21
    $region20: #{tpu_custom_call.1} parent=1 // pred_region
      %s56 = sadd.s32 0, 0
      %p57 = scmp.lt.s32.totalorder %s56, 0
      %s58 = scalar_select %p57, %s56, 0
      %s59 = scalar_lea.vmem %s4, %s58
      %s60 = sadd.s32 0, 0
    $region21: #{tpu_custom_call.1} parent=1 // pred_fallthru
      _
    // Predicated region
    $region22: #{tpu_custom_call.1} parent=1 // pred_check
      _
    $region23: #{tpu_custom_call.1} parent=1 // pred_check_branch
      %62 = sbr.rel (0) target = $region25
    $region24: #{tpu_custom_call.1} parent=1 // pred_region
      %63 = dma.done [#allocation5], 4096
    $region25: #{tpu_custom_call.1} parent=1 // pred_fallthru
      _
    // Predicated region
    $region26: #{tpu_custom_call.1} parent=1 // pred_check
      _
    $region27: #{tpu_custom_call.1} parent=1 // pred_check_branch
      %65 = sbr.rel (0) target = $region29
    $region28: #{tpu_custom_call.1} parent=1 // pred_region
      %66 = dma.done [#allocation8], 192
    $region29: #{tpu_custom_call.1} parent=1 // pred_fallthru
      _
    // Predicated region
    $region30: #{tpu_custom_call.1} parent=1 // pred_check
      _
    $region31: #{tpu_custom_call.1} parent=1 // pred_check_branch
      %68 = sbr.rel (0) target = $region33
    $region32: #{tpu_custom_call.1} parent=1 // pred_region
      %69 = dma.done [#allocation8], 1024
    $region33: #{tpu_custom_call.1} parent=1 // pred_fallthru
      _
    %s70 = sadd.s32 0, 0
    %p71 = scmp.lt.s32.totalorder %s70, 0
    %s72 = scalar_select %p71, %s70, 0
    %s73 = scalar_lea.vmem %s4, %s72
    %s74 = sadd.s32 0, 0
    %s75 = sadd.s32 0, 0
    %p76 = scmp.lt.s32.totalorder %s75, 0
    %s77 = scalar_select %p76, %s75, 0
    %s78 = scalar_lea.vmem %s4, %s77
    %s79 = sadd.s32 0, 0
    %s80 = sadd.s32 0, 0
    %p82 = scmp.eq.s32.totalorder 0, 0
    // Predicated region
    $region34: #{tpu_custom_call.1} parent=1 // pred_check
      %p83 = pneg %p82
    $region35: #{tpu_custom_call.1} parent=1 // pred_check_branch
      %85 = sbr.rel (%p83) target = $region37
    $region36: #{tpu_custom_call.1} parent=1 // pred_region
      %86 = vst [vmem:[#allocation2] sm:$0xf] 0
      %87 = vst [vmem:[#allocation2 + $0x4] sm:$0xf] 0
      %88 = vst [vmem:[#allocation2 + $0x8] sm:$0x1] 0
      %s89 = scalar_lea.vmem [#allocation2], 204
      %90 = vst [vmem:[%s89] sm:$0xf] 0
      %91 = vst [vmem:[%s89 + $0x4] sm:$0xf] 0
      %92 = vst [vmem:[%s89 + $0x8] sm:$0x1] 0
      %vm93 = vcmask 1040384
      %vm94 = vsmask.f32 256
      %vm95 = vmand %vm93, %vm94
      %v96 = vld [vmem:[#allocation2] sm:$0x1]
      %v97 = vsel %vm95, 0, %v96
      %98 = vst [vmem:[#allocation2] sm:$0x1] %v97
      %v99 = vld [vmem:[#allocation2 + $0xc] sm:$0x1]
      %v100 = vsel %vm95, 0, %v99
      %101 = vst [vmem:[#allocation2 + $0xc] sm:$0x1] %v100
      %v102 = vld [vmem:[#allocation2 + $0x18] sm:$0x1]
      %v103 = vsel %vm95, 0, %v102
      %104 = vst [vmem:[#allocation2 + $0x18] sm:$0x1] %v103
      %v105 = vld [vmem:[#allocation2 + $0x24] sm:$0x1]
      %v106 = vsel %vm95, 0, %v105
      %107 = vst [vmem:[#allocation2 + $0x24] sm:$0x1] %v106
      %v108 = vld [vmem:[#allocation2 + $0x30] sm:$0x1]
      %v109 = vsel %vm95, 0, %v108
      %110 = vst [vmem:[#allocation2 + $0x30] sm:$0x1] %v109
      %v111 = vld [vmem:[#allocation2 + $0x3c] sm:$0x1]
      %v112 = vsel %vm95, 0, %v111
      %113 = vst [vmem:[#allocation2 + $0x3c] sm:$0x1] %v112
      %v114 = vld [vmem:[#allocation2 + $0x48] sm:$0x1]
      %v115 = vsel %vm95, 0, %v114
      %116 = vst [vmem:[#allocation2 + $0x48] sm:$0x1] %v115
      %v117 = vld [vmem:[#allocation2 + $0x54] sm:$0x1]
      %v118 = vsel %vm95, 0, %v117
      %119 = vst [vmem:[#allocation2 + $0x54] sm:$0x1] %v118
      %v120 = vld [vmem:[#allocation2 + $0x60] sm:$0x1]
      %v121 = vsel %vm95, 0, %v120
      %122 = vst [vmem:[#allocation2 + $0x60] sm:$0x1] %v121
      %v123 = vld [vmem:[#allocation2 + $0x6c] sm:$0x1]
      %v124 = vsel %vm95, 0, %v123
      %125 = vst [vmem:[#allocation2 + $0x6c] sm:$0x1] %v124
      %v126 = vld [vmem:[#allocation2 + $0x78] sm:$0x1]
      %v127 = vsel %vm95, 0, %v126
      %128 = vst [vmem:[#allocation2 + $0x78] sm:$0x1] %v127
      %v129 = vld [vmem:[#allocation2 + $0x84] sm:$0x1]
      %v130 = vsel %vm95, 0, %v129
      %131 = vst [vmem:[#allocation2 + $0x84] sm:$0x1] %v130
      %v132 = vld [vmem:[#allocation2 + $0x90] sm:$0x1]
      %v133 = vsel %vm95, 0, %v132
      %134 = vst [vmem:[#allocation2 + $0x90] sm:$0x1] %v133
      %v135 = vld [vmem:[#allocation2 + $0x9c] sm:$0x1]
      %v136 = vsel %vm95, 0, %v135
      %137 = vst [vmem:[#allocation2 + $0x9c] sm:$0x1] %v136
      %v138 = vld [vmem:[#allocation2 + $0xa8] sm:$0x1]
      %v139 = vsel %vm95, 0, %v138
      %140 = vst [vmem:[#allocation2 + $0xa8] sm:$0x1] %v139
      %v141 = vld [vmem:[#allocation2 + $0xb4] sm:$0x1]
      %v142 = vsel %vm95, 0, %v141
      %143 = vst [vmem:[#allocation2 + $0xb4] sm:$0x1] %v142
      %v144 = vld [vmem:[#allocation2 + $0xc0] sm:$0x1]
      %v145 = vsel %vm95, 0, %v144
      %146 = vst [vmem:[#allocation2 + $0xc0] sm:$0x1] %v145
      %v147 = vld [vmem:[#allocation2 + $0xcc] sm:$0x1]
      %v148 = vsel %vm95, 0, %v147
      %149 = vst [vmem:[#allocation2 + $0xcc] sm:$0x1] %v148
      %vm150 = vsmask.f32 7938
      %vm151 = vmand %vm93, %vm150
      %v152 = vld [vmem:[#allocation2 + $0x8] sm:$0x1]
      %v153 = vsel %vm151, 0, %v152
      %154 = vst [vmem:[#allocation2 + $0x8] sm:$0x1] %v153
      %v155 = vld [vmem:[#allocation2 + $0x14] sm:$0x1]
      %v156 = vsel %vm151, 0, %v155
      %157 = vst [vmem:[#allocation2 + $0x14] sm:$0x1] %v156
      %v158 = vld [vmem:[#allocation2 + $0x20] sm:$0x1]
      %v159 = vsel %vm151, 0, %v158
      %160 = vst [vmem:[#allocation2 + $0x20] sm:$0x1] %v159
      %v161 = vld [vmem:[#allocation2 + $0x2c] sm:$0x1]
      %v162 = vsel %vm151, 0, %v161
      %163 = vst [vmem:[#allocation2 + $0x2c] sm:$0x1] %v162
      %v164 = vld [vmem:[#allocation2 + $0x38] sm:$0x1]
      %v165 = vsel %vm151, 0, %v164
      %166 = vst [vmem:[#allocation2 + $0x38] sm:$0x1] %v165
      %v167 = vld [vmem:[#allocation2 + $0x44] sm:$0x1]
      %v168 = vsel %vm151, 0, %v167
      %169 = vst [vmem:[#allocation2 + $0x44] sm:$0x1] %v168
      %v170 = vld [vmem:[#allocation2 + $0x50] sm:$0x1]
      %v171 = vsel %vm151, 0, %v170
      %172 = vst [vmem:[#allocation2 + $0x50] sm:$0x1] %v171
      %v173 = vld [vmem:[#allocation2 + $0x5c] sm:$0x1]
      %v174 = vsel %vm151, 0, %v173
      %175 = vst [vmem:[#allocation2 + $0x5c] sm:$0x1] %v174
      %v176 = vld [vmem:[#allocation2 + $0x68] sm:$0x1]
      %v177 = vsel %vm151, 0, %v176
      %178 = vst [vmem:[#allocation2 + $0x68] sm:$0x1] %v177
      %v179 = vld [vmem:[#allocation2 + $0x74] sm:$0x1]
      %v180 = vsel %vm151, 0, %v179
      %181 = vst [vmem:[#allocation2 + $0x74] sm:$0x1] %v180
      %v182 = vld [vmem:[#allocation2 + $0x80] sm:$0x1]
      %v183 = vsel %vm151, 0, %v182
      %184 = vst [vmem:[#allocation2 + $0x80] sm:$0x1] %v183
      %v185 = vld [vmem:[#allocation2 + $0x8c] sm:$0x1]
      %v186 = vsel %vm151, 0, %v185
      %187 = vst [vmem:[#allocation2 + $0x8c] sm:$0x1] %v186
      %v188 = vld [vmem:[#allocation2 + $0x98] sm:$0x1]
      %v189 = vsel %vm151, 0, %v188
      %190 = vst [vmem:[#allocation2 + $0x98] sm:$0x1] %v189
      %v191 = vld [vmem:[#allocation2 + $0xa4] sm:$0x1]
      %v192 = vsel %vm151, 0, %v191
      %193 = vst [vmem:[#allocation2 + $0xa4] sm:$0x1] %v192
      %v194 = vld [vmem:[#allocation2 + $0xb0] sm:$0x1]
      %v195 = vsel %vm151, 0, %v194
      %196 = vst [vmem:[#allocation2 + $0xb0] sm:$0x1] %v195
      %v197 = vld [vmem:[#allocation2 + $0xbc] sm:$0x1]
      %v198 = vsel %vm151, 0, %v197
      %199 = vst [vmem:[#allocation2 + $0xbc] sm:$0x1] %v198
      %v200 = vld [vmem:[#allocation2 + $0xc8] sm:$0x1]
      %v201 = vsel %vm151, 0, %v200
      %202 = vst [vmem:[#allocation2 + $0xc8] sm:$0x1] %v201
      %v203 = vld [vmem:[#allocation2 + $0xd4] sm:$0x1]
      %v204 = vsel %vm151, 0, %v203
      %205 = vst [vmem:[#allocation2 + $0xd4] sm:$0x1] %v204
      %v206 = vld [vmem:[#allocation7] sm:$0x7]
      %v207 = vld [vmem:[#allocation7 + $0x4] sm:$0x7]
      %v208 = vld [vmem:[#allocation7 + $0x8] sm:$0x7]
      %v209 = vld [vmem:[%s2] sm:$0x1]
      %v210 = vld [vmem:[#allocation4] sm:$0xf]
      %v211 = vld [vmem:[#allocation4 + $0x4] sm:$0xf]
      %v212 = vld [vmem:[#allocation4 + $0x8] sm:$0xf]
      %v213 = vld [vmem:[#allocation4 + $0xc] sm:$0xf]
      %v214 = vld [vmem:[#allocation4 + $0x10] sm:$0xf]
      %v215 = vld [vmem:[#allocation4 + $0x14] sm:$0xf]
      %v216 = vld [vmem:[#allocation4 + $0x18] sm:$0xf]
      %v217 = vld [vmem:[#allocation4 + $0x1c] sm:$0xf]
      %v218 = vld [vmem:[#allocation4 + $0x20] sm:$0xf]
      %v219 = vld [vmem:[#allocation4 + $0x24] sm:$0xf]
      %v220 = vld [vmem:[#allocation4 + $0x28] sm:$0xf]
      %v221 = vld [vmem:[#allocation4 + $0x2c] sm:$0xf]
      %v222 = vld [vmem:[#allocation4 + $0x30] sm:$0xf]
      %v223 = vld [vmem:[#allocation4 + $0x34] sm:$0xf]
      %v224 = vld [vmem:[#allocation4 + $0x38] sm:$0xf]
      %v225 = vld [vmem:[#allocation4 + $0x3c] sm:$0xf]
      %v226 = vld [vmem:[#allocation4 + $0x40] sm:$0xf]
      %v227 = vld [vmem:[#allocation4 + $0x44] sm:$0xf]
      %v228 = vld [vmem:[#allocation4 + $0x48] sm:$0xf]
      %v229 = vld [vmem:[#allocation4 + $0x4c] sm:$0xf]
      %v230 = vld [vmem:[#allocation4 + $0x50] sm:$0xf]
      %v231 = vld [vmem:[#allocation4 + $0x54] sm:$0xf]
      %v232 = vld [vmem:[#allocation4 + $0x58] sm:$0xf]
      %v233 = vld [vmem:[#allocation4 + $0x5c] sm:$0xf]
      %v234 = vld [vmem:[#allocation4 + $0x60] sm:$0xf]
      %v235 = vld [vmem:[#allocation4 + $0x64] sm:$0xf]
      %v236 = vld [vmem:[#allocation4 + $0x68] sm:$0xf]
      %v237 = vld [vmem:[#allocation4 + $0x6c] sm:$0xf]
      %v238 = vld [vmem:[#allocation4 + $0x70] sm:$0xf]
      %v239 = vld [vmem:[#allocation4 + $0x74] sm:$0xf]
      %v240 = vld [vmem:[#allocation4 + $0x78] sm:$0xf]
      %v241 = vld [vmem:[#allocation4 + $0x7c] sm:$0xf]
      %vm242 = vsmask.f32 4368
      %vm243 = vmor %vm94, %vm242
      %v245 = vshrl.u32 %v210, 16
      %v247 = vrot.slane %v245, 7
      %v248 = vshll.u32 %v210, 16
      %v250 = vor.u32 %v247, %v248
      %v251 = vrot.slane %v247, 4
      %v253 = vshrl.u32 %v211, 16
      %v255 = vrot.slane %v253, 7
      %v256 = vshll.u32 %v211, 16
      %v258 = vor.u32 %v255, %v256
      %v259 = vsel %vm243, %v251, %v258
      %v260 = vrot.slane %v255, 4
      %v262 = vshrl.u32 %v212, 16
      %v264 = vrot.slane %v262, 7
      %v265 = vshll.u32 %v212, 16
      %v267 = vor.u32 %v264, %v265
      %v268 = vrot.slane %v264, 4
      %v270 = vshrl.u32 %v213, 16
      %v272 = vrot.slane %v270, 7
      %v273 = vshll.u32 %v213, 16
      %v275 = vor.u32 %v272, %v273
      %v276 = vsel %vm243, %v268, %v275
      %v277 = vrot.slane %v272, 4
      %v279 = vshrl.u32 %v214, 16
      %v281 = vrot.slane %v279, 7
      %v282 = vshll.u32 %v214, 16
      %v284 = vor.u32 %v281, %v282
      %v285 = vrot.slane %v281, 4
      %v287 = vshrl.u32 %v215, 16
      %v289 = vrot.slane %v287, 7
      %v290 = vshll.u32 %v215, 16
      %v292 = vor.u32 %v289, %v290
      %v293 = vsel %vm243, %v285, %v292
      %v294 = vrot.slane %v289, 4
      %v296 = vshrl.u32 %v216, 16
      %v298 = vrot.slane %v296, 7
      %v299 = vshll.u32 %v216, 16
      %v301 = vor.u32 %v298, %v299
      %v302 = vrot.slane %v298, 4
      %v304 = vshrl.u32 %v217, 16
      %v306 = vrot.slane %v304, 7
      %v307 = vshll.u32 %v217, 16
      %v309 = vor.u32 %v306, %v307
      %v310 = vsel %vm243, %v302, %v309
      %v311 = vrot.slane %v306, 4
      %v313 = vshrl.u32 %v218, 16
      %v315 = vrot.slane %v313, 7
      %v316 = vshll.u32 %v218, 16
      %v318 = vor.u32 %v315, %v316
      %v319 = vrot.slane %v315, 4
      %v321 = vshrl.u32 %v219, 16
      %v323 = vrot.slane %v321, 7
      %v324 = vshll.u32 %v219, 16
      %v326 = vor.u32 %v323, %v324
      %v327 = vsel %vm243, %v319, %v326
      %v328 = vrot.slane %v323, 4
      %v330 = vshrl.u32 %v220, 16
      %v332 = vrot.slane %v330, 7
      %v333 = vshll.u32 %v220, 16
      %v335 = vor.u32 %v332, %v333
      %v336 = vrot.slane %v332, 4
      %v338 = vshrl.u32 %v221, 16
      %v340 = vrot.slane %v338, 7
      %v341 = vshll.u32 %v221, 16
      %v343 = vor.u32 %v340, %v341
      %v344 = vsel %vm243, %v336, %v343
      %v345 = vrot.slane %v340, 4
      %v347 = vshrl.u32 %v222, 16
      %v349 = vrot.slane %v347, 7
      %v350 = vshll.u32 %v222, 16
      %v352 = vor.u32 %v349, %v350
      %v353 = vrot.slane %v349, 4
      %v355 = vshrl.u32 %v223, 16
      %v357 = vrot.slane %v355, 7
      %v358 = vshll.u32 %v223, 16
      %v360 = vor.u32 %v357, %v358
      %v361 = vsel %vm243, %v353, %v360
      %v362 = vrot.slane %v357, 4
      %v364 = vshrl.u32 %v224, 16
      %v366 = vrot.slane %v364, 7
      %v367 = vshll.u32 %v224, 16
      %v369 = vor.u32 %v366, %v367
      %v370 = vrot.slane %v366, 4
      %v372 = vshrl.u32 %v225, 16
      %v374 = vrot.slane %v372, 7
      %v375 = vshll.u32 %v225, 16
      %v377 = vor.u32 %v374, %v375
      %v378 = vsel %vm243, %v370, %v377
      %v379 = vrot.slane %v374, 4
      %v381 = vshrl.u32 %v226, 16
      %v383 = vrot.slane %v381, 7
      %v384 = vshll.u32 %v226, 16
      %v386 = vor.u32 %v383, %v384
      %v387 = vrot.slane %v383, 4
      %v389 = vshrl.u32 %v227, 16
      %v391 = vrot.slane %v389, 7
      %v392 = vshll.u32 %v227, 16
      %v394 = vor.u32 %v391, %v392
      %v395 = vsel %vm243, %v387, %v394
      %v396 = vrot.slane %v391, 4
      %v398 = vshrl.u32 %v228, 16
      %v400 = vrot.slane %v398, 7
      %v401 = vshll.u32 %v228, 16
      %v403 = vor.u32 %v400, %v401
      %v404 = vrot.slane %v400, 4
      %v406 = vshrl.u32 %v229, 16
      %v408 = vrot.slane %v406, 7
      %v409 = vshll.u32 %v229, 16
      %v411 = vor.u32 %v408, %v409
      %v412 = vsel %vm243, %v404, %v411
      %v413 = vrot.slane %v408, 4
      %v415 = vshrl.u32 %v230, 16
      %v417 = vrot.slane %v415, 7
      %v418 = vshll.u32 %v230, 16
      %v420 = vor.u32 %v417, %v418
      %v421 = vrot.slane %v417, 4
      %v423 = vshrl.u32 %v231, 16
      %v425 = vrot.slane %v423, 7
      %v426 = vshll.u32 %v231, 16
      %v428 = vor.u32 %v425, %v426
      %v429 = vsel %vm243, %v421, %v428
      %v430 = vrot.slane %v425, 4
      %v432 = vshrl.u32 %v232, 16
      %v434 = vrot.slane %v432, 7
      %v435 = vshll.u32 %v232, 16
      %v437 = vor.u32 %v434, %v435
      %v438 = vrot.slane %v434, 4
      %v440 = vshrl.u32 %v233, 16
      %v442 = vrot.slane %v440, 7
      %v443 = vshll.u32 %v233, 16
      %v445 = vor.u32 %v442, %v443
      %v446 = vsel %vm243, %v438, %v445
      %v447 = vrot.slane %v442, 4
      %v449 = vshrl.u32 %v234, 16
      %v451 = vrot.slane %v449, 7
      %v452 = vshll.u32 %v234, 16
      %v454 = vor.u32 %v451, %v452
      %v455 = vrot.slane %v451, 4
      %v457 = vshrl.u32 %v235, 16
      %v459 = vrot.slane %v457, 7
      %v460 = vshll.u32 %v235, 16
      %v462 = vor.u32 %v459, %v460
      %v463 = vsel %vm243, %v455, %v462
      %v464 = vrot.slane %v459, 4
      %v466 = vshrl.u32 %v236, 16
      %v468 = vrot.slane %v466, 7
      %v469 = vshll.u32 %v236, 16
      %v471 = vor.u32 %v468, %v469
      %v472 = vrot.slane %v468, 4
      %v474 = vshrl.u32 %v237, 16
      %v476 = vrot.slane %v474, 7
      %v477 = vshll.u32 %v237, 16
      %v479 = vor.u32 %v476, %v477
      %v480 = vsel %vm243, %v472, %v479
      %v481 = vrot.slane %v476, 4
      %v483 = vshrl.u32 %v238, 16
      %v485 = vrot.slane %v483, 7
      %v486 = vshll.u32 %v238, 16
      %v488 = vor.u32 %v485, %v486
      %v489 = vrot.slane %v485, 4
      %v491 = vshrl.u32 %v239, 16
      %v493 = vrot.slane %v491, 7
      %v494 = vshll.u32 %v239, 16
      %v496 = vor.u32 %v493, %v494
      %v497 = vsel %vm243, %v489, %v496
      %v498 = vrot.slane %v493, 4
      %v500 = vshrl.u32 %v240, 16
      %v502 = vrot.slane %v500, 7
      %v503 = vshll.u32 %v240, 16
      %v505 = vor.u32 %v502, %v503
      %v506 = vrot.slane %v502, 4
      %v508 = vshrl.u32 %v241, 16
      %v510 = vrot.slane %v508, 7
      %v511 = vshll.u32 %v241, 16
      %v513 = vor.u32 %v510, %v511
      %v514 = vsel %vm243, %v506, %v513
      %v515 = vrot.slane %v510, 4
      %s564 = scalar_lea.vmem [#allocation2], 12
      %vm565 = vcmask 1043456
      %vm566 = vmand %vm565, %vm150
      %v567 = vld [vmem:[%s564] sm:$0xf]
      %v568 = vsel %vm566, %v250, %v567
      %569 = vst [vmem:[%s564] sm:$0xf] %v568
      %570 = vst [vmem:[%s564 + $0x4] sm:$0xf] %v259
      %v571 = vld [vmem:[%s564 + $0x8] sm:$0x1]
      %v572 = vsel %vm95, %v260, %v571
      %573 = vst [vmem:[%s564 + $0x8] sm:$0x1] %v572
      %v574 = vld [vmem:[%s564 + $0xc] sm:$0xf]
      %v575 = vsel %vm566, %v267, %v574
      %576 = vst [vmem:[%s564 + $0xc] sm:$0xf] %v575
      %577 = vst [vmem:[%s564 + $0x10] sm:$0xf] %v276
      %v578 = vld [vmem:[%s564 + $0x14] sm:$0x1]
      %v579 = vsel %vm95, %v277, %v578
      %580 = vst [vmem:[%s564 + $0x14] sm:$0x1] %v579
      %v581 = vld [vmem:[%s564 + $0x18] sm:$0xf]
      %v582 = vsel %vm566, %v284, %v581
      %583 = vst [vmem:[%s564 + $0x18] sm:$0xf] %v582
      %584 = vst [vmem:[%s564 + $0x1c] sm:$0xf] %v293
      %v585 = vld [vmem:[%s564 + $0x20] sm:$0x1]
      %v586 = vsel %vm95, %v294, %v585
      %587 = vst [vmem:[%s564 + $0x20] sm:$0x1] %v586
      %v588 = vld [vmem:[%s564 + $0x24] sm:$0xf]
      %v589 = vsel %vm566, %v301, %v588
      %590 = vst [vmem:[%s564 + $0x24] sm:$0xf] %v589
      %591 = vst [vmem:[%s564 + $0x28] sm:$0xf] %v310
      %v592 = vld [vmem:[%s564 + $0x2c] sm:$0x1]
      %v593 = vsel %vm95, %v311, %v592
      %594 = vst [vmem:[%s564 + $0x2c] sm:$0x1] %v593
      %v595 = vld [vmem:[%s564 + $0x30] sm:$0xf]
      %v596 = vsel %vm566, %v318, %v595
      %597 = vst [vmem:[%s564 + $0x30] sm:$0xf] %v596
      %598 = vst [vmem:[%s564 + $0x34] sm:$0xf] %v327
      %v599 = vld [vmem:[%s564 + $0x38] sm:$0x1]
      %v600 = vsel %vm95, %v328, %v599
      %601 = vst [vmem:[%s564 + $0x38] sm:$0x1] %v600
      %v602 = vld [vmem:[%s564 + $0x3c] sm:$0xf]
      %v603 = vsel %vm566, %v335, %v602
      %604 = vst [vmem:[%s564 + $0x3c] sm:$0xf] %v603
      %605 = vst [vmem:[%s564 + $0x40] sm:$0xf] %v344
      %v606 = vld [vmem:[%s564 + $0x44] sm:$0x1]
      %v607 = vsel %vm95, %v345, %v606
      %608 = vst [vmem:[%s564 + $0x44] sm:$0x1] %v607
      %v609 = vld [vmem:[%s564 + $0x48] sm:$0xf]
      %v610 = vsel %vm566, %v352, %v609
      %611 = vst [vmem:[%s564 + $0x48] sm:$0xf] %v610
      %612 = vst [vmem:[%s564 + $0x4c] sm:$0xf] %v361
      %v613 = vld [vmem:[%s564 + $0x50] sm:$0x1]
      %v614 = vsel %vm95, %v362, %v613
      %615 = vst [vmem:[%s564 + $0x50] sm:$0x1] %v614
      %v616 = vld [vmem:[%s564 + $0x54] sm:$0xf]
      %v617 = vsel %vm566, %v369, %v616
      %618 = vst [vmem:[%s564 + $0x54] sm:$0xf] %v617
      %619 = vst [vmem:[%s564 + $0x58] sm:$0xf] %v378
      %v620 = vld [vmem:[%s564 + $0x5c] sm:$0x1]
      %v621 = vsel %vm95, %v379, %v620
      %622 = vst [vmem:[%s564 + $0x5c] sm:$0x1] %v621
      %v623 = vld [vmem:[%s564 + $0x60] sm:$0xf]
      %v624 = vsel %vm566, %v386, %v623
      %625 = vst [vmem:[%s564 + $0x60] sm:$0xf] %v624
      %626 = vst [vmem:[%s564 + $0x64] sm:$0xf] %v395
      %v627 = vld [vmem:[%s564 + $0x68] sm:$0x1]
      %v628 = vsel %vm95, %v396, %v627
      %629 = vst [vmem:[%s564 + $0x68] sm:$0x1] %v628
      %v630 = vld [vmem:[%s564 + $0x6c] sm:$0xf]
      %v631 = vsel %vm566, %v403, %v630
      %632 = vst [vmem:[%s564 + $0x6c] sm:$0xf] %v631
      %633 = vst [vmem:[%s564 + $0x70] sm:$0xf] %v412
      %v634 = vld [vmem:[%s564 + $0x74] sm:$0x1]
      %v635 = vsel %vm95, %v413, %v634
      %636 = vst [vmem:[%s564 + $0x74] sm:$0x1] %v635
      %v637 = vld [vmem:[%s564 + $0x78] sm:$0xf]
      %v638 = vsel %vm566, %v420, %v637
      %639 = vst [vmem:[%s564 + $0x78] sm:$0xf] %v638
      %640 = vst [vmem:[%s564 + $0x7c] sm:$0xf] %v429
      %v641 = vld [vmem:[%s564 + $0x80] sm:$0x1]
      %v642 = vsel %vm95, %v430, %v641
      %643 = vst [vmem:[%s564 + $0x80] sm:$0x1] %v642
      %v644 = vld [vmem:[%s564 + $0x84] sm:$0xf]
      %v645 = vsel %vm566, %v437, %v644
      %646 = vst [vmem:[%s564 + $0x84] sm:$0xf] %v645
      %647 = vst [vmem:[%s564 + $0x88] sm:$0xf] %v446
      %v648 = vld [vmem:[%s564 + $0x8c] sm:$0x1]
      %v649 = vsel %vm95, %v447, %v648
      %650 = vst [vmem:[%s564 + $0x8c] sm:$0x1] %v649
      %v651 = vld [vmem:[%s564 + $0x90] sm:$0xf]
      %v652 = vsel %vm566, %v454, %v651
      %653 = vst [vmem:[%s564 + $0x90] sm:$0xf] %v652
      %654 = vst [vmem:[%s564 + $0x94] sm:$0xf] %v463
      %v655 = vld [vmem:[%s564 + $0x98] sm:$0x1]
      %v656 = vsel %vm95, %v464, %v655
      %657 = vst [vmem:[%s564 + $0x98] sm:$0x1] %v656
      %v658 = vld [vmem:[%s564 + $0x9c] sm:$0xf]
      %v659 = vsel %vm566, %v471, %v658
      %660 = vst [vmem:[%s564 + $0x9c] sm:$0xf] %v659
      %661 = vst [vmem:[%s564 + $0xa0] sm:$0xf] %v480
      %v662 = vld [vmem:[%s564 + $0xa4] sm:$0x1]
      %v663 = vsel %vm95, %v481, %v662
      %664 = vst [vmem:[%s564 + $0xa4] sm:$0x1] %v663
      %v665 = vld [vmem:[%s564 + $0xa8] sm:$0xf]
      %v666 = vsel %vm566, %v488, %v665
      %667 = vst [vmem:[%s564 + $0xa8] sm:$0xf] %v666
      %668 = vst [vmem:[%s564 + $0xac] sm:$0xf] %v497
      %v669 = vld [vmem:[%s564 + $0xb0] sm:$0x1]
      %v670 = vsel %vm95, %v498, %v669
      %671 = vst [vmem:[%s564 + $0xb0] sm:$0x1] %v670
      %v672 = vld [vmem:[%s564 + $0xb4] sm:$0xf]
      %v673 = vsel %vm566, %v505, %v672
      %674 = vst [vmem:[%s564 + $0xb4] sm:$0xf] %v673
      %675 = vst [vmem:[%s564 + $0xb8] sm:$0xf] %v514
      %v676 = vld [vmem:[%s564 + $0xbc] sm:$0x1]
      %v677 = vsel %vm95, %v515, %v676
      %678 = vst [vmem:[%s564 + $0xbc] sm:$0x1] %v677
      %v679 = vld [vmem:[#allocation2] sm:$0xf]
      %v680 = vld [vmem:[#allocation2 + $0x4] sm:$0xf]
      %v681 = vld [vmem:[#allocation2 + $0xc] sm:$0xf]
      %v682 = vld [vmem:[#allocation2 + $0x10] sm:$0xf]
      %v683 = vld [vmem:[#allocation2 + $0x18] sm:$0xf]
      %v684 = vld [vmem:[#allocation2 + $0x1c] sm:$0xf]
      %v685 = vld [vmem:[#allocation2 + $0x24] sm:$0xf]
      %v686 = vld [vmem:[#allocation2 + $0x28] sm:$0xf]
      %v687 = vld [vmem:[#allocation2 + $0x30] sm:$0xf]
      %v688 = vld [vmem:[#allocation2 + $0x34] sm:$0xf]
      %v689 = vld [vmem:[#allocation2 + $0x3c] sm:$0xf]
      %v690 = vld [vmem:[#allocation2 + $0x40] sm:$0xf]
      %v691 = vld [vmem:[#allocation2 + $0x48] sm:$0xf]
      %v692 = vld [vmem:[#allocation2 + $0x4c] sm:$0xf]
      %v693 = vld [vmem:[#allocation2 + $0x54] sm:$0xf]
      %v694 = vld [vmem:[#allocation2 + $0x58] sm:$0xf]
      %v695 = vld [vmem:[#allocation2 + $0x60] sm:$0xf]
      %v696 = vld [vmem:[#allocation2 + $0x64] sm:$0xf]
      %v697 = vld [vmem:[#allocation2 + $0x6c] sm:$0xf]
      %v698 = vld [vmem:[#allocation2 + $0x70] sm:$0xf]
      %v699 = vld [vmem:[#allocation2 + $0x78] sm:$0xf]
      %v700 = vld [vmem:[#allocation2 + $0x7c] sm:$0xf]
      %v701 = vld [vmem:[#allocation2 + $0x84] sm:$0xf]
      %v702 = vld [vmem:[#allocation2 + $0x88] sm:$0xf]
      %v703 = vld [vmem:[#allocation2 + $0x90] sm:$0xf]
      %v704 = vld [vmem:[#allocation2 + $0x94] sm:$0xf]
      %v705 = vld [vmem:[#allocation2 + $0x9c] sm:$0xf]
      %v706 = vld [vmem:[#allocation2 + $0xa0] sm:$0xf]
      %v707 = vld [vmem:[#allocation2 + $0xa8] sm:$0xf]
      %v708 = vld [vmem:[#allocation2 + $0xac] sm:$0xf]
      %v709 = vld [vmem:[#allocation2 + $0xb4] sm:$0xf]
      %v710 = vld [vmem:[#allocation2 + $0xb8] sm:$0xf]
      %v711 = vunpack.c.l.bf16 %v679
      %v712 = vunpack.c.l.bf16 %v680
      %v713 = vunpack.c.l.bf16 %v681
      %v714 = vunpack.c.l.bf16 %v682
      %v715 = vunpack.c.l.bf16 %v683
      %v716 = vunpack.c.l.bf16 %v684
      %v717 = vunpack.c.l.bf16 %v685
      %v718 = vunpack.c.l.bf16 %v686
      %v719 = vunpack.c.l.bf16 %v687
      %v720 = vunpack.c.l.bf16 %v688
      %v721 = vunpack.c.l.bf16 %v689
      %v722 = vunpack.c.l.bf16 %v690
      %v723 = vunpack.c.l.bf16 %v691
      %v724 = vunpack.c.l.bf16 %v692
      %v725 = vunpack.c.l.bf16 %v693
      %v726 = vunpack.c.l.bf16 %v694
      %v727 = vunpack.c.l.bf16 %v695
      %v728 = vunpack.c.l.bf16 %v696
      %v729 = vunpack.c.l.bf16 %v697
      %v730 = vunpack.c.l.bf16 %v698
      %v731 = vunpack.c.l.bf16 %v699
      %v732 = vunpack.c.l.bf16 %v700
      %v733 = vunpack.c.l.bf16 %v701
      %v734 = vunpack.c.l.bf16 %v702
      %v735 = vunpack.c.l.bf16 %v703
      %v736 = vunpack.c.l.bf16 %v704
      %v737 = vunpack.c.l.bf16 %v705
      %v738 = vunpack.c.l.bf16 %v706
      %v739 = vunpack.c.l.bf16 %v707
      %v740 = vunpack.c.l.bf16 %v708
      %v741 = vunpack.c.l.bf16 %v709
      %v742 = vunpack.c.l.bf16 %v710
      %v743 = vlaneseq
      %v744 = vshrl.u32 %v743, 7
      %v745 = vsub.s32 0, %v744
      %v746 = vrot.slane %v206, %v745
      %v747 = vmul.f32 %v711, %v746
      %v748 = vmul.f32 %v712, %v746
      %v749 = vmul.f32 %v713, %v746
      %v750 = vmul.f32 %v714, %v746
      %v751 = vmul.f32 %v715, %v746
      %v752 = vmul.f32 %v716, %v746
      %v753 = vmul.f32 %v717, %v746
      %v754 = vmul.f32 %v718, %v746
      %v755 = vmul.f32 %v719, %v746
      %v756 = vmul.f32 %v720, %v746
      %v757 = vmul.f32 %v721, %v746
      %v758 = vmul.f32 %v722, %v746
      %v759 = vmul.f32 %v723, %v746
      %v760 = vmul.f32 %v724, %v746
      %v761 = vmul.f32 %v725, %v746
      %v762 = vmul.f32 %v726, %v746
      %v763 = vmul.f32 %v727, %v746
      %v764 = vmul.f32 %v728, %v746
      %v765 = vmul.f32 %v729, %v746
      %v766 = vmul.f32 %v730, %v746
      %v767 = vmul.f32 %v731, %v746
      %v768 = vmul.f32 %v732, %v746
      %v769 = vmul.f32 %v733, %v746
      %v770 = vmul.f32 %v734, %v746
      %v771 = vmul.f32 %v735, %v746
      %v772 = vmul.f32 %v736, %v746
      %v773 = vmul.f32 %v737, %v746
      %v774 = vmul.f32 %v738, %v746
      %v775 = vmul.f32 %v739, %v746
      %v776 = vmul.f32 %v740, %v746
      %v777 = vmul.f32 %v741, %v746
      %v778 = vmul.f32 %v742, %v746
      %v779 = vld [vmem:[#allocation2 + $0x8] sm:$0x1]
      %v780 = vld [vmem:[#allocation2 + $0x14] sm:$0x1]
      %v781 = vld [vmem:[#allocation2 + $0x20] sm:$0x1]
      %v782 = vld [vmem:[#allocation2 + $0x2c] sm:$0x1]
      %v783 = vld [vmem:[#allocation2 + $0x38] sm:$0x1]
      %v784 = vld [vmem:[#allocation2 + $0x44] sm:$0x1]
      %v785 = vld [vmem:[#allocation2 + $0x50] sm:$0x1]
      %v786 = vld [vmem:[#allocation2 + $0x5c] sm:$0x1]
      %v787 = vld [vmem:[#allocation2 + $0x68] sm:$0x1]
      %v788 = vld [vmem:[#allocation2 + $0x74] sm:$0x1]
      %v789 = vld [vmem:[#allocation2 + $0x80] sm:$0x1]
      %v790 = vld [vmem:[#allocation2 + $0x8c] sm:$0x1]
      %v791 = vld [vmem:[#allocation2 + $0x98] sm:$0x1]
      %v792 = vld [vmem:[#allocation2 + $0xa4] sm:$0x1]
      %v793 = vld [vmem:[#allocation2 + $0xb0] sm:$0x1]
      %v794 = vld [vmem:[#allocation2 + $0xbc] sm:$0x1]
      %v795 = vunpack.c.l.bf16 %v779
      %v796 = vunpack.c.l.bf16 %v780
      %v797 = vunpack.c.l.bf16 %v781
      %v798 = vunpack.c.l.bf16 %v782
      %v799 = vunpack.c.l.bf16 %v783
      %v800 = vunpack.c.l.bf16 %v784
      %v801 = vunpack.c.l.bf16 %v785
      %v802 = vunpack.c.l.bf16 %v786
      %v803 = vunpack.c.l.bf16 %v787
      %v804 = vunpack.c.l.bf16 %v788
      %v805 = vunpack.c.l.bf16 %v789
      %v806 = vunpack.c.l.bf16 %v790
      %v807 = vunpack.c.l.bf16 %v791
      %v808 = vunpack.c.l.bf16 %v792
      %v809 = vunpack.c.l.bf16 %v793
      %v810 = vunpack.c.l.bf16 %v794
      %v811 = vlaneseq
      %v812 = vshrl.u32 %v811, 7
      %v813 = vsub.s32 1, %v812
      %v814 = vrot.slane %v206, %v813
      %v815 = vmul.f32 %v711, %v814
      %v816 = vmul.f32 %v712, %v814
      %v817 = vmul.f32 %v795, %v814
      %v818 = vmul.f32 %v713, %v814
      %v819 = vmul.f32 %v714, %v814
      %v820 = vmul.f32 %v796, %v814
      %v821 = vmul.f32 %v715, %v814
      %v822 = vmul.f32 %v716, %v814
      %v823 = vmul.f32 %v797, %v814
      %v824 = vmul.f32 %v717, %v814
      %v825 = vmul.f32 %v718, %v814
      %v826 = vmul.f32 %v798, %v814
      %v827 = vmul.f32 %v719, %v814
      %v828 = vmul.f32 %v720, %v814
      %v829 = vmul.f32 %v799, %v814
      %v830 = vmul.f32 %v721, %v814
      %v831 = vmul.f32 %v722, %v814
      %v832 = vmul.f32 %v800, %v814
      %v833 = vmul.f32 %v723, %v814
      %v834 = vmul.f32 %v724, %v814
      %v835 = vmul.f32 %v801, %v814
      %v836 = vmul.f32 %v725, %v814
      %v837 = vmul.f32 %v726, %v814
      %v838 = vmul.f32 %v802, %v814
      %v839 = vmul.f32 %v727, %v814
      %v840 = vmul.f32 %v728, %v814
      %v841 = vmul.f32 %v803, %v814
      %v842 = vmul.f32 %v729, %v814
      %v843 = vmul.f32 %v730, %v814
      %v844 = vmul.f32 %v804, %v814
      %v845 = vmul.f32 %v731, %v814
      %v846 = vmul.f32 %v732, %v814
      %v847 = vmul.f32 %v805, %v814
      %v848 = vmul.f32 %v733, %v814
      %v849 = vmul.f32 %v734, %v814
      %v850 = vmul.f32 %v806, %v814
      %v851 = vmul.f32 %v735, %v814
      %v852 = vmul.f32 %v736, %v814
      %v853 = vmul.f32 %v807, %v814
      %v854 = vmul.f32 %v737, %v814
      %v855 = vmul.f32 %v738, %v814
      %v856 = vmul.f32 %v808, %v814
      %v857 = vmul.f32 %v739, %v814
      %v858 = vmul.f32 %v740, %v814
      %v859 = vmul.f32 %v809, %v814
      %v860 = vmul.f32 %v741, %v814
      %v861 = vmul.f32 %v742, %v814
      %v862 = vmul.f32 %v810, %v814
      %vm911 = vcmask 1046528
      %v912 = vrot.slane %v815, 1
      %v913 = vrot.slane %v816, 1
      %v914 = vsel %vm911, %v912, %v913
      %v915 = vrot.slane %v817, 1
      %v916 = vsel %vm911, %v913, %v915
      %v917 = vrot.slane %v818, 1
      %v918 = vrot.slane %v819, 1
      %v919 = vsel %vm911, %v917, %v918
      %v920 = vrot.slane %v820, 1
      %v921 = vsel %vm911, %v918, %v920
      %v922 = vrot.slane %v821, 1
      %v923 = vrot.slane %v822, 1
      %v924 = vsel %vm911, %v922, %v923
      %v925 = vrot.slane %v823, 1
      %v926 = vsel %vm911, %v923, %v925
      %v927 = vrot.slane %v824, 1
      %v928 = vrot.slane %v825, 1
      %v929 = vsel %vm911, %v927, %v928
      %v930 = vrot.slane %v826, 1
      %v931 = vsel %vm911, %v928, %v930
      %v932 = vrot.slane %v827, 1
      %v933 = vrot.slane %v828, 1
      %v934 = vsel %vm911, %v932, %v933
      %v935 = vrot.slane %v829, 1
      %v936 = vsel %vm911, %v933, %v935
      %v937 = vrot.slane %v830, 1
      %v938 = vrot.slane %v831, 1
      %v939 = vsel %vm911, %v937, %v938
      %v940 = vrot.slane %v832, 1
      %v941 = vsel %vm911, %v938, %v940
      %v942 = vrot.slane %v833, 1
      %v943 = vrot.slane %v834, 1
      %v944 = vsel %vm911, %v942, %v943
      %v945 = vrot.slane %v835, 1
      %v946 = vsel %vm911, %v943, %v945
      %v947 = vrot.slane %v836, 1
      %v948 = vrot.slane %v837, 1
      %v949 = vsel %vm911, %v947, %v948
      %v950 = vrot.slane %v838, 1
      %v951 = vsel %vm911, %v948, %v950
      %v952 = vrot.slane %v839, 1
      %v953 = vrot.slane %v840, 1
      %v954 = vsel %vm911, %v952, %v953
      %v955 = vrot.slane %v841, 1
      %v956 = vsel %vm911, %v953, %v955
      %v957 = vrot.slane %v842, 1
      %v958 = vrot.slane %v843, 1
      %v959 = vsel %vm911, %v957, %v958
      %v960 = vrot.slane %v844, 1
      %v961 = vsel %vm911, %v958, %v960
      %v962 = vrot.slane %v845, 1
      %v963 = vrot.slane %v846, 1
      %v964 = vsel %vm911, %v962, %v963
      %v965 = vrot.slane %v847, 1
      %v966 = vsel %vm911, %v963, %v965
      %v967 = vrot.slane %v848, 1
      %v968 = vrot.slane %v849, 1
      %v969 = vsel %vm911, %v967, %v968
      %v970 = vrot.slane %v850, 1
      %v971 = vsel %vm911, %v968, %v970
      %v972 = vrot.slane %v851, 1
      %v973 = vrot.slane %v852, 1
      %v974 = vsel %vm911, %v972, %v973
      %v975 = vrot.slane %v853, 1
      %v976 = vsel %vm911, %v973, %v975
      %v977 = vrot.slane %v854, 1
      %v978 = vrot.slane %v855, 1
      %v979 = vsel %vm911, %v977, %v978
      %v980 = vrot.slane %v856, 1
      %v981 = vsel %vm911, %v978, %v980
      %v982 = vrot.slane %v857, 1
      %v983 = vrot.slane %v858, 1
      %v984 = vsel %vm911, %v982, %v983
      %v985 = vrot.slane %v859, 1
      %v986 = vsel %vm911, %v983, %v985
      %v987 = vrot.slane %v860, 1
      %v988 = vrot.slane %v861, 1
      %v989 = vsel %vm911, %v987, %v988
      %v990 = vrot.slane %v862, 1
      %v991 = vsel %vm911, %v988, %v990
      %v1024 = vadd.f32 %v747, %v914
      %v1025 = vadd.f32 %v748, %v916
      %v1026 = vadd.f32 %v749, %v919
      %v1027 = vadd.f32 %v750, %v921
      %v1028 = vadd.f32 %v751, %v924
      %v1029 = vadd.f32 %v752, %v926
      %v1030 = vadd.f32 %v753, %v929
      %v1031 = vadd.f32 %v754, %v931
      %v1032 = vadd.f32 %v755, %v934
      %v1033 = vadd.f32 %v756, %v936
      %v1034 = vadd.f32 %v757, %v939
      %v1035 = vadd.f32 %v758, %v941
      %v1036 = vadd.f32 %v759, %v944
      %v1037 = vadd.f32 %v760, %v946
      %v1038 = vadd.f32 %v761, %v949
      %v1039 = vadd.f32 %v762, %v951
      %v1040 = vadd.f32 %v763, %v954
      %v1041 = vadd.f32 %v764, %v956
      %v1042 = vadd.f32 %v765, %v959
      %v1043 = vadd.f32 %v766, %v961
      %v1044 = vadd.f32 %v767, %v964
      %v1045 = vadd.f32 %v768, %v966
      %v1046 = vadd.f32 %v769, %v969
      %v1047 = vadd.f32 %v770, %v971
      %v1048 = vadd.f32 %v771, %v974
      %v1049 = vadd.f32 %v772, %v976
      %v1050 = vadd.f32 %v773, %v979
      %v1051 = vadd.f32 %v774, %v981
      %v1052 = vadd.f32 %v775, %v984
      %v1053 = vadd.f32 %v776, %v986
      %v1054 = vadd.f32 %v777, %v989
      %v1055 = vadd.f32 %v778, %v991
      %v1056 = vld [vmem:[#allocation2] sm:$0xe]
      %v1057 = vld [vmem:[#allocation2 + $0xc] sm:$0xe]
      %v1058 = vld [vmem:[#allocation2 + $0x18] sm:$0xe]
      %v1059 = vld [vmem:[#allocation2 + $0x24] sm:$0xe]
      %v1060 = vld [vmem:[#allocation2 + $0x30] sm:$0xe]
      %v1061 = vld [vmem:[#allocation2 + $0x3c] sm:$0xe]
      %v1062 = vld [vmem:[#allocation2 + $0x48] sm:$0xe]
      %v1063 = vld [vmem:[#allocation2 + $0x54] sm:$0xe]
      %v1064 = vld [vmem:[#allocation2 + $0x60] sm:$0xe]
      %v1065 = vld [vmem:[#allocation2 + $0x6c] sm:$0xe]
      %v1066 = vld [vmem:[#allocation2 + $0x78] sm:$0xe]
      %v1067 = vld [vmem:[#allocation2 + $0x84] sm:$0xe]
      %v1068 = vld [vmem:[#allocation2 + $0x90] sm:$0xe]
      %v1069 = vld [vmem:[#allocation2 + $0x9c] sm:$0xe]
      %v1070 = vld [vmem:[#allocation2 + $0xa8] sm:$0xe]
      %v1071 = vld [vmem:[#allocation2 + $0xb4] sm:$0xe]
      %v1072 = vunpack.c.l.bf16 %v1056
      %v1073 = vunpack.c.l.bf16 %v1057
      %v1074 = vunpack.c.l.bf16 %v1058
      %v1075 = vunpack.c.l.bf16 %v1059
      %v1076 = vunpack.c.l.bf16 %v1060
      %v1077 = vunpack.c.l.bf16 %v1061
      %v1078 = vunpack.c.l.bf16 %v1062
      %v1079 = vunpack.c.l.bf16 %v1063
      %v1080 = vunpack.c.l.bf16 %v1064
      %v1081 = vunpack.c.l.bf16 %v1065
      %v1082 = vunpack.c.l.bf16 %v1066
      %v1083 = vunpack.c.l.bf16 %v1067
      %v1084 = vunpack.c.l.bf16 %v1068
      %v1085 = vunpack.c.l.bf16 %v1069
      %v1086 = vunpack.c.l.bf16 %v1070
      %v1087 = vunpack.c.l.bf16 %v1071
      %v1088 = vlaneseq
      %v1089 = vshrl.u32 %v1088, 7
      %v1090 = vsub.s32 2, %v1089
      %v1091 = vrot.slane %v206, %v1090
      %v1092 = vmul.f32 %v1072, %v1091
      %v1093 = vmul.f32 %v712, %v1091
      %v1094 = vmul.f32 %v795, %v1091
      %v1095 = vmul.f32 %v1073, %v1091
      %v1096 = vmul.f32 %v714, %v1091
      %v1097 = vmul.f32 %v796, %v1091
      %v1098 = vmul.f32 %v1074, %v1091
      %v1099 = vmul.f32 %v716, %v1091
      %v1100 = vmul.f32 %v797, %v1091
      %v1101 = vmul.f32 %v1075, %v1091
      %v1102 = vmul.f32 %v718, %v1091
      %v1103 = vmul.f32 %v798, %v1091
      %v1104 = vmul.f32 %v1076, %v1091
      %v1105 = vmul.f32 %v720, %v1091
      %v1106 = vmul.f32 %v799, %v1091
      %v1107 = vmul.f32 %v1077, %v1091
      %v1108 = vmul.f32 %v722, %v1091
      %v1109 = vmul.f32 %v800, %v1091
      %v1110 = vmul.f32 %v1078, %v1091
      %v1111 = vmul.f32 %v724, %v1091
      %v1112 = vmul.f32 %v801, %v1091
      %v1113 = vmul.f32 %v1079, %v1091
      %v1114 = vmul.f32 %v726, %v1091
      %v1115 = vmul.f32 %v802, %v1091
      %v1116 = vmul.f32 %v1080, %v1091
      %v1117 = vmul.f32 %v728, %v1091
      %v1118 = vmul.f32 %v803, %v1091
      %v1119 = vmul.f32 %v1081, %v1091
      %v1120 = vmul.f32 %v730, %v1091
      %v1121 = vmul.f32 %v804, %v1091
      %v1122 = vmul.f32 %v1082, %v1091
      %v1123 = vmul.f32 %v732, %v1091
      %v1124 = vmul.f32 %v805, %v1091
      %v1125 = vmul.f32 %v1083, %v1091
      %v1126 = vmul.f32 %v734, %v1091
      %v1127 = vmul.f32 %v806, %v1091
      %v1128 = vmul.f32 %v1084, %v1091
      %v1129 = vmul.f32 %v736, %v1091
      %v1130 = vmul.f32 %v807, %v1091
      %v1131 = vmul.f32 %v1085, %v1091
      %v1132 = vmul.f32 %v738, %v1091
      %v1133 = vmul.f32 %v808, %v1091
      %v1134 = vmul.f32 %v1086, %v1091
      %v1135 = vmul.f32 %v740, %v1091
      %v1136 = vmul.f32 %v809, %v1091
      %v1137 = vmul.f32 %v1087, %v1091
      %v1138 = vmul.f32 %v742, %v1091
      %v1139 = vmul.f32 %v810, %v1091
      %vm1188 = vcmask 1045504
      %v1189 = vrot.slane %v1092, 2
      %v1190 = vrot.slane %v1093, 2
      %v1191 = vsel %vm1188, %v1189, %v1190
      %v1192 = vrot.slane %v1094, 2
      %v1193 = vsel %vm1188, %v1190, %v1192
      %v1194 = vrot.slane %v1095, 2
      %v1195 = vrot.slane %v1096, 2
      %v1196 = vsel %vm1188, %v1194, %v1195
      %v1197 = vrot.slane %v1097, 2
      %v1198 = vsel %vm1188, %v1195, %v1197
      %v1199 = vrot.slane %v1098, 2
      %v1200 = vrot.slane %v1099, 2
      %v1201 = vsel %vm1188, %v1199, %v1200
      %v1202 = vrot.slane %v1100, 2
      %v1203 = vsel %vm1188, %v1200, %v1202
      %v1204 = vrot.slane %v1101, 2
      %v1205 = vrot.slane %v1102, 2
      %v1206 = vsel %vm1188, %v1204, %v1205
      %v1207 = vrot.slane %v1103, 2
      %v1208 = vsel %vm1188, %v1205, %v1207
      %v1209 = vrot.slane %v1104, 2
      %v1210 = vrot.slane %v1105, 2
      %v1211 = vsel %vm1188, %v1209, %v1210
      %v1212 = vrot.slane %v1106, 2
      %v1213 = vsel %vm1188, %v1210, %v1212
      %v1214 = vrot.slane %v1107, 2
      %v1215 = vrot.slane %v1108, 2
      %v1216 = vsel %vm1188, %v1214, %v1215
      %v1217 = vrot.slane %v1109, 2
      %v1218 = vsel %vm1188, %v1215, %v1217
      %v1219 = vrot.slane %v1110, 2
      %v1220 = vrot.slane %v1111, 2
      %v1221 = vsel %vm1188, %v1219, %v1220
      %v1222 = vrot.slane %v1112, 2
      %v1223 = vsel %vm1188, %v1220, %v1222
      %v1224 = vrot.slane %v1113, 2
      %v1225 = vrot.slane %v1114, 2
      %v1226 = vsel %vm1188, %v1224, %v1225
      %v1227 = vrot.slane %v1115, 2
      %v1228 = vsel %vm1188, %v1225, %v1227
      %v1229 = vrot.slane %v1116, 2
      %v1230 = vrot.slane %v1117, 2
      %v1231 = vsel %vm1188, %v1229, %v1230
      %v1232 = vrot.slane %v1118, 2
      %v1233 = vsel %vm1188, %v1230, %v1232
      %v1234 = vrot.slane %v1119, 2
      %v1235 = vrot.slane %v1120, 2
      %v1236 = vsel %vm1188, %v1234, %v1235
      %v1237 = vrot.slane %v1121, 2
      %v1238 = vsel %vm1188, %v1235, %v1237
      %v1239 = vrot.slane %v1122, 2
      %v1240 = vrot.slane %v1123, 2
      %v1241 = vsel %vm1188, %v1239, %v1240
      %v1242 = vrot.slane %v1124, 2
      %v1243 = vsel %vm1188, %v1240, %v1242
      %v1244 = vrot.slane %v1125, 2
      %v1245 = vrot.slane %v1126, 2
      %v1246 = vsel %vm1188, %v1244, %v1245
      %v1247 = vrot.slane %v1127, 2
      %v1248 = vsel %vm1188, %v1245, %v1247
      %v1249 = vrot.slane %v1128, 2
      %v1250 = vrot.slane %v1129, 2
      %v1251 = vsel %vm1188, %v1249, %v1250
      %v1252 = vrot.slane %v1130, 2
      %v1253 = vsel %vm1188, %v1250, %v1252
      %v1254 = vrot.slane %v1131, 2
      %v1255 = vrot.slane %v1132, 2
      %v1256 = vsel %vm1188, %v1254, %v1255
      %v1257 = vrot.slane %v1133, 2
      %v1258 = vsel %vm1188, %v1255, %v1257
      %v1259 = vrot.slane %v1134, 2
      %v1260 = vrot.slane %v1135, 2
      %v1261 = vsel %vm1188, %v1259, %v1260
      %v1262 = vrot.slane %v1136, 2
      %v1263 = vsel %vm1188, %v1260, %v1262
      %v1264 = vrot.slane %v1137, 2
      %v1265 = vrot.slane %v1138, 2
      %v1266 = vsel %vm1188, %v1264, %v1265
      %v1267 = vrot.slane %v1139, 2
      %v1268 = vsel %vm1188, %v1265, %v1267
      %v1301 = vadd.f32 %v1024, %v1191
      %v1302 = vadd.f32 %v1025, %v1193
      %v1303 = vadd.f32 %v1026, %v1196
      %v1304 = vadd.f32 %v1027, %v1198
      %v1305 = vadd.f32 %v1028, %v1201
      %v1306 = vadd.f32 %v1029, %v1203
      %v1307 = vadd.f32 %v1030, %v1206
      %v1308 = vadd.f32 %v1031, %v1208
      %v1309 = vadd.f32 %v1032, %v1211
      %v1310 = vadd.f32 %v1033, %v1213
      %v1311 = vadd.f32 %v1034, %v1216
      %v1312 = vadd.f32 %v1035, %v1218
      %v1313 = vadd.f32 %v1036, %v1221
      %v1314 = vadd.f32 %v1037, %v1223
      %v1315 = vadd.f32 %v1038, %v1226
      %v1316 = vadd.f32 %v1039, %v1228
      %v1317 = vadd.f32 %v1040, %v1231
      %v1318 = vadd.f32 %v1041, %v1233
      %v1319 = vadd.f32 %v1042, %v1236
      %v1320 = vadd.f32 %v1043, %v1238
      %v1321 = vadd.f32 %v1044, %v1241
      %v1322 = vadd.f32 %v1045, %v1243
      %v1323 = vadd.f32 %v1046, %v1246
      %v1324 = vadd.f32 %v1047, %v1248
      %v1325 = vadd.f32 %v1048, %v1251
      %v1326 = vadd.f32 %v1049, %v1253
      %v1327 = vadd.f32 %v1050, %v1256
      %v1328 = vadd.f32 %v1051, %v1258
      %v1329 = vadd.f32 %v1052, %v1261
      %v1330 = vadd.f32 %v1053, %v1263
      %v1331 = vadd.f32 %v1054, %v1266
      %v1332 = vadd.f32 %v1055, %v1268
      %v1333 = vld [vmem:[%s564] sm:$0xf]
      %v1334 = vld [vmem:[%s564 + $0x4] sm:$0xf]
      %v1335 = vld [vmem:[%s564 + $0xc] sm:$0xf]
      %v1336 = vld [vmem:[%s564 + $0x10] sm:$0xf]
      %v1337 = vld [vmem:[%s564 + $0x18] sm:$0xf]
      %v1338 = vld [vmem:[%s564 + $0x1c] sm:$0xf]
      %v1339 = vld [vmem:[%s564 + $0x24] sm:$0xf]
      %v1340 = vld [vmem:[%s564 + $0x28] sm:$0xf]
      %v1341 = vld [vmem:[%s564 + $0x30] sm:$0xf]
      %v1342 = vld [vmem:[%s564 + $0x34] sm:$0xf]
      %v1343 = vld [vmem:[%s564 + $0x3c] sm:$0xf]
      %v1344 = vld [vmem:[%s564 + $0x40] sm:$0xf]
      %v1345 = vld [vmem:[%s564 + $0x48] sm:$0xf]
      %v1346 = vld [vmem:[%s564 + $0x4c] sm:$0xf]
      %v1347 = vld [vmem:[%s564 + $0x54] sm:$0xf]
      %v1348 = vld [vmem:[%s564 + $0x58] sm:$0xf]
      %v1349 = vld [vmem:[%s564 + $0x60] sm:$0xf]
      %v1350 = vld [vmem:[%s564 + $0x64] sm:$0xf]
      %v1351 = vld [vmem:[%s564 + $0x6c] sm:$0xf]
      %v1352 = vld [vmem:[%s564 + $0x70] sm:$0xf]
      %v1353 = vld [vmem:[%s564 + $0x78] sm:$0xf]
      %v1354 = vld [vmem:[%s564 + $0x7c] sm:$0xf]
      %v1355 = vld [vmem:[%s564 + $0x84] sm:$0xf]
      %v1356 = vld [vmem:[%s564 + $0x88] sm:$0xf]
      %v1357 = vld [vmem:[%s564 + $0x90] sm:$0xf]
      %v1358 = vld [vmem:[%s564 + $0x94] sm:$0xf]
      %v1359 = vld [vmem:[%s564 + $0x9c] sm:$0xf]
      %v1360 = vld [vmem:[%s564 + $0xa0] sm:$0xf]
      %v1361 = vld [vmem:[%s564 + $0xa8] sm:$0xf]
      %v1362 = vld [vmem:[%s564 + $0xac] sm:$0xf]
      %v1363 = vld [vmem:[%s564 + $0xb4] sm:$0xf]
      %v1364 = vld [vmem:[%s564 + $0xb8] sm:$0xf]
      %v1365 = vunpack.c.l.bf16 %v1333
      %v1366 = vunpack.c.l.bf16 %v1334
      %v1367 = vunpack.c.l.bf16 %v1335
      %v1368 = vunpack.c.l.bf16 %v1336
      %v1369 = vunpack.c.l.bf16 %v1337
      %v1370 = vunpack.c.l.bf16 %v1338
      %v1371 = vunpack.c.l.bf16 %v1339
      %v1372 = vunpack.c.l.bf16 %v1340
      %v1373 = vunpack.c.l.bf16 %v1341
      %v1374 = vunpack.c.l.bf16 %v1342
      %v1375 = vunpack.c.l.bf16 %v1343
      %v1376 = vunpack.c.l.bf16 %v1344
      %v1377 = vunpack.c.l.bf16 %v1345
      %v1378 = vunpack.c.l.bf16 %v1346
      %v1379 = vunpack.c.l.bf16 %v1347
      %v1380 = vunpack.c.l.bf16 %v1348
      %v1381 = vunpack.c.l.bf16 %v1349
      %v1382 = vunpack.c.l.bf16 %v1350
      %v1383 = vunpack.c.l.bf16 %v1351
      %v1384 = vunpack.c.l.bf16 %v1352
      %v1385 = vunpack.c.l.bf16 %v1353
      %v1386 = vunpack.c.l.bf16 %v1354
      %v1387 = vunpack.c.l.bf16 %v1355
      %v1388 = vunpack.c.l.bf16 %v1356
      %v1389 = vunpack.c.l.bf16 %v1357
      %v1390 = vunpack.c.l.bf16 %v1358
      %v1391 = vunpack.c.l.bf16 %v1359
      %v1392 = vunpack.c.l.bf16 %v1360
      %v1393 = vunpack.c.l.bf16 %v1361
      %v1394 = vunpack.c.l.bf16 %v1362
      %v1395 = vunpack.c.l.bf16 %v1363
      %v1396 = vunpack.c.l.bf16 %v1364
      %v1397 = vlaneseq
      %v1398 = vshrl.u32 %v1397, 7
      %v1399 = vsub.s32 0, %v1398
      %v1400 = vrot.slane %v207, %v1399
      %v1401 = vmul.f32 %v1365, %v1400
      %v1402 = vmul.f32 %v1366, %v1400
      %v1403 = vmul.f32 %v1367, %v1400
      %v1404 = vmul.f32 %v1368, %v1400
      %v1405 = vmul.f32 %v1369, %v1400
      %v1406 = vmul.f32 %v1370, %v1400
      %v1407 = vmul.f32 %v1371, %v1400
      %v1408 = vmul.f32 %v1372, %v1400
      %v1409 = vmul.f32 %v1373, %v1400
      %v1410 = vmul.f32 %v1374, %v1400
      %v1411 = vmul.f32 %v1375, %v1400
      %v1412 = vmul.f32 %v1376, %v1400
      %v1413 = vmul.f32 %v1377, %v1400
      %v1414 = vmul.f32 %v1378, %v1400
      %v1415 = vmul.f32 %v1379, %v1400
      %v1416 = vmul.f32 %v1380, %v1400
      %v1417 = vmul.f32 %v1381, %v1400
      %v1418 = vmul.f32 %v1382, %v1400
      %v1419 = vmul.f32 %v1383, %v1400
      %v1420 = vmul.f32 %v1384, %v1400
      %v1421 = vmul.f32 %v1385, %v1400
      %v1422 = vmul.f32 %v1386, %v1400
      %v1423 = vmul.f32 %v1387, %v1400
      %v1424 = vmul.f32 %v1388, %v1400
      %v1425 = vmul.f32 %v1389, %v1400
      %v1426 = vmul.f32 %v1390, %v1400
      %v1427 = vmul.f32 %v1391, %v1400
      %v1428 = vmul.f32 %v1392, %v1400
      %v1429 = vmul.f32 %v1393, %v1400
      %v1430 = vmul.f32 %v1394, %v1400
      %v1431 = vmul.f32 %v1395, %v1400
      %v1432 = vmul.f32 %v1396, %v1400
      %v1433 = vadd.f32 %v1301, %v1401
      %v1434 = vadd.f32 %v1302, %v1402
      %v1435 = vadd.f32 %v1303, %v1403
      %v1436 = vadd.f32 %v1304, %v1404
      %v1437 = vadd.f32 %v1305, %v1405
      %v1438 = vadd.f32 %v1306, %v1406
      %v1439 = vadd.f32 %v1307, %v1407
      %v1440 = vadd.f32 %v1308, %v1408
      %v1441 = vadd.f32 %v1309, %v1409
      %v1442 = vadd.f32 %v1310, %v1410
      %v1443 = vadd.f32 %v1311, %v1411
      %v1444 = vadd.f32 %v1312, %v1412
      %v1445 = vadd.f32 %v1313, %v1413
      %v1446 = vadd.f32 %v1314, %v1414
      %v1447 = vadd.f32 %v1315, %v1415
      %v1448 = vadd.f32 %v1316, %v1416
      %v1449 = vadd.f32 %v1317, %v1417
      %v1450 = vadd.f32 %v1318, %v1418
      %v1451 = vadd.f32 %v1319, %v1419
      %v1452 = vadd.f32 %v1320, %v1420
      %v1453 = vadd.f32 %v1321, %v1421
      %v1454 = vadd.f32 %v1322, %v1422
      %v1455 = vadd.f32 %v1323, %v1423
      %v1456 = vadd.f32 %v1324, %v1424
      %v1457 = vadd.f32 %v1325, %v1425
      %v1458 = vadd.f32 %v1326, %v1426
      %v1459 = vadd.f32 %v1327, %v1427
      %v1460 = vadd.f32 %v1328, %v1428
      %v1461 = vadd.f32 %v1329, %v1429
      %v1462 = vadd.f32 %v1330, %v1430
      %v1463 = vadd.f32 %v1331, %v1431
      %v1464 = vadd.f32 %v1332, %v1432
      %v1465 = vld [vmem:[%s564 + $0x8] sm:$0x1]
      %v1466 = vld [vmem:[%s564 + $0x14] sm:$0x1]
      %v1467 = vld [vmem:[%s564 + $0x20] sm:$0x1]
      %v1468 = vld [vmem:[%s564 + $0x2c] sm:$0x1]
      %v1469 = vld [vmem:[%s564 + $0x38] sm:$0x1]
      %v1470 = vld [vmem:[%s564 + $0x44] sm:$0x1]
      %v1471 = vld [vmem:[%s564 + $0x50] sm:$0x1]
      %v1472 = vld [vmem:[%s564 + $0x5c] sm:$0x1]
      %v1473 = vld [vmem:[%s564 + $0x68] sm:$0x1]
      %v1474 = vld [vmem:[%s564 + $0x74] sm:$0x1]
      %v1475 = vld [vmem:[%s564 + $0x80] sm:$0x1]
      %v1476 = vld [vmem:[%s564 + $0x8c] sm:$0x1]
      %v1477 = vld [vmem:[%s564 + $0x98] sm:$0x1]
      %v1478 = vld [vmem:[%s564 + $0xa4] sm:$0x1]
      %v1479 = vld [vmem:[%s564 + $0xb0] sm:$0x1]
      %v1480 = vld [vmem:[%s564 + $0xbc] sm:$0x1]
      %v1481 = vunpack.c.l.bf16 %v1465
      %v1482 = vunpack.c.l.bf16 %v1466
      %v1483 = vunpack.c.l.bf16 %v1467
      %v1484 = vunpack.c.l.bf16 %v1468
      %v1485 = vunpack.c.l.bf16 %v1469
      %v1486 = vunpack.c.l.bf16 %v1470
      %v1487 = vunpack.c.l.bf16 %v1471
      %v1488 = vunpack.c.l.bf16 %v1472
      %v1489 = vunpack.c.l.bf16 %v1473
      %v1490 = vunpack.c.l.bf16 %v1474
      %v1491 = vunpack.c.l.bf16 %v1475
      %v1492 = vunpack.c.l.bf16 %v1476
      %v1493 = vunpack.c.l.bf16 %v1477
      %v1494 = vunpack.c.l.bf16 %v1478
      %v1495 = vunpack.c.l.bf16 %v1479
      %v1496 = vunpack.c.l.bf16 %v1480
      %v1497 = vlaneseq
      %v1498 = vshrl.u32 %v1497, 7
      %v1499 = vsub.s32 1, %v1498
      %v1500 = vrot.slane %v207, %v1499
      %v1501 = vmul.f32 %v1365, %v1500
      %v1502 = vmul.f32 %v1366, %v1500
      %v1503 = vmul.f32 %v1481, %v1500
      %v1504 = vmul.f32 %v1367, %v1500
      %v1505 = vmul.f32 %v1368, %v1500
      %v1506 = vmul.f32 %v1482, %v1500
      %v1507 = vmul.f32 %v1369, %v1500
      %v1508 = vmul.f32 %v1370, %v1500
      %v1509 = vmul.f32 %v1483, %v1500
      %v1510 = vmul.f32 %v1371, %v1500
      %v1511 = vmul.f32 %v1372, %v1500
      %v1512 = vmul.f32 %v1484, %v1500
      %v1513 = vmul.f32 %v1373, %v1500
      %v1514 = vmul.f32 %v1374, %v1500
      %v1515 = vmul.f32 %v1485, %v1500
      %v1516 = vmul.f32 %v1375, %v1500
      %v1517 = vmul.f32 %v1376, %v1500
      %v1518 = vmul.f32 %v1486, %v1500
      %v1519 = vmul.f32 %v1377, %v1500
      %v1520 = vmul.f32 %v1378, %v1500
      %v1521 = vmul.f32 %v1487, %v1500
      %v1522 = vmul.f32 %v1379, %v1500
      %v1523 = vmul.f32 %v1380, %v1500
      %v1524 = vmul.f32 %v1488, %v1500
      %v1525 = vmul.f32 %v1381, %v1500
      %v1526 = vmul.f32 %v1382, %v1500
      %v1527 = vmul.f32 %v1489, %v1500
      %v1528 = vmul.f32 %v1383, %v1500
      %v1529 = vmul.f32 %v1384, %v1500
      %v1530 = vmul.f32 %v1490, %v1500
      %v1531 = vmul.f32 %v1385, %v1500
      %v1532 = vmul.f32 %v1386, %v1500
      %v1533 = vmul.f32 %v1491, %v1500
      %v1534 = vmul.f32 %v1387, %v1500
      %v1535 = vmul.f32 %v1388, %v1500
      %v1536 = vmul.f32 %v1492, %v1500
      %v1537 = vmul.f32 %v1389, %v1500
      %v1538 = vmul.f32 %v1390, %v1500
      %v1539 = vmul.f32 %v1493, %v1500
      %v1540 = vmul.f32 %v1391, %v1500
      %v1541 = vmul.f32 %v1392, %v1500
      %v1542 = vmul.f32 %v1494, %v1500
      %v1543 = vmul.f32 %v1393, %v1500
      %v1544 = vmul.f32 %v1394, %v1500
      %v1545 = vmul.f32 %v1495, %v1500
      %v1546 = vmul.f32 %v1395, %v1500
      %v1547 = vmul.f32 %v1396, %v1500
      %v1548 = vmul.f32 %v1496, %v1500
      %v1597 = vrot.slane %v1501, 1
      %v1598 = vrot.slane %v1502, 1
      %v1599 = vsel %vm911, %v1597, %v1598
      %v1600 = vrot.slane %v1503, 1
      %v1601 = vsel %vm911, %v1598, %v1600
      %v1602 = vrot.slane %v1504, 1
      %v1603 = vrot.slane %v1505, 1
      %v1604 = vsel %vm911, %v1602, %v1603
      %v1605 = vrot.slane %v1506, 1
      %v1606 = vsel %vm911, %v1603, %v1605
      %v1607 = vrot.slane %v1507, 1
      %v1608 = vrot.slane %v1508, 1
      %v1609 = vsel %vm911, %v1607, %v1608
      %v1610 = vrot.slane %v1509, 1
      %v1611 = vsel %vm911, %v1608, %v1610
      %v1612 = vrot.slane %v1510, 1
      %v1613 = vrot.slane %v1511, 1
      %v1614 = vsel %vm911, %v1612, %v1613
      %v1615 = vrot.slane %v1512, 1
      %v1616 = vsel %vm911, %v1613, %v1615
      %v1617 = vrot.slane %v1513, 1
      %v1618 = vrot.slane %v1514, 1
      %v1619 = vsel %vm911, %v1617, %v1618
      %v1620 = vrot.slane %v1515, 1
      %v1621 = vsel %vm911, %v1618, %v1620
      %v1622 = vrot.slane %v1516, 1
      %v1623 = vrot.slane %v1517, 1
      %v1624 = vsel %vm911, %v1622, %v1623
      %v1625 = vrot.slane %v1518, 1
      %v1626 = vsel %vm911, %v1623, %v1625
      %v1627 = vrot.slane %v1519, 1
      %v1628 = vrot.slane %v1520, 1
      %v1629 = vsel %vm911, %v1627, %v1628
      %v1630 = vrot.slane %v1521, 1
      %v1631 = vsel %vm911, %v1628, %v1630
      %v1632 = vrot.slane %v1522, 1
      %v1633 = vrot.slane %v1523, 1
      %v1634 = vsel %vm911, %v1632, %v1633
      %v1635 = vrot.slane %v1524, 1
      %v1636 = vsel %vm911, %v1633, %v1635
      %v1637 = vrot.slane %v1525, 1
      %v1638 = vrot.slane %v1526, 1
      %v1639 = vsel %vm911, %v1637, %v1638
      %v1640 = vrot.slane %v1527, 1
      %v1641 = vsel %vm911, %v1638, %v1640
      %v1642 = vrot.slane %v1528, 1
      %v1643 = vrot.slane %v1529, 1
      %v1644 = vsel %vm911, %v1642, %v1643
      %v1645 = vrot.slane %v1530, 1
      %v1646 = vsel %vm911, %v1643, %v1645
      %v1647 = vrot.slane %v1531, 1
      %v1648 = vrot.slane %v1532, 1
      %v1649 = vsel %vm911, %v1647, %v1648
      %v1650 = vrot.slane %v1533, 1
      %v1651 = vsel %vm911, %v1648, %v1650
      %v1652 = vrot.slane %v1534, 1
      %v1653 = vrot.slane %v1535, 1
      %v1654 = vsel %vm911, %v1652, %v1653
      %v1655 = vrot.slane %v1536, 1
      %v1656 = vsel %vm911, %v1653, %v1655
      %v1657 = vrot.slane %v1537, 1
      %v1658 = vrot.slane %v1538, 1
      %v1659 = vsel %vm911, %v1657, %v1658
      %v1660 = vrot.slane %v1539, 1
      %v1661 = vsel %vm911, %v1658, %v1660
      %v1662 = vrot.slane %v1540, 1
      %v1663 = vrot.slane %v1541, 1
      %v1664 = vsel %vm911, %v1662, %v1663
      %v1665 = vrot.slane %v1542, 1
      %v1666 = vsel %vm911, %v1663, %v1665
      %v1667 = vrot.slane %v1543, 1
      %v1668 = vrot.slane %v1544, 1
      %v1669 = vsel %vm911, %v1667, %v1668
      %v1670 = vrot.slane %v1545, 1
      %v1671 = vsel %vm911, %v1668, %v1670
      %v1672 = vrot.slane %v1546, 1
      %v1673 = vrot.slane %v1547, 1
      %v1674 = vsel %vm911, %v1672, %v1673
      %v1675 = vrot.slane %v1548, 1
      %v1676 = vsel %vm911, %v1673, %v1675
      %v1709 = vadd.f32 %v1433, %v1599
      %v1710 = vadd.f32 %v1434, %v1601
      %v1711 = vadd.f32 %v1435, %v1604
      %v1712 = vadd.f32 %v1436, %v1606
      %v1713 = vadd.f32 %v1437, %v1609
      %v1714 = vadd.f32 %v1438, %v1611
      %v1715 = vadd.f32 %v1439, %v1614
      %v1716 = vadd.f32 %v1440, %v1616
      %v1717 = vadd.f32 %v1441, %v1619
      %v1718 = vadd.f32 %v1442, %v1621
      %v1719 = vadd.f32 %v1443, %v1624
      %v1720 = vadd.f32 %v1444, %v1626
      %v1721 = vadd.f32 %v1445, %v1629
      %v1722 = vadd.f32 %v1446, %v1631
      %v1723 = vadd.f32 %v1447, %v1634
      %v1724 = vadd.f32 %v1448, %v1636
      %v1725 = vadd.f32 %v1449, %v1639
      %v1726 = vadd.f32 %v1450, %v1641
      %v1727 = vadd.f32 %v1451, %v1644
      %v1728 = vadd.f32 %v1452, %v1646
      %v1729 = vadd.f32 %v1453, %v1649
      %v1730 = vadd.f32 %v1454, %v1651
      %v1731 = vadd.f32 %v1455, %v1654
      %v1732 = vadd.f32 %v1456, %v1656
      %v1733 = vadd.f32 %v1457, %v1659
      %v1734 = vadd.f32 %v1458, %v1661
      %v1735 = vadd.f32 %v1459, %v1664
      %v1736 = vadd.f32 %v1460, %v1666
      %v1737 = vadd.f32 %v1461, %v1669
      %v1738 = vadd.f32 %v1462, %v1671
      %v1739 = vadd.f32 %v1463, %v1674
      %v1740 = vadd.f32 %v1464, %v1676
      %v1741 = vld [vmem:[%s564] sm:$0xe]
      %v1742 = vld [vmem:[%s564 + $0xc] sm:$0xe]
      %v1743 = vld [vmem:[%s564 + $0x18] sm:$0xe]
      %v1744 = vld [vmem:[%s564 + $0x24] sm:$0xe]
      %v1745 = vld [vmem:[%s564 + $0x30] sm:$0xe]
      %v1746 = vld [vmem:[%s564 + $0x3c] sm:$0xe]
      %v1747 = vld [vmem:[%s564 + $0x48] sm:$0xe]
      %v1748 = vld [vmem:[%s564 + $0x54] sm:$0xe]
      %v1749 = vld [vmem:[%s564 + $0x60] sm:$0xe]
      %v1750 = vld [vmem:[%s564 + $0x6c] sm:$0xe]
      %v1751 = vld [vmem:[%s564 + $0x78] sm:$0xe]
      %v1752 = vld [vmem:[%s564 + $0x84] sm:$0xe]
      %v1753 = vld [vmem:[%s564 + $0x90] sm:$0xe]
      %v1754 = vld [vmem:[%s564 + $0x9c] sm:$0xe]
      %v1755 = vld [vmem:[%s564 + $0xa8] sm:$0xe]
      %v1756 = vld [vmem:[%s564 + $0xb4] sm:$0xe]
      %v1757 = vunpack.c.l.bf16 %v1741
      %v1758 = vunpack.c.l.bf16 %v1742
      %v1759 = vunpack.c.l.bf16 %v1743
      %v1760 = vunpack.c.l.bf16 %v1744
      %v1761 = vunpack.c.l.bf16 %v1745
      %v1762 = vunpack.c.l.bf16 %v1746
      %v1763 = vunpack.c.l.bf16 %v1747
      %v1764 = vunpack.c.l.bf16 %v1748
      %v1765 = vunpack.c.l.bf16 %v1749
      %v1766 = vunpack.c.l.bf16 %v1750
      %v1767 = vunpack.c.l.bf16 %v1751
      %v1768 = vunpack.c.l.bf16 %v1752
      %v1769 = vunpack.c.l.bf16 %v1753
      %v1770 = vunpack.c.l.bf16 %v1754
      %v1771 = vunpack.c.l.bf16 %v1755
      %v1772 = vunpack.c.l.bf16 %v1756
      %v1773 = vlaneseq
      %v1774 = vshrl.u32 %v1773, 7
      %v1775 = vsub.s32 2, %v1774
      %v1776 = vrot.slane %v207, %v1775
      %v1777 = vmul.f32 %v1757, %v1776
      %v1778 = vmul.f32 %v1366, %v1776
      %v1779 = vmul.f32 %v1481, %v1776
      %v1780 = vmul.f32 %v1758, %v1776
      %v1781 = vmul.f32 %v1368, %v1776
      %v1782 = vmul.f32 %v1482, %v1776
      %v1783 = vmul.f32 %v1759, %v1776
      %v1784 = vmul.f32 %v1370, %v1776
      %v1785 = vmul.f32 %v1483, %v1776
      %v1786 = vmul.f32 %v1760, %v1776
      %v1787 = vmul.f32 %v1372, %v1776
      %v1788 = vmul.f32 %v1484, %v1776
      %v1789 = vmul.f32 %v1761, %v1776
      %v1790 = vmul.f32 %v1374, %v1776
      %v1791 = vmul.f32 %v1485, %v1776
      %v1792 = vmul.f32 %v1762, %v1776
      %v1793 = vmul.f32 %v1376, %v1776
      %v1794 = vmul.f32 %v1486, %v1776
      %v1795 = vmul.f32 %v1763, %v1776
      %v1796 = vmul.f32 %v1378, %v1776
      %v1797 = vmul.f32 %v1487, %v1776
      %v1798 = vmul.f32 %v1764, %v1776
      %v1799 = vmul.f32 %v1380, %v1776
      %v1800 = vmul.f32 %v1488, %v1776
      %v1801 = vmul.f32 %v1765, %v1776
      %v1802 = vmul.f32 %v1382, %v1776
      %v1803 = vmul.f32 %v1489, %v1776
      %v1804 = vmul.f32 %v1766, %v1776
      %v1805 = vmul.f32 %v1384, %v1776
      %v1806 = vmul.f32 %v1490, %v1776
      %v1807 = vmul.f32 %v1767, %v1776
      %v1808 = vmul.f32 %v1386, %v1776
      %v1809 = vmul.f32 %v1491, %v1776
      %v1810 = vmul.f32 %v1768, %v1776
      %v1811 = vmul.f32 %v1388, %v1776
      %v1812 = vmul.f32 %v1492, %v1776
      %v1813 = vmul.f32 %v1769, %v1776
      %v1814 = vmul.f32 %v1390, %v1776
      %v1815 = vmul.f32 %v1493, %v1776
      %v1816 = vmul.f32 %v1770, %v1776
      %v1817 = vmul.f32 %v1392, %v1776
      %v1818 = vmul.f32 %v1494, %v1776
      %v1819 = vmul.f32 %v1771, %v1776
      %v1820 = vmul.f32 %v1394, %v1776
      %v1821 = vmul.f32 %v1495, %v1776
      %v1822 = vmul.f32 %v1772, %v1776
      %v1823 = vmul.f32 %v1396, %v1776
      %v1824 = vmul.f32 %v1496, %v1776
      %v1873 = vrot.slane %v1777, 2
      %v1874 = vrot.slane %v1778, 2
      %v1875 = vsel %vm1188, %v1873, %v1874
      %v1876 = vrot.slane %v1779, 2
      %v1877 = vsel %vm1188, %v1874, %v1876
      %v1878 = vrot.slane %v1780, 2
      %v1879 = vrot.slane %v1781, 2
      %v1880 = vsel %vm1188, %v1878, %v1879
      %v1881 = vrot.slane %v1782, 2
      %v1882 = vsel %vm1188, %v1879, %v1881
      %v1883 = vrot.slane %v1783, 2
      %v1884 = vrot.slane %v1784, 2
      %v1885 = vsel %vm1188, %v1883, %v1884
      %v1886 = vrot.slane %v1785, 2
      %v1887 = vsel %vm1188, %v1884, %v1886
      %v1888 = vrot.slane %v1786, 2
      %v1889 = vrot.slane %v1787, 2
      %v1890 = vsel %vm1188, %v1888, %v1889
      %v1891 = vrot.slane %v1788, 2
      %v1892 = vsel %vm1188, %v1889, %v1891
      %v1893 = vrot.slane %v1789, 2
      %v1894 = vrot.slane %v1790, 2
      %v1895 = vsel %vm1188, %v1893, %v1894
      %v1896 = vrot.slane %v1791, 2
      %v1897 = vsel %vm1188, %v1894, %v1896
      %v1898 = vrot.slane %v1792, 2
      %v1899 = vrot.slane %v1793, 2
      %v1900 = vsel %vm1188, %v1898, %v1899
      %v1901 = vrot.slane %v1794, 2
      %v1902 = vsel %vm1188, %v1899, %v1901
      %v1903 = vrot.slane %v1795, 2
      %v1904 = vrot.slane %v1796, 2
      %v1905 = vsel %vm1188, %v1903, %v1904
      %v1906 = vrot.slane %v1797, 2
      %v1907 = vsel %vm1188, %v1904, %v1906
      %v1908 = vrot.slane %v1798, 2
      %v1909 = vrot.slane %v1799, 2
      %v1910 = vsel %vm1188, %v1908, %v1909
      %v1911 = vrot.slane %v1800, 2
      %v1912 = vsel %vm1188, %v1909, %v1911
      %v1913 = vrot.slane %v1801, 2
      %v1914 = vrot.slane %v1802, 2
      %v1915 = vsel %vm1188, %v1913, %v1914
      %v1916 = vrot.slane %v1803, 2
      %v1917 = vsel %vm1188, %v1914, %v1916
      %v1918 = vrot.slane %v1804, 2
      %v1919 = vrot.slane %v1805, 2
      %v1920 = vsel %vm1188, %v1918, %v1919
      %v1921 = vrot.slane %v1806, 2
      %v1922 = vsel %vm1188, %v1919, %v1921
      %v1923 = vrot.slane %v1807, 2
      %v1924 = vrot.slane %v1808, 2
      %v1925 = vsel %vm1188, %v1923, %v1924
      %v1926 = vrot.slane %v1809, 2
      %v1927 = vsel %vm1188, %v1924, %v1926
      %v1928 = vrot.slane %v1810, 2
      %v1929 = vrot.slane %v1811, 2
      %v1930 = vsel %vm1188, %v1928, %v1929
      %v1931 = vrot.slane %v1812, 2
      %v1932 = vsel %vm1188, %v1929, %v1931
      %v1933 = vrot.slane %v1813, 2
      %v1934 = vrot.slane %v1814, 2
      %v1935 = vsel %vm1188, %v1933, %v1934
      %v1936 = vrot.slane %v1815, 2
      %v1937 = vsel %vm1188, %v1934, %v1936
      %v1938 = vrot.slane %v1816, 2
      %v1939 = vrot.slane %v1817, 2
      %v1940 = vsel %vm1188, %v1938, %v1939
      %v1941 = vrot.slane %v1818, 2
      %v1942 = vsel %vm1188, %v1939, %v1941
      %v1943 = vrot.slane %v1819, 2
      %v1944 = vrot.slane %v1820, 2
      %v1945 = vsel %vm1188, %v1943, %v1944
      %v1946 = vrot.slane %v1821, 2
      %v1947 = vsel %vm1188, %v1944, %v1946
      %v1948 = vrot.slane %v1822, 2
      %v1949 = vrot.slane %v1823, 2
      %v1950 = vsel %vm1188, %v1948, %v1949
      %v1951 = vrot.slane %v1824, 2
      %v1952 = vsel %vm1188, %v1949, %v1951
      %v1985 = vadd.f32 %v1709, %v1875
      %v1986 = vadd.f32 %v1710, %v1877
      %v1987 = vadd.f32 %v1711, %v1880
      %v1988 = vadd.f32 %v1712, %v1882
      %v1989 = vadd.f32 %v1713, %v1885
      %v1990 = vadd.f32 %v1714, %v1887
      %v1991 = vadd.f32 %v1715, %v1890
      %v1992 = vadd.f32 %v1716, %v1892
      %v1993 = vadd.f32 %v1717, %v1895
      %v1994 = vadd.f32 %v1718, %v1897
      %v1995 = vadd.f32 %v1719, %v1900
      %v1996 = vadd.f32 %v1720, %v1902
      %v1997 = vadd.f32 %v1721, %v1905
      %v1998 = vadd.f32 %v1722, %v1907
      %v1999 = vadd.f32 %v1723, %v1910
      %v2000 = vadd.f32 %v1724, %v1912
      %v2001 = vadd.f32 %v1725, %v1915
      %v2002 = vadd.f32 %v1726, %v1917
      %v2003 = vadd.f32 %v1727, %v1920
      %v2004 = vadd.f32 %v1728, %v1922
      %v2005 = vadd.f32 %v1729, %v1925
      %v2006 = vadd.f32 %v1730, %v1927
      %v2007 = vadd.f32 %v1731, %v1930
      %v2008 = vadd.f32 %v1732, %v1932
      %v2009 = vadd.f32 %v1733, %v1935
      %v2010 = vadd.f32 %v1734, %v1937
      %v2011 = vadd.f32 %v1735, %v1940
      %v2012 = vadd.f32 %v1736, %v1942
      %v2013 = vadd.f32 %v1737, %v1945
      %v2014 = vadd.f32 %v1738, %v1947
      %v2015 = vadd.f32 %v1739, %v1950
      %v2016 = vadd.f32 %v1740, %v1952
      %s2017 = scalar_lea.vmem [#allocation2], 24
      %v2018 = vld [vmem:[%s2017] sm:$0xf]
      %v2019 = vld [vmem:[%s2017 + $0x4] sm:$0xf]
      %v2020 = vld [vmem:[%s2017 + $0xc] sm:$0xf]
      %v2021 = vld [vmem:[%s2017 + $0x10] sm:$0xf]
      %v2022 = vld [vmem:[%s2017 + $0x18] sm:$0xf]
      %v2023 = vld [vmem:[%s2017 + $0x1c] sm:$0xf]
      %v2024 = vld [vmem:[%s2017 + $0x24] sm:$0xf]
      %v2025 = vld [vmem:[%s2017 + $0x28] sm:$0xf]
      %v2026 = vld [vmem:[%s2017 + $0x30] sm:$0xf]
      %v2027 = vld [vmem:[%s2017 + $0x34] sm:$0xf]
      %v2028 = vld [vmem:[%s2017 + $0x3c] sm:$0xf]
      %v2029 = vld [vmem:[%s2017 + $0x40] sm:$0xf]
      %v2030 = vld [vmem:[%s2017 + $0x48] sm:$0xf]
      %v2031 = vld [vmem:[%s2017 + $0x4c] sm:$0xf]
      %v2032 = vld [vmem:[%s2017 + $0x54] sm:$0xf]
      %v2033 = vld [vmem:[%s2017 + $0x58] sm:$0xf]
      %v2034 = vld [vmem:[%s2017 + $0x60] sm:$0xf]
      %v2035 = vld [vmem:[%s2017 + $0x64] sm:$0xf]
      %v2036 = vld [vmem:[%s2017 + $0x6c] sm:$0xf]
      %v2037 = vld [vmem:[%s2017 + $0x70] sm:$0xf]
      %v2038 = vld [vmem:[%s2017 + $0x78] sm:$0xf]
      %v2039 = vld [vmem:[%s2017 + $0x7c] sm:$0xf]
      %v2040 = vld [vmem:[%s2017 + $0x84] sm:$0xf]
      %v2041 = vld [vmem:[%s2017 + $0x88] sm:$0xf]
      %v2042 = vld [vmem:[%s2017 + $0x90] sm:$0xf]
      %v2043 = vld [vmem:[%s2017 + $0x94] sm:$0xf]
      %v2044 = vld [vmem:[%s2017 + $0x9c] sm:$0xf]
      %v2045 = vld [vmem:[%s2017 + $0xa0] sm:$0xf]
      %v2046 = vld [vmem:[%s2017 + $0xa8] sm:$0xf]
      %v2047 = vld [vmem:[%s2017 + $0xac] sm:$0xf]
      %v2048 = vld [vmem:[%s2017 + $0xb4] sm:$0xf]
      %v2049 = vld [vmem:[%s2017 + $0xb8] sm:$0xf]
      %v2050 = vunpack.c.l.bf16 %v2018
      %v2051 = vunpack.c.l.bf16 %v2019
      %v2052 = vunpack.c.l.bf16 %v2020
      %v2053 = vunpack.c.l.bf16 %v2021
      %v2054 = vunpack.c.l.bf16 %v2022
      %v2055 = vunpack.c.l.bf16 %v2023
      %v2056 = vunpack.c.l.bf16 %v2024
      %v2057 = vunpack.c.l.bf16 %v2025
      %v2058 = vunpack.c.l.bf16 %v2026
      %v2059 = vunpack.c.l.bf16 %v2027
      %v2060 = vunpack.c.l.bf16 %v2028
      %v2061 = vunpack.c.l.bf16 %v2029
      %v2062 = vunpack.c.l.bf16 %v2030
      %v2063 = vunpack.c.l.bf16 %v2031
      %v2064 = vunpack.c.l.bf16 %v2032
      %v2065 = vunpack.c.l.bf16 %v2033
      %v2066 = vunpack.c.l.bf16 %v2034
      %v2067 = vunpack.c.l.bf16 %v2035
      %v2068 = vunpack.c.l.bf16 %v2036
      %v2069 = vunpack.c.l.bf16 %v2037
      %v2070 = vunpack.c.l.bf16 %v2038
      %v2071 = vunpack.c.l.bf16 %v2039
      %v2072 = vunpack.c.l.bf16 %v2040
      %v2073 = vunpack.c.l.bf16 %v2041
      %v2074 = vunpack.c.l.bf16 %v2042
      %v2075 = vunpack.c.l.bf16 %v2043
      %v2076 = vunpack.c.l.bf16 %v2044
      %v2077 = vunpack.c.l.bf16 %v2045
      %v2078 = vunpack.c.l.bf16 %v2046
      %v2079 = vunpack.c.l.bf16 %v2047
      %v2080 = vunpack.c.l.bf16 %v2048
      %v2081 = vunpack.c.l.bf16 %v2049
      %v2082 = vlaneseq
      %v2083 = vshrl.u32 %v2082, 7
      %v2084 = vsub.s32 0, %v2083
      %v2085 = vrot.slane %v208, %v2084
      %v2086 = vmul.f32 %v2050, %v2085
      %v2087 = vmul.f32 %v2051, %v2085
      %v2088 = vmul.f32 %v2052, %v2085
      %v2089 = vmul.f32 %v2053, %v2085
      %v2090 = vmul.f32 %v2054, %v2085
      %v2091 = vmul.f32 %v2055, %v2085
      %v2092 = vmul.f32 %v2056, %v2085
      %v2093 = vmul.f32 %v2057, %v2085
      %v2094 = vmul.f32 %v2058, %v2085
      %v2095 = vmul.f32 %v2059, %v2085
      %v2096 = vmul.f32 %v2060, %v2085
      %v2097 = vmul.f32 %v2061, %v2085
      %v2098 = vmul.f32 %v2062, %v2085
      %v2099 = vmul.f32 %v2063, %v2085
      %v2100 = vmul.f32 %v2064, %v2085
      %v2101 = vmul.f32 %v2065, %v2085
      %v2102 = vmul.f32 %v2066, %v2085
      %v2103 = vmul.f32 %v2067, %v2085
      %v2104 = vmul.f32 %v2068, %v2085
      %v2105 = vmul.f32 %v2069, %v2085
      %v2106 = vmul.f32 %v2070, %v2085
      %v2107 = vmul.f32 %v2071, %v2085
      %v2108 = vmul.f32 %v2072, %v2085
      %v2109 = vmul.f32 %v2073, %v2085
      %v2110 = vmul.f32 %v2074, %v2085
      %v2111 = vmul.f32 %v2075, %v2085
      %v2112 = vmul.f32 %v2076, %v2085
      %v2113 = vmul.f32 %v2077, %v2085
      %v2114 = vmul.f32 %v2078, %v2085
      %v2115 = vmul.f32 %v2079, %v2085
      %v2116 = vmul.f32 %v2080, %v2085
      %v2117 = vmul.f32 %v2081, %v2085
      %v2118 = vadd.f32 %v1985, %v2086
      %v2119 = vadd.f32 %v1986, %v2087
      %v2120 = vadd.f32 %v1987, %v2088
      %v2121 = vadd.f32 %v1988, %v2089
      %v2122 = vadd.f32 %v1989, %v2090
      %v2123 = vadd.f32 %v1990, %v2091
      %v2124 = vadd.f32 %v1991, %v2092
      %v2125 = vadd.f32 %v1992, %v2093
      %v2126 = vadd.f32 %v1993, %v2094
      %v2127 = vadd.f32 %v1994, %v2095
      %v2128 = vadd.f32 %v1995, %v2096
      %v2129 = vadd.f32 %v1996, %v2097
      %v2130 = vadd.f32 %v1997, %v2098
      %v2131 = vadd.f32 %v1998, %v2099
      %v2132 = vadd.f32 %v1999, %v2100
      %v2133 = vadd.f32 %v2000, %v2101
      %v2134 = vadd.f32 %v2001, %v2102
      %v2135 = vadd.f32 %v2002, %v2103
      %v2136 = vadd.f32 %v2003, %v2104
      %v2137 = vadd.f32 %v2004, %v2105
      %v2138 = vadd.f32 %v2005, %v2106
      %v2139 = vadd.f32 %v2006, %v2107
      %v2140 = vadd.f32 %v2007, %v2108
      %v2141 = vadd.f32 %v2008, %v2109
      %v2142 = vadd.f32 %v2009, %v2110
      %v2143 = vadd.f32 %v2010, %v2111
      %v2144 = vadd.f32 %v2011, %v2112
      %v2145 = vadd.f32 %v2012, %v2113
      %v2146 = vadd.f32 %v2013, %v2114
      %v2147 = vadd.f32 %v2014, %v2115
      %v2148 = vadd.f32 %v2015, %v2116
      %v2149 = vadd.f32 %v2016, %v2117
      %v2150 = vld [vmem:[%s2017 + $0x8] sm:$0x1]
      %v2151 = vld [vmem:[%s2017 + $0x14] sm:$0x1]
      %v2152 = vld [vmem:[%s2017 + $0x20] sm:$0x1]
      %v2153 = vld [vmem:[%s2017 + $0x2c] sm:$0x1]
      %v2154 = vld [vmem:[%s2017 + $0x38] sm:$0x1]
      %v2155 = vld [vmem:[%s2017 + $0x44] sm:$0x1]
      %v2156 = vld [vmem:[%s2017 + $0x50] sm:$0x1]
      %v2157 = vld [vmem:[%s2017 + $0x5c] sm:$0x1]
      %v2158 = vld [vmem:[%s2017 + $0x68] sm:$0x1]
      %v2159 = vld [vmem:[%s2017 + $0x74] sm:$0x1]
      %v2160 = vld [vmem:[%s2017 + $0x80] sm:$0x1]
      %v2161 = vld [vmem:[%s2017 + $0x8c] sm:$0x1]
      %v2162 = vld [vmem:[%s2017 + $0x98] sm:$0x1]
      %v2163 = vld [vmem:[%s2017 + $0xa4] sm:$0x1]
      %v2164 = vld [vmem:[%s2017 + $0xb0] sm:$0x1]
      %v2165 = vld [vmem:[%s2017 + $0xbc] sm:$0x1]
      %v2166 = vunpack.c.l.bf16 %v2150
      %v2167 = vunpack.c.l.bf16 %v2151
      %v2168 = vunpack.c.l.bf16 %v2152
      %v2169 = vunpack.c.l.bf16 %v2153
      %v2170 = vunpack.c.l.bf16 %v2154
      %v2171 = vunpack.c.l.bf16 %v2155
      %v2172 = vunpack.c.l.bf16 %v2156
      %v2173 = vunpack.c.l.bf16 %v2157
      %v2174 = vunpack.c.l.bf16 %v2158
      %v2175 = vunpack.c.l.bf16 %v2159
      %v2176 = vunpack.c.l.bf16 %v2160
      %v2177 = vunpack.c.l.bf16 %v2161
      %v2178 = vunpack.c.l.bf16 %v2162
      %v2179 = vunpack.c.l.bf16 %v2163
      %v2180 = vunpack.c.l.bf16 %v2164
      %v2181 = vunpack.c.l.bf16 %v2165
      %v2182 = vlaneseq
      %v2183 = vshrl.u32 %v2182, 7
      %v2184 = vsub.s32 1, %v2183
      %v2185 = vrot.slane %v208, %v2184
      %v2186 = vmul.f32 %v2050, %v2185
      %v2187 = vmul.f32 %v2051, %v2185
      %v2188 = vmul.f32 %v2166, %v2185
      %v2189 = vmul.f32 %v2052, %v2185
      %v2190 = vmul.f32 %v2053, %v2185
      %v2191 = vmul.f32 %v2167, %v2185
      %v2192 = vmul.f32 %v2054, %v2185
      %v2193 = vmul.f32 %v2055, %v2185
      %v2194 = vmul.f32 %v2168, %v2185
      %v2195 = vmul.f32 %v2056, %v2185
      %v2196 = vmul.f32 %v2057, %v2185
      %v2197 = vmul.f32 %v2169, %v2185
      %v2198 = vmul.f32 %v2058, %v2185
      %v2199 = vmul.f32 %v2059, %v2185
      %v2200 = vmul.f32 %v2170, %v2185
      %v2201 = vmul.f32 %v2060, %v2185
      %v2202 = vmul.f32 %v2061, %v2185
      %v2203 = vmul.f32 %v2171, %v2185
      %v2204 = vmul.f32 %v2062, %v2185
      %v2205 = vmul.f32 %v2063, %v2185
      %v2206 = vmul.f32 %v2172, %v2185
      %v2207 = vmul.f32 %v2064, %v2185
      %v2208 = vmul.f32 %v2065, %v2185
      %v2209 = vmul.f32 %v2173, %v2185
      %v2210 = vmul.f32 %v2066, %v2185
      %v2211 = vmul.f32 %v2067, %v2185
      %v2212 = vmul.f32 %v2174, %v2185
      %v2213 = vmul.f32 %v2068, %v2185
      %v2214 = vmul.f32 %v2069, %v2185
      %v2215 = vmul.f32 %v2175, %v2185
      %v2216 = vmul.f32 %v2070, %v2185
      %v2217 = vmul.f32 %v2071, %v2185
      %v2218 = vmul.f32 %v2176, %v2185
      %v2219 = vmul.f32 %v2072, %v2185
      %v2220 = vmul.f32 %v2073, %v2185
      %v2221 = vmul.f32 %v2177, %v2185
      %v2222 = vmul.f32 %v2074, %v2185
      %v2223 = vmul.f32 %v2075, %v2185
      %v2224 = vmul.f32 %v2178, %v2185
      %v2225 = vmul.f32 %v2076, %v2185
      %v2226 = vmul.f32 %v2077, %v2185
      %v2227 = vmul.f32 %v2179, %v2185
      %v2228 = vmul.f32 %v2078, %v2185
      %v2229 = vmul.f32 %v2079, %v2185
      %v2230 = vmul.f32 %v2180, %v2185
      %v2231 = vmul.f32 %v2080, %v2185
      %v2232 = vmul.f32 %v2081, %v2185
      %v2233 = vmul.f32 %v2181, %v2185
      %v2282 = vrot.slane %v2186, 1
      %v2283 = vrot.slane %v2187, 1
      %v2284 = vsel %vm911, %v2282, %v2283
      %v2285 = vrot.slane %v2188, 1
      %v2286 = vsel %vm911, %v2283, %v2285
      %v2287 = vrot.slane %v2189, 1
      %v2288 = vrot.slane %v2190, 1
      %v2289 = vsel %vm911, %v2287, %v2288
      %v2290 = vrot.slane %v2191, 1
      %v2291 = vsel %vm911, %v2288, %v2290
      %v2292 = vrot.slane %v2192, 1
      %v2293 = vrot.slane %v2193, 1
      %v2294 = vsel %vm911, %v2292, %v2293
      %v2295 = vrot.slane %v2194, 1
      %v2296 = vsel %vm911, %v2293, %v2295
      %v2297 = vrot.slane %v2195, 1
      %v2298 = vrot.slane %v2196, 1
      %v2299 = vsel %vm911, %v2297, %v2298
      %v2300 = vrot.slane %v2197, 1
      %v2301 = vsel %vm911, %v2298, %v2300
      %v2302 = vrot.slane %v2198, 1
      %v2303 = vrot.slane %v2199, 1
      %v2304 = vsel %vm911, %v2302, %v2303
      %v2305 = vrot.slane %v2200, 1
      %v2306 = vsel %vm911, %v2303, %v2305
      %v2307 = vrot.slane %v2201, 1
      %v2308 = vrot.slane %v2202, 1
      %v2309 = vsel %vm911, %v2307, %v2308
      %v2310 = vrot.slane %v2203, 1
      %v2311 = vsel %vm911, %v2308, %v2310
      %v2312 = vrot.slane %v2204, 1
      %v2313 = vrot.slane %v2205, 1
      %v2314 = vsel %vm911, %v2312, %v2313
      %v2315 = vrot.slane %v2206, 1
      %v2316 = vsel %vm911, %v2313, %v2315
      %v2317 = vrot.slane %v2207, 1
      %v2318 = vrot.slane %v2208, 1
      %v2319 = vsel %vm911, %v2317, %v2318
      %v2320 = vrot.slane %v2209, 1
      %v2321 = vsel %vm911, %v2318, %v2320
      %v2322 = vrot.slane %v2210, 1
      %v2323 = vrot.slane %v2211, 1
      %v2324 = vsel %vm911, %v2322, %v2323
      %v2325 = vrot.slane %v2212, 1
      %v2326 = vsel %vm911, %v2323, %v2325
      %v2327 = vrot.slane %v2213, 1
      %v2328 = vrot.slane %v2214, 1
      %v2329 = vsel %vm911, %v2327, %v2328
      %v2330 = vrot.slane %v2215, 1
      %v2331 = vsel %vm911, %v2328, %v2330
      %v2332 = vrot.slane %v2216, 1
      %v2333 = vrot.slane %v2217, 1
      %v2334 = vsel %vm911, %v2332, %v2333
      %v2335 = vrot.slane %v2218, 1
      %v2336 = vsel %vm911, %v2333, %v2335
      %v2337 = vrot.slane %v2219, 1
      %v2338 = vrot.slane %v2220, 1
      %v2339 = vsel %vm911, %v2337, %v2338
      %v2340 = vrot.slane %v2221, 1
      %v2341 = vsel %vm911, %v2338, %v2340
      %v2342 = vrot.slane %v2222, 1
      %v2343 = vrot.slane %v2223, 1
      %v2344 = vsel %vm911, %v2342, %v2343
      %v2345 = vrot.slane %v2224, 1
      %v2346 = vsel %vm911, %v2343, %v2345
      %v2347 = vrot.slane %v2225, 1
      %v2348 = vrot.slane %v2226, 1
      %v2349 = vsel %vm911, %v2347, %v2348
      %v2350 = vrot.slane %v2227, 1
      %v2351 = vsel %vm911, %v2348, %v2350
      %v2352 = vrot.slane %v2228, 1
      %v2353 = vrot.slane %v2229, 1
      %v2354 = vsel %vm911, %v2352, %v2353
      %v2355 = vrot.slane %v2230, 1
      %v2356 = vsel %vm911, %v2353, %v2355
      %v2357 = vrot.slane %v2231, 1
      %v2358 = vrot.slane %v2232, 1
      %v2359 = vsel %vm911, %v2357, %v2358
      %v2360 = vrot.slane %v2233, 1
      %v2361 = vsel %vm911, %v2358, %v2360
      %v2394 = vadd.f32 %v2118, %v2284
      %v2395 = vadd.f32 %v2119, %v2286
      %v2396 = vadd.f32 %v2120, %v2289
      %v2397 = vadd.f32 %v2121, %v2291
      %v2398 = vadd.f32 %v2122, %v2294
      %v2399 = vadd.f32 %v2123, %v2296
      %v2400 = vadd.f32 %v2124, %v2299
      %v2401 = vadd.f32 %v2125, %v2301
      %v2402 = vadd.f32 %v2126, %v2304
      %v2403 = vadd.f32 %v2127, %v2306
      %v2404 = vadd.f32 %v2128, %v2309
      %v2405 = vadd.f32 %v2129, %v2311
      %v2406 = vadd.f32 %v2130, %v2314
      %v2407 = vadd.f32 %v2131, %v2316
      %v2408 = vadd.f32 %v2132, %v2319
      %v2409 = vadd.f32 %v2133, %v2321
      %v2410 = vadd.f32 %v2134, %v2324
      %v2411 = vadd.f32 %v2135, %v2326
      %v2412 = vadd.f32 %v2136, %v2329
      %v2413 = vadd.f32 %v2137, %v2331
      %v2414 = vadd.f32 %v2138, %v2334
      %v2415 = vadd.f32 %v2139, %v2336
      %v2416 = vadd.f32 %v2140, %v2339
      %v2417 = vadd.f32 %v2141, %v2341
      %v2418 = vadd.f32 %v2142, %v2344
      %v2419 = vadd.f32 %v2143, %v2346
      %v2420 = vadd.f32 %v2144, %v2349
      %v2421 = vadd.f32 %v2145, %v2351
      %v2422 = vadd.f32 %v2146, %v2354
      %v2423 = vadd.f32 %v2147, %v2356
      %v2424 = vadd.f32 %v2148, %v2359
      %v2425 = vadd.f32 %v2149, %v2361
      %v2426 = vld [vmem:[%s2017] sm:$0xe]
      %v2427 = vld [vmem:[%s2017 + $0xc] sm:$0xe]
      %v2428 = vld [vmem:[%s2017 + $0x18] sm:$0xe]
      %v2429 = vld [vmem:[%s2017 + $0x24] sm:$0xe]
      %v2430 = vld [vmem:[%s2017 + $0x30] sm:$0xe]
      %v2431 = vld [vmem:[%s2017 + $0x3c] sm:$0xe]
      %v2432 = vld [vmem:[%s2017 + $0x48] sm:$0xe]
      %v2433 = vld [vmem:[%s2017 + $0x54] sm:$0xe]
      %v2434 = vld [vmem:[%s2017 + $0x60] sm:$0xe]
      %v2435 = vld [vmem:[%s2017 + $0x6c] sm:$0xe]
      %v2436 = vld [vmem:[%s2017 + $0x78] sm:$0xe]
      %v2437 = vld [vmem:[%s2017 + $0x84] sm:$0xe]
      %v2438 = vld [vmem:[%s2017 + $0x90] sm:$0xe]
      %v2439 = vld [vmem:[%s2017 + $0x9c] sm:$0xe]
      %v2440 = vld [vmem:[%s2017 + $0xa8] sm:$0xe]
      %v2441 = vld [vmem:[%s2017 + $0xb4] sm:$0xe]
      %v2442 = vunpack.c.l.bf16 %v2426
      %v2443 = vunpack.c.l.bf16 %v2427
      %v2444 = vunpack.c.l.bf16 %v2428
      %v2445 = vunpack.c.l.bf16 %v2429
      %v2446 = vunpack.c.l.bf16 %v2430
      %v2447 = vunpack.c.l.bf16 %v2431
      %v2448 = vunpack.c.l.bf16 %v2432
      %v2449 = vunpack.c.l.bf16 %v2433
      %v2450 = vunpack.c.l.bf16 %v2434
      %v2451 = vunpack.c.l.bf16 %v2435
      %v2452 = vunpack.c.l.bf16 %v2436
      %v2453 = vunpack.c.l.bf16 %v2437
      %v2454 = vunpack.c.l.bf16 %v2438
      %v2455 = vunpack.c.l.bf16 %v2439
      %v2456 = vunpack.c.l.bf16 %v2440
      %v2457 = vunpack.c.l.bf16 %v2441
      %v2458 = vlaneseq
      %v2459 = vshrl.u32 %v2458, 7
      %v2460 = vsub.s32 2, %v2459
      %v2461 = vrot.slane %v208, %v2460
      %v2462 = vmul.f32 %v2442, %v2461
      %v2463 = vmul.f32 %v2051, %v2461
      %v2464 = vmul.f32 %v2166, %v2461
      %v2465 = vmul.f32 %v2443, %v2461
      %v2466 = vmul.f32 %v2053, %v2461
      %v2467 = vmul.f32 %v2167, %v2461
      %v2468 = vmul.f32 %v2444, %v2461
      %v2469 = vmul.f32 %v2055, %v2461
      %v2470 = vmul.f32 %v2168, %v2461
      %v2471 = vmul.f32 %v2445, %v2461
      %v2472 = vmul.f32 %v2057, %v2461
      %v2473 = vmul.f32 %v2169, %v2461
      %v2474 = vmul.f32 %v2446, %v2461
      %v2475 = vmul.f32 %v2059, %v2461
      %v2476 = vmul.f32 %v2170, %v2461
      %v2477 = vmul.f32 %v2447, %v2461
      %v2478 = vmul.f32 %v2061, %v2461
      %v2479 = vmul.f32 %v2171, %v2461
      %v2480 = vmul.f32 %v2448, %v2461
      %v2481 = vmul.f32 %v2063, %v2461
      %v2482 = vmul.f32 %v2172, %v2461
      %v2483 = vmul.f32 %v2449, %v2461
      %v2484 = vmul.f32 %v2065, %v2461
      %v2485 = vmul.f32 %v2173, %v2461
      %v2486 = vmul.f32 %v2450, %v2461
      %v2487 = vmul.f32 %v2067, %v2461
      %v2488 = vmul.f32 %v2174, %v2461
      %v2489 = vmul.f32 %v2451, %v2461
      %v2490 = vmul.f32 %v2069, %v2461
      %v2491 = vmul.f32 %v2175, %v2461
      %v2492 = vmul.f32 %v2452, %v2461
      %v2493 = vmul.f32 %v2071, %v2461
      %v2494 = vmul.f32 %v2176, %v2461
      %v2495 = vmul.f32 %v2453, %v2461
      %v2496 = vmul.f32 %v2073, %v2461
      %v2497 = vmul.f32 %v2177, %v2461
      %v2498 = vmul.f32 %v2454, %v2461
      %v2499 = vmul.f32 %v2075, %v2461
      %v2500 = vmul.f32 %v2178, %v2461
      %v2501 = vmul.f32 %v2455, %v2461
      %v2502 = vmul.f32 %v2077, %v2461
      %v2503 = vmul.f32 %v2179, %v2461
      %v2504 = vmul.f32 %v2456, %v2461
      %v2505 = vmul.f32 %v2079, %v2461
      %v2506 = vmul.f32 %v2180, %v2461
      %v2507 = vmul.f32 %v2457, %v2461
      %v2508 = vmul.f32 %v2081, %v2461
      %v2509 = vmul.f32 %v2181, %v2461
      %v2558 = vrot.slane %v2462, 2
      %v2559 = vrot.slane %v2463, 2
      %v2560 = vsel %vm1188, %v2558, %v2559
      %v2561 = vrot.slane %v2464, 2
      %v2562 = vsel %vm1188, %v2559, %v2561
      %v2563 = vrot.slane %v2465, 2
      %v2564 = vrot.slane %v2466, 2
      %v2565 = vsel %vm1188, %v2563, %v2564
      %v2566 = vrot.slane %v2467, 2
      %v2567 = vsel %vm1188, %v2564, %v2566
      %v2568 = vrot.slane %v2468, 2
      %v2569 = vrot.slane %v2469, 2
      %v2570 = vsel %vm1188, %v2568, %v2569
      %v2571 = vrot.slane %v2470, 2
      %v2572 = vsel %vm1188, %v2569, %v2571
      %v2573 = vrot.slane %v2471, 2
      %v2574 = vrot.slane %v2472, 2
      %v2575 = vsel %vm1188, %v2573, %v2574
      %v2576 = vrot.slane %v2473, 2
      %v2577 = vsel %vm1188, %v2574, %v2576
      %v2578 = vrot.slane %v2474, 2
      %v2579 = vrot.slane %v2475, 2
      %v2580 = vsel %vm1188, %v2578, %v2579
      %v2581 = vrot.slane %v2476, 2
      %v2582 = vsel %vm1188, %v2579, %v2581
      %v2583 = vrot.slane %v2477, 2
      %v2584 = vrot.slane %v2478, 2
      %v2585 = vsel %vm1188, %v2583, %v2584
      %v2586 = vrot.slane %v2479, 2
      %v2587 = vsel %vm1188, %v2584, %v2586
      %v2588 = vrot.slane %v2480, 2
      %v2589 = vrot.slane %v2481, 2
      %v2590 = vsel %vm1188, %v2588, %v2589
      %v2591 = vrot.slane %v2482, 2
      %v2592 = vsel %vm1188, %v2589, %v2591
      %v2593 = vrot.slane %v2483, 2
      %v2594 = vrot.slane %v2484, 2
      %v2595 = vsel %vm1188, %v2593, %v2594
      %v2596 = vrot.slane %v2485, 2
      %v2597 = vsel %vm1188, %v2594, %v2596
      %v2598 = vrot.slane %v2486, 2
      %v2599 = vrot.slane %v2487, 2
      %v2600 = vsel %vm1188, %v2598, %v2599
      %v2601 = vrot.slane %v2488, 2
      %v2602 = vsel %vm1188, %v2599, %v2601
      %v2603 = vrot.slane %v2489, 2
      %v2604 = vrot.slane %v2490, 2
      %v2605 = vsel %vm1188, %v2603, %v2604
      %v2606 = vrot.slane %v2491, 2
      %v2607 = vsel %vm1188, %v2604, %v2606
      %v2608 = vrot.slane %v2492, 2
      %v2609 = vrot.slane %v2493, 2
      %v2610 = vsel %vm1188, %v2608, %v2609
      %v2611 = vrot.slane %v2494, 2
      %v2612 = vsel %vm1188, %v2609, %v2611
      %v2613 = vrot.slane %v2495, 2
      %v2614 = vrot.slane %v2496, 2
      %v2615 = vsel %vm1188, %v2613, %v2614
      %v2616 = vrot.slane %v2497, 2
      %v2617 = vsel %vm1188, %v2614, %v2616
      %v2618 = vrot.slane %v2498, 2
      %v2619 = vrot.slane %v2499, 2
      %v2620 = vsel %vm1188, %v2618, %v2619
      %v2621 = vrot.slane %v2500, 2
      %v2622 = vsel %vm1188, %v2619, %v2621
      %v2623 = vrot.slane %v2501, 2
      %v2624 = vrot.slane %v2502, 2
      %v2625 = vsel %vm1188, %v2623, %v2624
      %v2626 = vrot.slane %v2503, 2
      %v2627 = vsel %vm1188, %v2624, %v2626
      %v2628 = vrot.slane %v2504, 2
      %v2629 = vrot.slane %v2505, 2
      %v2630 = vsel %vm1188, %v2628, %v2629
      %v2631 = vrot.slane %v2506, 2
      %v2632 = vsel %vm1188, %v2629, %v2631
      %v2633 = vrot.slane %v2507, 2
      %v2634 = vrot.slane %v2508, 2
      %v2635 = vsel %vm1188, %v2633, %v2634
      %v2636 = vrot.slane %v2509, 2
      %v2637 = vsel %vm1188, %v2634, %v2636
      %v2670 = vadd.f32 %v2394, %v2560
      %v2671 = vadd.f32 %v2395, %v2562
      %v2672 = vadd.f32 %v2396, %v2565
      %v2673 = vadd.f32 %v2397, %v2567
      %v2674 = vadd.f32 %v2398, %v2570
      %v2675 = vadd.f32 %v2399, %v2572
      %v2676 = vadd.f32 %v2400, %v2575
      %v2677 = vadd.f32 %v2401, %v2577
      %v2678 = vadd.f32 %v2402, %v2580
      %v2679 = vadd.f32 %v2403, %v2582
      %v2680 = vadd.f32 %v2404, %v2585
      %v2681 = vadd.f32 %v2405, %v2587
      %v2682 = vadd.f32 %v2406, %v2590
      %v2683 = vadd.f32 %v2407, %v2592
      %v2684 = vadd.f32 %v2408, %v2595
      %v2685 = vadd.f32 %v2409, %v2597
      %v2686 = vadd.f32 %v2410, %v2600
      %v2687 = vadd.f32 %v2411, %v2602
      %v2688 = vadd.f32 %v2412, %v2605
      %v2689 = vadd.f32 %v2413, %v2607
      %v2690 = vadd.f32 %v2414, %v2610
      %v2691 = vadd.f32 %v2415, %v2612
      %v2692 = vadd.f32 %v2416, %v2615
      %v2693 = vadd.f32 %v2417, %v2617
      %v2694 = vadd.f32 %v2418, %v2620
      %v2695 = vadd.f32 %v2419, %v2622
      %v2696 = vadd.f32 %v2420, %v2625
      %v2697 = vadd.f32 %v2421, %v2627
      %v2698 = vadd.f32 %v2422, %v2630
      %v2699 = vadd.f32 %v2423, %v2632
      %v2700 = vadd.f32 %v2424, %v2635
      %v2701 = vadd.f32 %v2425, %v2637
      %v2703 = vlaneseq
      %v2704 = vshrl.u32 %v2703, 7
      %v2705 = vsub.s32 0, %v2704
      %v2706 = vrot.slane %v209, %v2705
      %v2708 = vadd.f32 %v2670, %v2706
      %v2709 = vadd.f32 %v2671, %v2706
      %v2710 = vadd.f32 %v2672, %v2706
      %v2711 = vadd.f32 %v2673, %v2706
      %v2712 = vadd.f32 %v2674, %v2706
      %v2713 = vadd.f32 %v2675, %v2706
      %v2714 = vadd.f32 %v2676, %v2706
      %v2715 = vadd.f32 %v2677, %v2706
      %v2716 = vadd.f32 %v2678, %v2706
      %v2717 = vadd.f32 %v2679, %v2706
      %v2718 = vadd.f32 %v2680, %v2706
      %v2719 = vadd.f32 %v2681, %v2706
      %v2720 = vadd.f32 %v2682, %v2706
      %v2721 = vadd.f32 %v2683, %v2706
      %v2722 = vadd.f32 %v2684, %v2706
      %v2723 = vadd.f32 %v2685, %v2706
      %v2724 = vadd.f32 %v2686, %v2706
      %v2725 = vadd.f32 %v2687, %v2706
      %v2726 = vadd.f32 %v2688, %v2706
      %v2727 = vadd.f32 %v2689, %v2706
      %v2728 = vadd.f32 %v2690, %v2706
      %v2729 = vadd.f32 %v2691, %v2706
      %v2730 = vadd.f32 %v2692, %v2706
      %v2731 = vadd.f32 %v2693, %v2706
      %v2732 = vadd.f32 %v2694, %v2706
      %v2733 = vadd.f32 %v2695, %v2706
      %v2734 = vadd.f32 %v2696, %v2706
      %v2735 = vadd.f32 %v2697, %v2706
      %v2736 = vadd.f32 %v2698, %v2706
      %v2737 = vadd.f32 %v2699, %v2706
      %v2738 = vadd.f32 %v2700, %v2706
      %v2739 = vadd.f32 %v2701, %v2706
      %v2740 = vmax.f32 %v2708, 0.0
      %v2741 = vmax.f32 %v2709, 0.0
      %v2742 = vmax.f32 %v2710, 0.0
      %v2743 = vmax.f32 %v2711, 0.0
      %v2744 = vmax.f32 %v2712, 0.0
      %v2745 = vmax.f32 %v2713, 0.0
      %v2746 = vmax.f32 %v2714, 0.0
      %v2747 = vmax.f32 %v2715, 0.0
      %v2748 = vmax.f32 %v2716, 0.0
      %v2749 = vmax.f32 %v2717, 0.0
      %v2750 = vmax.f32 %v2718, 0.0
      %v2751 = vmax.f32 %v2719, 0.0
      %v2752 = vmax.f32 %v2720, 0.0
      %v2753 = vmax.f32 %v2721, 0.0
      %v2754 = vmax.f32 %v2722, 0.0
      %v2755 = vmax.f32 %v2723, 0.0
      %v2756 = vmax.f32 %v2724, 0.0
      %v2757 = vmax.f32 %v2725, 0.0
      %v2758 = vmax.f32 %v2726, 0.0
      %v2759 = vmax.f32 %v2727, 0.0
      %v2760 = vmax.f32 %v2728, 0.0
      %v2761 = vmax.f32 %v2729, 0.0
      %v2762 = vmax.f32 %v2730, 0.0
      %v2763 = vmax.f32 %v2731, 0.0
      %v2764 = vmax.f32 %v2732, 0.0
      %v2765 = vmax.f32 %v2733, 0.0
      %v2766 = vmax.f32 %v2734, 0.0
      %v2767 = vmax.f32 %v2735, 0.0
      %v2768 = vmax.f32 %v2736, 0.0
      %v2769 = vmax.f32 %v2737, 0.0
      %v2770 = vmax.f32 %v2738, 0.0
      %v2771 = vmax.f32 %v2739, 0.0
      %v2772 = vpack.c.bf16 %v2741, %v2740
      %v2773 = vpack.c.bf16 %v2743, %v2742
      %v2774 = vpack.c.bf16 %v2745, %v2744
      %v2775 = vpack.c.bf16 %v2747, %v2746
      %v2776 = vpack.c.bf16 %v2749, %v2748
      %v2777 = vpack.c.bf16 %v2751, %v2750
      %v2778 = vpack.c.bf16 %v2753, %v2752
      %v2779 = vpack.c.bf16 %v2755, %v2754
      %v2780 = vpack.c.bf16 %v2757, %v2756
      %v2781 = vpack.c.bf16 %v2759, %v2758
      %v2782 = vpack.c.bf16 %v2761, %v2760
      %v2783 = vpack.c.bf16 %v2763, %v2762
      %v2784 = vpack.c.bf16 %v2765, %v2764
      %v2785 = vpack.c.bf16 %v2767, %v2766
      %v2786 = vpack.c.bf16 %v2769, %v2768
      %v2787 = vpack.c.bf16 %v2771, %v2770
      %2788 = vst [vmem:[#allocation3] sm:$0xff] %v2772
      %2789 = vst [vmem:[#allocation3 + $0x8] sm:$0xff] %v2773
      %2790 = vst [vmem:[#allocation3 + $0x10] sm:$0xff] %v2774
      %2791 = vst [vmem:[#allocation3 + $0x18] sm:$0xff] %v2775
      %2792 = vst [vmem:[#allocation3 + $0x20] sm:$0xff] %v2776
      %2793 = vst [vmem:[#allocation3 + $0x28] sm:$0xff] %v2777
      %2794 = vst [vmem:[#allocation3 + $0x30] sm:$0xff] %v2778
      %2795 = vst [vmem:[#allocation3 + $0x38] sm:$0xff] %v2779
      %2796 = vst [vmem:[#allocation3 + $0x40] sm:$0xff] %v2780
      %2797 = vst [vmem:[#allocation3 + $0x48] sm:$0xff] %v2781
      %2798 = vst [vmem:[#allocation3 + $0x50] sm:$0xff] %v2782
      %2799 = vst [vmem:[#allocation3 + $0x58] sm:$0xff] %v2783
      %2800 = vst [vmem:[#allocation3 + $0x60] sm:$0xff] %v2784
      %2801 = vst [vmem:[#allocation3 + $0x68] sm:$0xff] %v2785
      %2802 = vst [vmem:[#allocation3 + $0x70] sm:$0xff] %v2786
      %2803 = vst [vmem:[#allocation3 + $0x78] sm:$0xff] %v2787
      %s2804 = scalar_lea.vmem [#allocation4], 128
      %v2805 = vld [vmem:[%s2804] sm:$0xf]
      %v2806 = vld [vmem:[%s2804 + $0x4] sm:$0xf]
      %v2807 = vld [vmem:[%s2804 + $0x8] sm:$0xf]
      %v2808 = vld [vmem:[%s2804 + $0xc] sm:$0xf]
      %v2809 = vld [vmem:[%s2804 + $0x10] sm:$0xf]
      %v2810 = vld [vmem:[%s2804 + $0x14] sm:$0xf]
      %v2811 = vld [vmem:[%s2804 + $0x18] sm:$0xf]
      %v2812 = vld [vmem:[%s2804 + $0x1c] sm:$0xf]
      %v2813 = vld [vmem:[%s2804 + $0x20] sm:$0xf]
      %v2814 = vld [vmem:[%s2804 + $0x24] sm:$0xf]
      %v2815 = vld [vmem:[%s2804 + $0x28] sm:$0xf]
      %v2816 = vld [vmem:[%s2804 + $0x2c] sm:$0xf]
      %v2817 = vld [vmem:[%s2804 + $0x30] sm:$0xf]
      %v2818 = vld [vmem:[%s2804 + $0x34] sm:$0xf]
      %v2819 = vld [vmem:[%s2804 + $0x38] sm:$0xf]
      %v2820 = vld [vmem:[%s2804 + $0x3c] sm:$0xf]
      %v2821 = vld [vmem:[%s2804 + $0x40] sm:$0xf]
      %v2822 = vld [vmem:[%s2804 + $0x44] sm:$0xf]
      %v2823 = vld [vmem:[%s2804 + $0x48] sm:$0xf]
      %v2824 = vld [vmem:[%s2804 + $0x4c] sm:$0xf]
      %v2825 = vld [vmem:[%s2804 + $0x50] sm:$0xf]
      %v2826 = vld [vmem:[%s2804 + $0x54] sm:$0xf]
      %v2827 = vld [vmem:[%s2804 + $0x58] sm:$0xf]
      %v2828 = vld [vmem:[%s2804 + $0x5c] sm:$0xf]
      %v2829 = vld [vmem:[%s2804 + $0x60] sm:$0xf]
      %v2830 = vld [vmem:[%s2804 + $0x64] sm:$0xf]
      %v2831 = vld [vmem:[%s2804 + $0x68] sm:$0xf]
      %v2832 = vld [vmem:[%s2804 + $0x6c] sm:$0xf]
      %v2833 = vld [vmem:[%s2804 + $0x70] sm:$0xf]
      %v2834 = vld [vmem:[%s2804 + $0x74] sm:$0xf]
      %v2835 = vld [vmem:[%s2804 + $0x78] sm:$0xf]
      %v2836 = vld [vmem:[%s2804 + $0x7c] sm:$0xf]
      %v2838 = vshrl.u32 %v2805, 16
      %v2840 = vrot.slane %v2838, 7
      %v2841 = vshll.u32 %v2805, 16
      %v2843 = vor.u32 %v2840, %v2841
      %v2844 = vrot.slane %v2840, 4
      %v2846 = vshrl.u32 %v2806, 16
      %v2848 = vrot.slane %v2846, 7
      %v2849 = vshll.u32 %v2806, 16
      %v2851 = vor.u32 %v2848, %v2849
      %v2852 = vsel %vm243, %v2844, %v2851
      %v2853 = vrot.slane %v2848, 4
      %v2855 = vshrl.u32 %v2807, 16
      %v2857 = vrot.slane %v2855, 7
      %v2858 = vshll.u32 %v2807, 16
      %v2860 = vor.u32 %v2857, %v2858
      %v2861 = vrot.slane %v2857, 4
      %v2863 = vshrl.u32 %v2808, 16
      %v2865 = vrot.slane %v2863, 7
      %v2866 = vshll.u32 %v2808, 16
      %v2868 = vor.u32 %v2865, %v2866
      %v2869 = vsel %vm243, %v2861, %v2868
      %v2870 = vrot.slane %v2865, 4
      %v2872 = vshrl.u32 %v2809, 16
      %v2874 = vrot.slane %v2872, 7
      %v2875 = vshll.u32 %v2809, 16
      %v2877 = vor.u32 %v2874, %v2875
      %v2878 = vrot.slane %v2874, 4
      %v2880 = vshrl.u32 %v2810, 16
      %v2882 = vrot.slane %v2880, 7
      %v2883 = vshll.u32 %v2810, 16
      %v2885 = vor.u32 %v2882, %v2883
      %v2886 = vsel %vm243, %v2878, %v2885
      %v2887 = vrot.slane %v2882, 4
      %v2889 = vshrl.u32 %v2811, 16
      %v2891 = vrot.slane %v2889, 7
      %v2892 = vshll.u32 %v2811, 16
      %v2894 = vor.u32 %v2891, %v2892
      %v2895 = vrot.slane %v2891, 4
      %v2897 = vshrl.u32 %v2812, 16
      %v2899 = vrot.slane %v2897, 7
      %v2900 = vshll.u32 %v2812, 16
      %v2902 = vor.u32 %v2899, %v2900
      %v2903 = vsel %vm243, %v2895, %v2902
      %v2904 = vrot.slane %v2899, 4
      %v2906 = vshrl.u32 %v2813, 16
      %v2908 = vrot.slane %v2906, 7
      %v2909 = vshll.u32 %v2813, 16
      %v2911 = vor.u32 %v2908, %v2909
      %v2912 = vrot.slane %v2908, 4
      %v2914 = vshrl.u32 %v2814, 16
      %v2916 = vrot.slane %v2914, 7
      %v2917 = vshll.u32 %v2814, 16
      %v2919 = vor.u32 %v2916, %v2917
      %v2920 = vsel %vm243, %v2912, %v2919
      %v2921 = vrot.slane %v2916, 4
      %v2923 = vshrl.u32 %v2815, 16
      %v2925 = vrot.slane %v2923, 7
      %v2926 = vshll.u32 %v2815, 16
      %v2928 = vor.u32 %v2925, %v2926
      %v2929 = vrot.slane %v2925, 4
      %v2931 = vshrl.u32 %v2816, 16
      %v2933 = vrot.slane %v2931, 7
      %v2934 = vshll.u32 %v2816, 16
      %v2936 = vor.u32 %v2933, %v2934
      %v2937 = vsel %vm243, %v2929, %v2936
      %v2938 = vrot.slane %v2933, 4
      %v2940 = vshrl.u32 %v2817, 16
      %v2942 = vrot.slane %v2940, 7
      %v2943 = vshll.u32 %v2817, 16
      %v2945 = vor.u32 %v2942, %v2943
      %v2946 = vrot.slane %v2942, 4
      %v2948 = vshrl.u32 %v2818, 16
      %v2950 = vrot.slane %v2948, 7
      %v2951 = vshll.u32 %v2818, 16
      %v2953 = vor.u32 %v2950, %v2951
      %v2954 = vsel %vm243, %v2946, %v2953
      %v2955 = vrot.slane %v2950, 4
      %v2957 = vshrl.u32 %v2819, 16
      %v2959 = vrot.slane %v2957, 7
      %v2960 = vshll.u32 %v2819, 16
      %v2962 = vor.u32 %v2959, %v2960
      %v2963 = vrot.slane %v2959, 4
      %v2965 = vshrl.u32 %v2820, 16
      %v2967 = vrot.slane %v2965, 7
      %v2968 = vshll.u32 %v2820, 16
      %v2970 = vor.u32 %v2967, %v2968
      %v2971 = vsel %vm243, %v2963, %v2970
      %v2972 = vrot.slane %v2967, 4
      %v2974 = vshrl.u32 %v2821, 16
      %v2976 = vrot.slane %v2974, 7
      %v2977 = vshll.u32 %v2821, 16
      %v2979 = vor.u32 %v2976, %v2977
      %v2980 = vrot.slane %v2976, 4
      %v2982 = vshrl.u32 %v2822, 16
      %v2984 = vrot.slane %v2982, 7
      %v2985 = vshll.u32 %v2822, 16
      %v2987 = vor.u32 %v2984, %v2985
      %v2988 = vsel %vm243, %v2980, %v2987
      %v2989 = vrot.slane %v2984, 4
      %v2991 = vshrl.u32 %v2823, 16
      %v2993 = vrot.slane %v2991, 7
      %v2994 = vshll.u32 %v2823, 16
      %v2996 = vor.u32 %v2993, %v2994
      %v2997 = vrot.slane %v2993, 4
      %v2999 = vshrl.u32 %v2824, 16
      %v3001 = vrot.slane %v2999, 7
      %v3002 = vshll.u32 %v2824, 16
      %v3004 = vor.u32 %v3001, %v3002
      %v3005 = vsel %vm243, %v2997, %v3004
      %v3006 = vrot.slane %v3001, 4
      %v3008 = vshrl.u32 %v2825, 16
      %v3010 = vrot.slane %v3008, 7
      %v3011 = vshll.u32 %v2825, 16
      %v3013 = vor.u32 %v3010, %v3011
      %v3014 = vrot.slane %v3010, 4
      %v3016 = vshrl.u32 %v2826, 16
      %v3018 = vrot.slane %v3016, 7
      %v3019 = vshll.u32 %v2826, 16
      %v3021 = vor.u32 %v3018, %v3019
      %v3022 = vsel %vm243, %v3014, %v3021
      %v3023 = vrot.slane %v3018, 4
      %v3025 = vshrl.u32 %v2827, 16
      %v3027 = vrot.slane %v3025, 7
      %v3028 = vshll.u32 %v2827, 16
      %v3030 = vor.u32 %v3027, %v3028
      %v3031 = vrot.slane %v3027, 4
      %v3033 = vshrl.u32 %v2828, 16
      %v3035 = vrot.slane %v3033, 7
      %v3036 = vshll.u32 %v2828, 16
      %v3038 = vor.u32 %v3035, %v3036
      %v3039 = vsel %vm243, %v3031, %v3038
      %v3040 = vrot.slane %v3035, 4
      %v3042 = vshrl.u32 %v2829, 16
      %v3044 = vrot.slane %v3042, 7
      %v3045 = vshll.u32 %v2829, 16
      %v3047 = vor.u32 %v3044, %v3045
      %v3048 = vrot.slane %v3044, 4
      %v3050 = vshrl.u32 %v2830, 16
      %v3052 = vrot.slane %v3050, 7
      %v3053 = vshll.u32 %v2830, 16
      %v3055 = vor.u32 %v3052, %v3053
      %v3056 = vsel %vm243, %v3048, %v3055
      %v3057 = vrot.slane %v3052, 4
      %v3059 = vshrl.u32 %v2831, 16
      %v3061 = vrot.slane %v3059, 7
      %v3062 = vshll.u32 %v2831, 16
      %v3064 = vor.u32 %v3061, %v3062
      %v3065 = vrot.slane %v3061, 4
      %v3067 = vshrl.u32 %v2832, 16
      %v3069 = vrot.slane %v3067, 7
      %v3070 = vshll.u32 %v2832, 16
      %v3072 = vor.u32 %v3069, %v3070
      %v3073 = vsel %vm243, %v3065, %v3072
      %v3074 = vrot.slane %v3069, 4
      %v3076 = vshrl.u32 %v2833, 16
      %v3078 = vrot.slane %v3076, 7
      %v3079 = vshll.u32 %v2833, 16
      %v3081 = vor.u32 %v3078, %v3079
      %v3082 = vrot.slane %v3078, 4
      %v3084 = vshrl.u32 %v2834, 16
      %v3086 = vrot.slane %v3084, 7
      %v3087 = vshll.u32 %v2834, 16
      %v3089 = vor.u32 %v3086, %v3087
      %v3090 = vsel %vm243, %v3082, %v3089
      %v3091 = vrot.slane %v3086, 4
      %v3093 = vshrl.u32 %v2835, 16
      %v3095 = vrot.slane %v3093, 7
      %v3096 = vshll.u32 %v2835, 16
      %v3098 = vor.u32 %v3095, %v3096
      %v3099 = vrot.slane %v3095, 4
      %v3101 = vshrl.u32 %v2836, 16
      %v3103 = vrot.slane %v3101, 7
      %v3104 = vshll.u32 %v2836, 16
      %v3106 = vor.u32 %v3103, %v3104
      %v3107 = vsel %vm243, %v3099, %v3106
      %v3108 = vrot.slane %v3103, 4
      %v3157 = vld [vmem:[%s564] sm:$0xf]
      %v3158 = vsel %vm566, %v2843, %v3157
      %3159 = vst [vmem:[%s564] sm:$0xf] %v3158
      %3160 = vst [vmem:[%s564 + $0x4] sm:$0xf] %v2852
      %v3161 = vld [vmem:[%s564 + $0x8] sm:$0x1]
      %v3162 = vsel %vm95, %v2853, %v3161
      %3163 = vst [vmem:[%s564 + $0x8] sm:$0x1] %v3162
      %v3164 = vld [vmem:[%s564 + $0xc] sm:$0xf]
      %v3165 = vsel %vm566, %v2860, %v3164
      %3166 = vst [vmem:[%s564 + $0xc] sm:$0xf] %v3165
      %3167 = vst [vmem:[%s564 + $0x10] sm:$0xf] %v2869
      %v3168 = vld [vmem:[%s564 + $0x14] sm:$0x1]
      %v3169 = vsel %vm95, %v2870, %v3168
      %3170 = vst [vmem:[%s564 + $0x14] sm:$0x1] %v3169
      %v3171 = vld [vmem:[%s564 + $0x18] sm:$0xf]
      %v3172 = vsel %vm566, %v2877, %v3171
      %3173 = vst [vmem:[%s564 + $0x18] sm:$0xf] %v3172
      %3174 = vst [vmem:[%s564 + $0x1c] sm:$0xf] %v2886
      %v3175 = vld [vmem:[%s564 + $0x20] sm:$0x1]
      %v3176 = vsel %vm95, %v2887, %v3175
      %3177 = vst [vmem:[%s564 + $0x20] sm:$0x1] %v3176
      %v3178 = vld [vmem:[%s564 + $0x24] sm:$0xf]
      %v3179 = vsel %vm566, %v2894, %v3178
      %3180 = vst [vmem:[%s564 + $0x24] sm:$0xf] %v3179
      %3181 = vst [vmem:[%s564 + $0x28] sm:$0xf] %v2903
      %v3182 = vld [vmem:[%s564 + $0x2c] sm:$0x1]
      %v3183 = vsel %vm95, %v2904, %v3182
      %3184 = vst [vmem:[%s564 + $0x2c] sm:$0x1] %v3183
      %v3185 = vld [vmem:[%s564 + $0x30] sm:$0xf]
      %v3186 = vsel %vm566, %v2911, %v3185
      %3187 = vst [vmem:[%s564 + $0x30] sm:$0xf] %v3186
      %3188 = vst [vmem:[%s564 + $0x34] sm:$0xf] %v2920
      %v3189 = vld [vmem:[%s564 + $0x38] sm:$0x1]
      %v3190 = vsel %vm95, %v2921, %v3189
      %3191 = vst [vmem:[%s564 + $0x38] sm:$0x1] %v3190
      %v3192 = vld [vmem:[%s564 + $0x3c] sm:$0xf]
      %v3193 = vsel %vm566, %v2928, %v3192
      %3194 = vst [vmem:[%s564 + $0x3c] sm:$0xf] %v3193
      %3195 = vst [vmem:[%s564 + $0x40] sm:$0xf] %v2937
      %v3196 = vld [vmem:[%s564 + $0x44] sm:$0x1]
      %v3197 = vsel %vm95, %v2938, %v3196
      %3198 = vst [vmem:[%s564 + $0x44] sm:$0x1] %v3197
      %v3199 = vld [vmem:[%s564 + $0x48] sm:$0xf]
      %v3200 = vsel %vm566, %v2945, %v3199
      %3201 = vst [vmem:[%s564 + $0x48] sm:$0xf] %v3200
      %3202 = vst [vmem:[%s564 + $0x4c] sm:$0xf] %v2954
      %v3203 = vld [vmem:[%s564 + $0x50] sm:$0x1]
      %v3204 = vsel %vm95, %v2955, %v3203
      %3205 = vst [vmem:[%s564 + $0x50] sm:$0x1] %v3204
      %v3206 = vld [vmem:[%s564 + $0x54] sm:$0xf]
      %v3207 = vsel %vm566, %v2962, %v3206
      %3208 = vst [vmem:[%s564 + $0x54] sm:$0xf] %v3207
      %3209 = vst [vmem:[%s564 + $0x58] sm:$0xf] %v2971
      %v3210 = vld [vmem:[%s564 + $0x5c] sm:$0x1]
      %v3211 = vsel %vm95, %v2972, %v3210
      %3212 = vst [vmem:[%s564 + $0x5c] sm:$0x1] %v3211
      %v3213 = vld [vmem:[%s564 + $0x60] sm:$0xf]
      %v3214 = vsel %vm566, %v2979, %v3213
      %3215 = vst [vmem:[%s564 + $0x60] sm:$0xf] %v3214
      %3216 = vst [vmem:[%s564 + $0x64] sm:$0xf] %v2988
      %v3217 = vld [vmem:[%s564 + $0x68] sm:$0x1]
      %v3218 = vsel %vm95, %v2989, %v3217
      %3219 = vst [vmem:[%s564 + $0x68] sm:$0x1] %v3218
      %v3220 = vld [vmem:[%s564 + $0x6c] sm:$0xf]
      %v3221 = vsel %vm566, %v2996, %v3220
      %3222 = vst [vmem:[%s564 + $0x6c] sm:$0xf] %v3221
      %3223 = vst [vmem:[%s564 + $0x70] sm:$0xf] %v3005
      %v3224 = vld [vmem:[%s564 + $0x74] sm:$0x1]
      %v3225 = vsel %vm95, %v3006, %v3224
      %3226 = vst [vmem:[%s564 + $0x74] sm:$0x1] %v3225
      %v3227 = vld [vmem:[%s564 + $0x78] sm:$0xf]
      %v3228 = vsel %vm566, %v3013, %v3227
      %3229 = vst [vmem:[%s564 + $0x78] sm:$0xf] %v3228
      %3230 = vst [vmem:[%s564 + $0x7c] sm:$0xf] %v3022
      %v3231 = vld [vmem:[%s564 + $0x80] sm:$0x1]
      %v3232 = vsel %vm95, %v3023, %v3231
      %3233 = vst [vmem:[%s564 + $0x80] sm:$0x1] %v3232
      %v3234 = vld [vmem:[%s564 + $0x84] sm:$0xf]
      %v3235 = vsel %vm566, %v3030, %v3234
      %3236 = vst [vmem:[%s564 + $0x84] sm:$0xf] %v3235
      %3237 = vst [vmem:[%s564 + $0x88] sm:$0xf] %v3039
      %v3238 = vld [vmem:[%s564 + $0x8c] sm:$0x1]
      %v3239 = vsel %vm95, %v3040, %v3238
      %3240 = vst [vmem:[%s564 + $0x8c] sm:$0x1] %v3239
      %v3241 = vld [vmem:[%s564 + $0x90] sm:$0xf]
      %v3242 = vsel %vm566, %v3047, %v3241
      %3243 = vst [vmem:[%s564 + $0x90] sm:$0xf] %v3242
      %3244 = vst [vmem:[%s564 + $0x94] sm:$0xf] %v3056
      %v3245 = vld [vmem:[%s564 + $0x98] sm:$0x1]
      %v3246 = vsel %vm95, %v3057, %v3245
      %3247 = vst [vmem:[%s564 + $0x98] sm:$0x1] %v3246
      %v3248 = vld [vmem:[%s564 + $0x9c] sm:$0xf]
      %v3249 = vsel %vm566, %v3064, %v3248
      %3250 = vst [vmem:[%s564 + $0x9c] sm:$0xf] %v3249
      %3251 = vst [vmem:[%s564 + $0xa0] sm:$0xf] %v3073
      %v3252 = vld [vmem:[%s564 + $0xa4] sm:$0x1]
      %v3253 = vsel %vm95, %v3074, %v3252
      %3254 = vst [vmem:[%s564 + $0xa4] sm:$0x1] %v3253
      %v3255 = vld [vmem:[%s564 + $0xa8] sm:$0xf]
      %v3256 = vsel %vm566, %v3081, %v3255
      %3257 = vst [vmem:[%s564 + $0xa8] sm:$0xf] %v3256
      %3258 = vst [vmem:[%s564 + $0xac] sm:$0xf] %v3090
      %v3259 = vld [vmem:[%s564 + $0xb0] sm:$0x1]
      %v3260 = vsel %vm95, %v3091, %v3259
      %3261 = vst [vmem:[%s564 + $0xb0] sm:$0x1] %v3260
      %v3262 = vld [vmem:[%s564 + $0xb4] sm:$0xf]
      %v3263 = vsel %vm566, %v3098, %v3262
      %3264 = vst [vmem:[%s564 + $0xb4] sm:$0xf] %v3263
      %3265 = vst [vmem:[%s564 + $0xb8] sm:$0xf] %v3107
      %v3266 = vld [vmem:[%s564 + $0xbc] sm:$0x1]
      %v3267 = vsel %vm95, %v3108, %v3266
      %3268 = vst [vmem:[%s564 + $0xbc] sm:$0x1] %v3267
      %v3269 = vld [vmem:[#allocation2] sm:$0xf]
      %v3270 = vld [vmem:[#allocation2 + $0x4] sm:$0xf]
      %v3271 = vld [vmem:[#allocation2 + $0xc] sm:$0xf]
      %v3272 = vld [vmem:[#allocation2 + $0x10] sm:$0xf]
      %v3273 = vld [vmem:[#allocation2 + $0x18] sm:$0xf]
      %v3274 = vld [vmem:[#allocation2 + $0x1c] sm:$0xf]
      %v3275 = vld [vmem:[#allocation2 + $0x24] sm:$0xf]
      %v3276 = vld [vmem:[#allocation2 + $0x28] sm:$0xf]
      %v3277 = vld [vmem:[#allocation2 + $0x30] sm:$0xf]
      %v3278 = vld [vmem:[#allocation2 + $0x34] sm:$0xf]
      %v3279 = vld [vmem:[#allocation2 + $0x3c] sm:$0xf]
      %v3280 = vld [vmem:[#allocation2 + $0x40] sm:$0xf]
      %v3281 = vld [vmem:[#allocation2 + $0x48] sm:$0xf]
      %v3282 = vld [vmem:[#allocation2 + $0x4c] sm:$0xf]
      %v3283 = vld [vmem:[#allocation2 + $0x54] sm:$0xf]
      %v3284 = vld [vmem:[#allocation2 + $0x58] sm:$0xf]
      %v3285 = vld [vmem:[#allocation2 + $0x60] sm:$0xf]
      %v3286 = vld [vmem:[#allocation2 + $0x64] sm:$0xf]
      %v3287 = vld [vmem:[#allocation2 + $0x6c] sm:$0xf]
      %v3288 = vld [vmem:[#allocation2 + $0x70] sm:$0xf]
      %v3289 = vld [vmem:[#allocation2 + $0x78] sm:$0xf]
      %v3290 = vld [vmem:[#allocation2 + $0x7c] sm:$0xf]
      %v3291 = vld [vmem:[#allocation2 + $0x84] sm:$0xf]
      %v3292 = vld [vmem:[#allocation2 + $0x88] sm:$0xf]
      %v3293 = vld [vmem:[#allocation2 + $0x90] sm:$0xf]
      %v3294 = vld [vmem:[#allocation2 + $0x94] sm:$0xf]
      %v3295 = vld [vmem:[#allocation2 + $0x9c] sm:$0xf]
      %v3296 = vld [vmem:[#allocation2 + $0xa0] sm:$0xf]
      %v3297 = vld [vmem:[#allocation2 + $0xa8] sm:$0xf]
      %v3298 = vld [vmem:[#allocation2 + $0xac] sm:$0xf]
      %v3299 = vld [vmem:[#allocation2 + $0xb4] sm:$0xf]
      %v3300 = vld [vmem:[#allocation2 + $0xb8] sm:$0xf]
      %v3301 = vunpack.c.l.bf16 %v3269
      %v3302 = vunpack.c.l.bf16 %v3270
      %v3303 = vunpack.c.l.bf16 %v3271
      %v3304 = vunpack.c.l.bf16 %v3272
      %v3305 = vunpack.c.l.bf16 %v3273
      %v3306 = vunpack.c.l.bf16 %v3274
      %v3307 = vunpack.c.l.bf16 %v3275
      %v3308 = vunpack.c.l.bf16 %v3276
      %v3309 = vunpack.c.l.bf16 %v3277
      %v3310 = vunpack.c.l.bf16 %v3278
      %v3311 = vunpack.c.l.bf16 %v3279
      %v3312 = vunpack.c.l.bf16 %v3280
      %v3313 = vunpack.c.l.bf16 %v3281
      %v3314 = vunpack.c.l.bf16 %v3282
      %v3315 = vunpack.c.l.bf16 %v3283
      %v3316 = vunpack.c.l.bf16 %v3284
      %v3317 = vunpack.c.l.bf16 %v3285
      %v3318 = vunpack.c.l.bf16 %v3286
      %v3319 = vunpack.c.l.bf16 %v3287
      %v3320 = vunpack.c.l.bf16 %v3288
      %v3321 = vunpack.c.l.bf16 %v3289
      %v3322 = vunpack.c.l.bf16 %v3290
      %v3323 = vunpack.c.l.bf16 %v3291
      %v3324 = vunpack.c.l.bf16 %v3292
      %v3325 = vunpack.c.l.bf16 %v3293
      %v3326 = vunpack.c.l.bf16 %v3294
      %v3327 = vunpack.c.l.bf16 %v3295
      %v3328 = vunpack.c.l.bf16 %v3296
      %v3329 = vunpack.c.l.bf16 %v3297
      %v3330 = vunpack.c.l.bf16 %v3298
      %v3331 = vunpack.c.l.bf16 %v3299
      %v3332 = vunpack.c.l.bf16 %v3300
      %v3333 = vmul.f32 %v3301, %v746
      %v3334 = vmul.f32 %v3302, %v746
      %v3335 = vmul.f32 %v3303, %v746
      %v3336 = vmul.f32 %v3304, %v746
      %v3337 = vmul.f32 %v3305, %v746
      %v3338 = vmul.f32 %v3306, %v746
      %v3339 = vmul.f32 %v3307, %v746
      %v3340 = vmul.f32 %v3308, %v746
      %v3341 = vmul.f32 %v3309, %v746
      %v3342 = vmul.f32 %v3310, %v746
      %v3343 = vmul.f32 %v3311, %v746
      %v3344 = vmul.f32 %v3312, %v746
      %v3345 = vmul.f32 %v3313, %v746
      %v3346 = vmul.f32 %v3314, %v746
      %v3347 = vmul.f32 %v3315, %v746
      %v3348 = vmul.f32 %v3316, %v746
      %v3349 = vmul.f32 %v3317, %v746
      %v3350 = vmul.f32 %v3318, %v746
      %v3351 = vmul.f32 %v3319, %v746
      %v3352 = vmul.f32 %v3320, %v746
      %v3353 = vmul.f32 %v3321, %v746
      %v3354 = vmul.f32 %v3322, %v746
      %v3355 = vmul.f32 %v3323, %v746
      %v3356 = vmul.f32 %v3324, %v746
      %v3357 = vmul.f32 %v3325, %v746
      %v3358 = vmul.f32 %v3326, %v746
      %v3359 = vmul.f32 %v3327, %v746
      %v3360 = vmul.f32 %v3328, %v746
      %v3361 = vmul.f32 %v3329, %v746
      %v3362 = vmul.f32 %v3330, %v746
      %v3363 = vmul.f32 %v3331, %v746
      %v3364 = vmul.f32 %v3332, %v746
      %v3365 = vld [vmem:[#allocation2 + $0x8] sm:$0x1]
      %v3366 = vld [vmem:[#allocation2 + $0x14] sm:$0x1]
      %v3367 = vld [vmem:[#allocation2 + $0x20] sm:$0x1]
      %v3368 = vld [vmem:[#allocation2 + $0x2c] sm:$0x1]
      %v3369 = vld [vmem:[#allocation2 + $0x38] sm:$0x1]
      %v3370 = vld [vmem:[#allocation2 + $0x44] sm:$0x1]
      %v3371 = vld [vmem:[#allocation2 + $0x50] sm:$0x1]
      %v3372 = vld [vmem:[#allocation2 + $0x5c] sm:$0x1]
      %v3373 = vld [vmem:[#allocation2 + $0x68] sm:$0x1]
      %v3374 = vld [vmem:[#allocation2 + $0x74] sm:$0x1]
      %v3375 = vld [vmem:[#allocation2 + $0x80] sm:$0x1]
      %v3376 = vld [vmem:[#allocation2 + $0x8c] sm:$0x1]
      %v3377 = vld [vmem:[#allocation2 + $0x98] sm:$0x1]
      %v3378 = vld [vmem:[#allocation2 + $0xa4] sm:$0x1]
      %v3379 = vld [vmem:[#allocation2 + $0xb0] sm:$0x1]
      %v3380 = vld [vmem:[#allocation2 + $0xbc] sm:$0x1]
      %v3381 = vunpack.c.l.bf16 %v3365
      %v3382 = vunpack.c.l.bf16 %v3366
      %v3383 = vunpack.c.l.bf16 %v3367
      %v3384 = vunpack.c.l.bf16 %v3368
      %v3385 = vunpack.c.l.bf16 %v3369
      %v3386 = vunpack.c.l.bf16 %v3370
      %v3387 = vunpack.c.l.bf16 %v3371
      %v3388 = vunpack.c.l.bf16 %v3372
      %v3389 = vunpack.c.l.bf16 %v3373
      %v3390 = vunpack.c.l.bf16 %v3374
      %v3391 = vunpack.c.l.bf16 %v3375
      %v3392 = vunpack.c.l.bf16 %v3376
      %v3393 = vunpack.c.l.bf16 %v3377
      %v3394 = vunpack.c.l.bf16 %v3378
      %v3395 = vunpack.c.l.bf16 %v3379
      %v3396 = vunpack.c.l.bf16 %v3380
      %v3397 = vmul.f32 %v3301, %v814
      %v3398 = vmul.f32 %v3302, %v814
      %v3399 = vmul.f32 %v3381, %v814
      %v3400 = vmul.f32 %v3303, %v814
      %v3401 = vmul.f32 %v3304, %v814
      %v3402 = vmul.f32 %v3382, %v814
      %v3403 = vmul.f32 %v3305, %v814
      %v3404 = vmul.f32 %v3306, %v814
      %v3405 = vmul.f32 %v3383, %v814
      %v3406 = vmul.f32 %v3307, %v814
      %v3407 = vmul.f32 %v3308, %v814
      %v3408 = vmul.f32 %v3384, %v814
      %v3409 = vmul.f32 %v3309, %v814
      %v3410 = vmul.f32 %v3310, %v814
      %v3411 = vmul.f32 %v3385, %v814
      %v3412 = vmul.f32 %v3311, %v814
      %v3413 = vmul.f32 %v3312, %v814
      %v3414 = vmul.f32 %v3386, %v814
      %v3415 = vmul.f32 %v3313, %v814
      %v3416 = vmul.f32 %v3314, %v814
      %v3417 = vmul.f32 %v3387, %v814
      %v3418 = vmul.f32 %v3315, %v814
      %v3419 = vmul.f32 %v3316, %v814
      %v3420 = vmul.f32 %v3388, %v814
      %v3421 = vmul.f32 %v3317, %v814
      %v3422 = vmul.f32 %v3318, %v814
      %v3423 = vmul.f32 %v3389, %v814
      %v3424 = vmul.f32 %v3319, %v814
      %v3425 = vmul.f32 %v3320, %v814
      %v3426 = vmul.f32 %v3390, %v814
      %v3427 = vmul.f32 %v3321, %v814
      %v3428 = vmul.f32 %v3322, %v814
      %v3429 = vmul.f32 %v3391, %v814
      %v3430 = vmul.f32 %v3323, %v814
      %v3431 = vmul.f32 %v3324, %v814
      %v3432 = vmul.f32 %v3392, %v814
      %v3433 = vmul.f32 %v3325, %v814
      %v3434 = vmul.f32 %v3326, %v814
      %v3435 = vmul.f32 %v3393, %v814
      %v3436 = vmul.f32 %v3327, %v814
      %v3437 = vmul.f32 %v3328, %v814
      %v3438 = vmul.f32 %v3394, %v814
      %v3439 = vmul.f32 %v3329, %v814
      %v3440 = vmul.f32 %v3330, %v814
      %v3441 = vmul.f32 %v3395, %v814
      %v3442 = vmul.f32 %v3331, %v814
      %v3443 = vmul.f32 %v3332, %v814
      %v3444 = vmul.f32 %v3396, %v814
      %v3493 = vrot.slane %v3397, 1
      %v3494 = vrot.slane %v3398, 1
      %v3495 = vsel %vm911, %v3493, %v3494
      %v3496 = vrot.slane %v3399, 1
      %v3497 = vsel %vm911, %v3494, %v3496
      %v3498 = vrot.slane %v3400, 1
      %v3499 = vrot.slane %v3401, 1
      %v3500 = vsel %vm911, %v3498, %v3499
      %v3501 = vrot.slane %v3402, 1
      %v3502 = vsel %vm911, %v3499, %v3501
      %v3503 = vrot.slane %v3403, 1
      %v3504 = vrot.slane %v3404, 1
      %v3505 = vsel %vm911, %v3503, %v3504
      %v3506 = vrot.slane %v3405, 1
      %v3507 = vsel %vm911, %v3504, %v3506
      %v3508 = vrot.slane %v3406, 1
      %v3509 = vrot.slane %v3407, 1
      %v3510 = vsel %vm911, %v3508, %v3509
      %v3511 = vrot.slane %v3408, 1
      %v3512 = vsel %vm911, %v3509, %v3511
      %v3513 = vrot.slane %v3409, 1
      %v3514 = vrot.slane %v3410, 1
      %v3515 = vsel %vm911, %v3513, %v3514
      %v3516 = vrot.slane %v3411, 1
      %v3517 = vsel %vm911, %v3514, %v3516
      %v3518 = vrot.slane %v3412, 1
      %v3519 = vrot.slane %v3413, 1
      %v3520 = vsel %vm911, %v3518, %v3519
      %v3521 = vrot.slane %v3414, 1
      %v3522 = vsel %vm911, %v3519, %v3521
      %v3523 = vrot.slane %v3415, 1
      %v3524 = vrot.slane %v3416, 1
      %v3525 = vsel %vm911, %v3523, %v3524
      %v3526 = vrot.slane %v3417, 1
      %v3527 = vsel %vm911, %v3524, %v3526
      %v3528 = vrot.slane %v3418, 1
      %v3529 = vrot.slane %v3419, 1
      %v3530 = vsel %vm911, %v3528, %v3529
      %v3531 = vrot.slane %v3420, 1
      %v3532 = vsel %vm911, %v3529, %v3531
      %v3533 = vrot.slane %v3421, 1
      %v3534 = vrot.slane %v3422, 1
      %v3535 = vsel %vm911, %v3533, %v3534
      %v3536 = vrot.slane %v3423, 1
      %v3537 = vsel %vm911, %v3534, %v3536
      %v3538 = vrot.slane %v3424, 1
      %v3539 = vrot.slane %v3425, 1
      %v3540 = vsel %vm911, %v3538, %v3539
      %v3541 = vrot.slane %v3426, 1
      %v3542 = vsel %vm911, %v3539, %v3541
      %v3543 = vrot.slane %v3427, 1
      %v3544 = vrot.slane %v3428, 1
      %v3545 = vsel %vm911, %v3543, %v3544
      %v3546 = vrot.slane %v3429, 1
      %v3547 = vsel %vm911, %v3544, %v3546
      %v3548 = vrot.slane %v3430, 1
      %v3549 = vrot.slane %v3431, 1
      %v3550 = vsel %vm911, %v3548, %v3549
      %v3551 = vrot.slane %v3432, 1
      %v3552 = vsel %vm911, %v3549, %v3551
      %v3553 = vrot.slane %v3433, 1
      %v3554 = vrot.slane %v3434, 1
      %v3555 = vsel %vm911, %v3553, %v3554
      %v3556 = vrot.slane %v3435, 1
      %v3557 = vsel %vm911, %v3554, %v3556
      %v3558 = vrot.slane %v3436, 1
      %v3559 = vrot.slane %v3437, 1
      %v3560 = vsel %vm911, %v3558, %v3559
      %v3561 = vrot.slane %v3438, 1
      %v3562 = vsel %vm911, %v3559, %v3561
      %v3563 = vrot.slane %v3439, 1
      %v3564 = vrot.slane %v3440, 1
      %v3565 = vsel %vm911, %v3563, %v3564
      %v3566 = vrot.slane %v3441, 1
      %v3567 = vsel %vm911, %v3564, %v3566
      %v3568 = vrot.slane %v3442, 1
      %v3569 = vrot.slane %v3443, 1
      %v3570 = vsel %vm911, %v3568, %v3569
      %v3571 = vrot.slane %v3444, 1
      %v3572 = vsel %vm911, %v3569, %v3571
      %v3605 = vadd.f32 %v3333, %v3495
      %v3606 = vadd.f32 %v3334, %v3497
      %v3607 = vadd.f32 %v3335, %v3500
      %v3608 = vadd.f32 %v3336, %v3502
      %v3609 = vadd.f32 %v3337, %v3505
      %v3610 = vadd.f32 %v3338, %v3507
      %v3611 = vadd.f32 %v3339, %v3510
      %v3612 = vadd.f32 %v3340, %v3512
      %v3613 = vadd.f32 %v3341, %v3515
      %v3614 = vadd.f32 %v3342, %v3517
      %v3615 = vadd.f32 %v3343, %v3520
      %v3616 = vadd.f32 %v3344, %v3522
      %v3617 = vadd.f32 %v3345, %v3525
      %v3618 = vadd.f32 %v3346, %v3527
      %v3619 = vadd.f32 %v3347, %v3530
      %v3620 = vadd.f32 %v3348, %v3532
      %v3621 = vadd.f32 %v3349, %v3535
      %v3622 = vadd.f32 %v3350, %v3537
      %v3623 = vadd.f32 %v3351, %v3540
      %v3624 = vadd.f32 %v3352, %v3542
      %v3625 = vadd.f32 %v3353, %v3545
      %v3626 = vadd.f32 %v3354, %v3547
      %v3627 = vadd.f32 %v3355, %v3550
      %v3628 = vadd.f32 %v3356, %v3552
      %v3629 = vadd.f32 %v3357, %v3555
      %v3630 = vadd.f32 %v3358, %v3557
      %v3631 = vadd.f32 %v3359, %v3560
      %v3632 = vadd.f32 %v3360, %v3562
      %v3633 = vadd.f32 %v3361, %v3565
      %v3634 = vadd.f32 %v3362, %v3567
      %v3635 = vadd.f32 %v3363, %v3570
      %v3636 = vadd.f32 %v3364, %v3572
      %v3637 = vld [vmem:[#allocation2] sm:$0xe]
      %v3638 = vld [vmem:[#allocation2 + $0xc] sm:$0xe]
      %v3639 = vld [vmem:[#allocation2 + $0x18] sm:$0xe]
      %v3640 = vld [vmem:[#allocation2 + $0x24] sm:$0xe]
      %v3641 = vld [vmem:[#allocation2 + $0x30] sm:$0xe]
      %v3642 = vld [vmem:[#allocation2 + $0x3c] sm:$0xe]
      %v3643 = vld [vmem:[#allocation2 + $0x48] sm:$0xe]
      %v3644 = vld [vmem:[#allocation2 + $0x54] sm:$0xe]
      %v3645 = vld [vmem:[#allocation2 + $0x60] sm:$0xe]
      %v3646 = vld [vmem:[#allocation2 + $0x6c] sm:$0xe]
      %v3647 = vld [vmem:[#allocation2 + $0x78] sm:$0xe]
      %v3648 = vld [vmem:[#allocation2 + $0x84] sm:$0xe]
      %v3649 = vld [vmem:[#allocation2 + $0x90] sm:$0xe]
      %v3650 = vld [vmem:[#allocation2 + $0x9c] sm:$0xe]
      %v3651 = vld [vmem:[#allocation2 + $0xa8] sm:$0xe]
      %v3652 = vld [vmem:[#allocation2 + $0xb4] sm:$0xe]
      %v3653 = vunpack.c.l.bf16 %v3637
      %v3654 = vunpack.c.l.bf16 %v3638
      %v3655 = vunpack.c.l.bf16 %v3639
      %v3656 = vunpack.c.l.bf16 %v3640
      %v3657 = vunpack.c.l.bf16 %v3641
      %v3658 = vunpack.c.l.bf16 %v3642
      %v3659 = vunpack.c.l.bf16 %v3643
      %v3660 = vunpack.c.l.bf16 %v3644
      %v3661 = vunpack.c.l.bf16 %v3645
      %v3662 = vunpack.c.l.bf16 %v3646
      %v3663 = vunpack.c.l.bf16 %v3647
      %v3664 = vunpack.c.l.bf16 %v3648
      %v3665 = vunpack.c.l.bf16 %v3649
      %v3666 = vunpack.c.l.bf16 %v3650
      %v3667 = vunpack.c.l.bf16 %v3651
      %v3668 = vunpack.c.l.bf16 %v3652
      %v3669 = vmul.f32 %v3653, %v1091
      %v3670 = vmul.f32 %v3302, %v1091
      %v3671 = vmul.f32 %v3381, %v1091
      %v3672 = vmul.f32 %v3654, %v1091
      %v3673 = vmul.f32 %v3304, %v1091
      %v3674 = vmul.f32 %v3382, %v1091
      %v3675 = vmul.f32 %v3655, %v1091
      %v3676 = vmul.f32 %v3306, %v1091
      %v3677 = vmul.f32 %v3383, %v1091
      %v3678 = vmul.f32 %v3656, %v1091
      %v3679 = vmul.f32 %v3308, %v1091
      %v3680 = vmul.f32 %v3384, %v1091
      %v3681 = vmul.f32 %v3657, %v1091
      %v3682 = vmul.f32 %v3310, %v1091
      %v3683 = vmul.f32 %v3385, %v1091
      %v3684 = vmul.f32 %v3658, %v1091
      %v3685 = vmul.f32 %v3312, %v1091
      %v3686 = vmul.f32 %v3386, %v1091
      %v3687 = vmul.f32 %v3659, %v1091
      %v3688 = vmul.f32 %v3314, %v1091
      %v3689 = vmul.f32 %v3387, %v1091
      %v3690 = vmul.f32 %v3660, %v1091
      %v3691 = vmul.f32 %v3316, %v1091
      %v3692 = vmul.f32 %v3388, %v1091
      %v3693 = vmul.f32 %v3661, %v1091
      %v3694 = vmul.f32 %v3318, %v1091
      %v3695 = vmul.f32 %v3389, %v1091
      %v3696 = vmul.f32 %v3662, %v1091
      %v3697 = vmul.f32 %v3320, %v1091
      %v3698 = vmul.f32 %v3390, %v1091
      %v3699 = vmul.f32 %v3663, %v1091
      %v3700 = vmul.f32 %v3322, %v1091
      %v3701 = vmul.f32 %v3391, %v1091
      %v3702 = vmul.f32 %v3664, %v1091
      %v3703 = vmul.f32 %v3324, %v1091
      %v3704 = vmul.f32 %v3392, %v1091
      %v3705 = vmul.f32 %v3665, %v1091
      %v3706 = vmul.f32 %v3326, %v1091
      %v3707 = vmul.f32 %v3393, %v1091
      %v3708 = vmul.f32 %v3666, %v1091
      %v3709 = vmul.f32 %v3328, %v1091
      %v3710 = vmul.f32 %v3394, %v1091
      %v3711 = vmul.f32 %v3667, %v1091
      %v3712 = vmul.f32 %v3330, %v1091
      %v3713 = vmul.f32 %v3395, %v1091
      %v3714 = vmul.f32 %v3668, %v1091
      %v3715 = vmul.f32 %v3332, %v1091
      %v3716 = vmul.f32 %v3396, %v1091
      %v3765 = vrot.slane %v3669, 2
      %v3766 = vrot.slane %v3670, 2
      %v3767 = vsel %vm1188, %v3765, %v3766
      %v3768 = vrot.slane %v3671, 2
      %v3769 = vsel %vm1188, %v3766, %v3768
      %v3770 = vrot.slane %v3672, 2
      %v3771 = vrot.slane %v3673, 2
      %v3772 = vsel %vm1188, %v3770, %v3771
      %v3773 = vrot.slane %v3674, 2
      %v3774 = vsel %vm1188, %v3771, %v3773
      %v3775 = vrot.slane %v3675, 2
      %v3776 = vrot.slane %v3676, 2
      %v3777 = vsel %vm1188, %v3775, %v3776
      %v3778 = vrot.slane %v3677, 2
      %v3779 = vsel %vm1188, %v3776, %v3778
      %v3780 = vrot.slane %v3678, 2
      %v3781 = vrot.slane %v3679, 2
      %v3782 = vsel %vm1188, %v3780, %v3781
      %v3783 = vrot.slane %v3680, 2
      %v3784 = vsel %vm1188, %v3781, %v3783
      %v3785 = vrot.slane %v3681, 2
      %v3786 = vrot.slane %v3682, 2
      %v3787 = vsel %vm1188, %v3785, %v3786
      %v3788 = vrot.slane %v3683, 2
      %v3789 = vsel %vm1188, %v3786, %v3788
      %v3790 = vrot.slane %v3684, 2
      %v3791 = vrot.slane %v3685, 2
      %v3792 = vsel %vm1188, %v3790, %v3791
      %v3793 = vrot.slane %v3686, 2
      %v3794 = vsel %vm1188, %v3791, %v3793
      %v3795 = vrot.slane %v3687, 2
      %v3796 = vrot.slane %v3688, 2
      %v3797 = vsel %vm1188, %v3795, %v3796
      %v3798 = vrot.slane %v3689, 2
      %v3799 = vsel %vm1188, %v3796, %v3798
      %v3800 = vrot.slane %v3690, 2
      %v3801 = vrot.slane %v3691, 2
      %v3802 = vsel %vm1188, %v3800, %v3801
      %v3803 = vrot.slane %v3692, 2
      %v3804 = vsel %vm1188, %v3801, %v3803
      %v3805 = vrot.slane %v3693, 2
      %v3806 = vrot.slane %v3694, 2
      %v3807 = vsel %vm1188, %v3805, %v3806
      %v3808 = vrot.slane %v3695, 2
      %v3809 = vsel %vm1188, %v3806, %v3808
      %v3810 = vrot.slane %v3696, 2
      %v3811 = vrot.slane %v3697, 2
      %v3812 = vsel %vm1188, %v3810, %v3811
      %v3813 = vrot.slane %v3698, 2
      %v3814 = vsel %vm1188, %v3811, %v3813
      %v3815 = vrot.slane %v3699, 2
      %v3816 = vrot.slane %v3700, 2
      %v3817 = vsel %vm1188, %v3815, %v3816
      %v3818 = vrot.slane %v3701, 2
      %v3819 = vsel %vm1188, %v3816, %v3818
      %v3820 = vrot.slane %v3702, 2
      %v3821 = vrot.slane %v3703, 2
      %v3822 = vsel %vm1188, %v3820, %v3821
      %v3823 = vrot.slane %v3704, 2
      %v3824 = vsel %vm1188, %v3821, %v3823
      %v3825 = vrot.slane %v3705, 2
      %v3826 = vrot.slane %v3706, 2
      %v3827 = vsel %vm1188, %v3825, %v3826
      %v3828 = vrot.slane %v3707, 2
      %v3829 = vsel %vm1188, %v3826, %v3828
      %v3830 = vrot.slane %v3708, 2
      %v3831 = vrot.slane %v3709, 2
      %v3832 = vsel %vm1188, %v3830, %v3831
      %v3833 = vrot.slane %v3710, 2
      %v3834 = vsel %vm1188, %v3831, %v3833
      %v3835 = vrot.slane %v3711, 2
      %v3836 = vrot.slane %v3712, 2
      %v3837 = vsel %vm1188, %v3835, %v3836
      %v3838 = vrot.slane %v3713, 2
      %v3839 = vsel %vm1188, %v3836, %v3838
      %v3840 = vrot.slane %v3714, 2
      %v3841 = vrot.slane %v3715, 2
      %v3842 = vsel %vm1188, %v3840, %v3841
      %v3843 = vrot.slane %v3716, 2
      %v3844 = vsel %vm1188, %v3841, %v3843
      %v3877 = vadd.f32 %v3605, %v3767
      %v3878 = vadd.f32 %v3606, %v3769
      %v3879 = vadd.f32 %v3607, %v3772
      %v3880 = vadd.f32 %v3608, %v3774
      %v3881 = vadd.f32 %v3609, %v3777
      %v3882 = vadd.f32 %v3610, %v3779
      %v3883 = vadd.f32 %v3611, %v3782
      %v3884 = vadd.f32 %v3612, %v3784
      %v3885 = vadd.f32 %v3613, %v3787
      %v3886 = vadd.f32 %v3614, %v3789
      %v3887 = vadd.f32 %v3615, %v3792
      %v3888 = vadd.f32 %v3616, %v3794
      %v3889 = vadd.f32 %v3617, %v3797
      %v3890 = vadd.f32 %v3618, %v3799
      %v3891 = vadd.f32 %v3619, %v3802
      %v3892 = vadd.f32 %v3620, %v3804
      %v3893 = vadd.f32 %v3621, %v3807
      %v3894 = vadd.f32 %v3622, %v3809
      %v3895 = vadd.f32 %v3623, %v3812
      %v3896 = vadd.f32 %v3624, %v3814
      %v3897 = vadd.f32 %v3625, %v3817
      %v3898 = vadd.f32 %v3626, %v3819
      %v3899 = vadd.f32 %v3627, %v3822
      %v3900 = vadd.f32 %v3628, %v3824
      %v3901 = vadd.f32 %v3629, %v3827
      %v3902 = vadd.f32 %v3630, %v3829
      %v3903 = vadd.f32 %v3631, %v3832
      %v3904 = vadd.f32 %v3632, %v3834
      %v3905 = vadd.f32 %v3633, %v3837
      %v3906 = vadd.f32 %v3634, %v3839
      %v3907 = vadd.f32 %v3635, %v3842
      %v3908 = vadd.f32 %v3636, %v3844
      %v3909 = vld [vmem:[%s564] sm:$0xf]
      %v3910 = vld [vmem:[%s564 + $0x4] sm:$0xf]
      %v3911 = vld [vmem:[%s564 + $0xc] sm:$0xf]
      %v3912 = vld [vmem:[%s564 + $0x10] sm:$0xf]
      %v3913 = vld [vmem:[%s564 + $0x18] sm:$0xf]
      %v3914 = vld [vmem:[%s564 + $0x1c] sm:$0xf]
      %v3915 = vld [vmem:[%s564 + $0x24] sm:$0xf]
      %v3916 = vld [vmem:[%s564 + $0x28] sm:$0xf]
      %v3917 = vld [vmem:[%s564 + $0x30] sm:$0xf]
      %v3918 = vld [vmem:[%s564 + $0x34] sm:$0xf]
      %v3919 = vld [vmem:[%s564 + $0x3c] sm:$0xf]
      %v3920 = vld [vmem:[%s564 + $0x40] sm:$0xf]
      %v3921 = vld [vmem:[%s564 + $0x48] sm:$0xf]
      %v3922 = vld [vmem:[%s564 + $0x4c] sm:$0xf]
      %v3923 = vld [vmem:[%s564 + $0x54] sm:$0xf]
      %v3924 = vld [vmem:[%s564 + $0x58] sm:$0xf]
      %v3925 = vld [vmem:[%s564 + $0x60] sm:$0xf]
      %v3926 = vld [vmem:[%s564 + $0x64] sm:$0xf]
      %v3927 = vld [vmem:[%s564 + $0x6c] sm:$0xf]
      %v3928 = vld [vmem:[%s564 + $0x70] sm:$0xf]
      %v3929 = vld [vmem:[%s564 + $0x78] sm:$0xf]
      %v3930 = vld [vmem:[%s564 + $0x7c] sm:$0xf]
      %v3931 = vld [vmem:[%s564 + $0x84] sm:$0xf]
      %v3932 = vld [vmem:[%s564 + $0x88] sm:$0xf]
      %v3933 = vld [vmem:[%s564 + $0x90] sm:$0xf]
      %v3934 = vld [vmem:[%s564 + $0x94] sm:$0xf]
      %v3935 = vld [vmem:[%s564 + $0x9c] sm:$0xf]
      %v3936 = vld [vmem:[%s564 + $0xa0] sm:$0xf]
      %v3937 = vld [vmem:[%s564 + $0xa8] sm:$0xf]
      %v3938 = vld [vmem:[%s564 + $0xac] sm:$0xf]
      %v3939 = vld [vmem:[%s564 + $0xb4] sm:$0xf]
      %v3940 = vld [vmem:[%s564 + $0xb8] sm:$0xf]
      %v3941 = vunpack.c.l.bf16 %v3909
      %v3942 = vunpack.c.l.bf16 %v3910
      %v3943 = vunpack.c.l.bf16 %v3911
      %v3944 = vunpack.c.l.bf16 %v3912
      %v3945 = vunpack.c.l.bf16 %v3913
      %v3946 = vunpack.c.l.bf16 %v3914
      %v3947 = vunpack.c.l.bf16 %v3915
      %v3948 = vunpack.c.l.bf16 %v3916
      %v3949 = vunpack.c.l.bf16 %v3917
      %v3950 = vunpack.c.l.bf16 %v3918
      %v3951 = vunpack.c.l.bf16 %v3919
      %v3952 = vunpack.c.l.bf16 %v3920
      %v3953 = vunpack.c.l.bf16 %v3921
      %v3954 = vunpack.c.l.bf16 %v3922
      %v3955 = vunpack.c.l.bf16 %v3923
      %v3956 = vunpack.c.l.bf16 %v3924
      %v3957 = vunpack.c.l.bf16 %v3925
      %v3958 = vunpack.c.l.bf16 %v3926
      %v3959 = vunpack.c.l.bf16 %v3927
      %v3960 = vunpack.c.l.bf16 %v3928
      %v3961 = vunpack.c.l.bf16 %v3929
      %v3962 = vunpack.c.l.bf16 %v3930
      %v3963 = vunpack.c.l.bf16 %v3931
      %v3964 = vunpack.c.l.bf16 %v3932
      %v3965 = vunpack.c.l.bf16 %v3933
      %v3966 = vunpack.c.l.bf16 %v3934
      %v3967 = vunpack.c.l.bf16 %v3935
      %v3968 = vunpack.c.l.bf16 %v3936
      %v3969 = vunpack.c.l.bf16 %v3937
      %v3970 = vunpack.c.l.bf16 %v3938
      %v3971 = vunpack.c.l.bf16 %v3939
      %v3972 = vunpack.c.l.bf16 %v3940
      %v3973 = vmul.f32 %v3941, %v1400
      %v3974 = vmul.f32 %v3942, %v1400
      %v3975 = vmul.f32 %v3943, %v1400
      %v3976 = vmul.f32 %v3944, %v1400
      %v3977 = vmul.f32 %v3945, %v1400
      %v3978 = vmul.f32 %v3946, %v1400
      %v3979 = vmul.f32 %v3947, %v1400
      %v3980 = vmul.f32 %v3948, %v1400
      %v3981 = vmul.f32 %v3949, %v1400
      %v3982 = vmul.f32 %v3950, %v1400
      %v3983 = vmul.f32 %v3951, %v1400
      %v3984 = vmul.f32 %v3952, %v1400
      %v3985 = vmul.f32 %v3953, %v1400
      %v3986 = vmul.f32 %v3954, %v1400
      %v3987 = vmul.f32 %v3955, %v1400
      %v3988 = vmul.f32 %v3956, %v1400
      %v3989 = vmul.f32 %v3957, %v1400
      %v3990 = vmul.f32 %v3958, %v1400
      %v3991 = vmul.f32 %v3959, %v1400
      %v3992 = vmul.f32 %v3960, %v1400
      %v3993 = vmul.f32 %v3961, %v1400
      %v3994 = vmul.f32 %v3962, %v1400
      %v3995 = vmul.f32 %v3963, %v1400
      %v3996 = vmul.f32 %v3964, %v1400
      %v3997 = vmul.f32 %v3965, %v1400
      %v3998 = vmul.f32 %v3966, %v1400
      %v3999 = vmul.f32 %v3967, %v1400
      %v4000 = vmul.f32 %v3968, %v1400
      %v4001 = vmul.f32 %v3969, %v1400
      %v4002 = vmul.f32 %v3970, %v1400
      %v4003 = vmul.f32 %v3971, %v1400
      %v4004 = vmul.f32 %v3972, %v1400
      %v4005 = vadd.f32 %v3877, %v3973
      %v4006 = vadd.f32 %v3878, %v3974
      %v4007 = vadd.f32 %v3879, %v3975
      %v4008 = vadd.f32 %v3880, %v3976
      %v4009 = vadd.f32 %v3881, %v3977
      %v4010 = vadd.f32 %v3882, %v3978
      %v4011 = vadd.f32 %v3883, %v3979
      %v4012 = vadd.f32 %v3884, %v3980
      %v4013 = vadd.f32 %v3885, %v3981
      %v4014 = vadd.f32 %v3886, %v3982
      %v4015 = vadd.f32 %v3887, %v3983
      %v4016 = vadd.f32 %v3888, %v3984
      %v4017 = vadd.f32 %v3889, %v3985
      %v4018 = vadd.f32 %v3890, %v3986
      %v4019 = vadd.f32 %v3891, %v3987
      %v4020 = vadd.f32 %v3892, %v3988
      %v4021 = vadd.f32 %v3893, %v3989
      %v4022 = vadd.f32 %v3894, %v3990
      %v4023 = vadd.f32 %v3895, %v3991
      %v4024 = vadd.f32 %v3896, %v3992
      %v4025 = vadd.f32 %v3897, %v3993
      %v4026 = vadd.f32 %v3898, %v3994
      %v4027 = vadd.f32 %v3899, %v3995
      %v4028 = vadd.f32 %v3900, %v3996
      %v4029 = vadd.f32 %v3901, %v3997
      %v4030 = vadd.f32 %v3902, %v3998
      %v4031 = vadd.f32 %v3903, %v3999
      %v4032 = vadd.f32 %v3904, %v4000
      %v4033 = vadd.f32 %v3905, %v4001
      %v4034 = vadd.f32 %v3906, %v4002
      %v4035 = vadd.f32 %v3907, %v4003
      %v4036 = vadd.f32 %v3908, %v4004
      %v4037 = vld [vmem:[%s564 + $0x8] sm:$0x1]
      %v4038 = vld [vmem:[%s564 + $0x14] sm:$0x1]
      %v4039 = vld [vmem:[%s564 + $0x20] sm:$0x1]
      %v4040 = vld [vmem:[%s564 + $0x2c] sm:$0x1]
      %v4041 = vld [vmem:[%s564 + $0x38] sm:$0x1]
      %v4042 = vld [vmem:[%s564 + $0x44] sm:$0x1]
      %v4043 = vld [vmem:[%s564 + $0x50] sm:$0x1]
      %v4044 = vld [vmem:[%s564 + $0x5c] sm:$0x1]
      %v4045 = vld [vmem:[%s564 + $0x68] sm:$0x1]
      %v4046 = vld [vmem:[%s564 + $0x74] sm:$0x1]
      %v4047 = vld [vmem:[%s564 + $0x80] sm:$0x1]
      %v4048 = vld [vmem:[%s564 + $0x8c] sm:$0x1]
      %v4049 = vld [vmem:[%s564 + $0x98] sm:$0x1]
      %v4050 = vld [vmem:[%s564 + $0xa4] sm:$0x1]
      %v4051 = vld [vmem:[%s564 + $0xb0] sm:$0x1]
      %v4052 = vld [vmem:[%s564 + $0xbc] sm:$0x1]
      %v4053 = vunpack.c.l.bf16 %v4037
      %v4054 = vunpack.c.l.bf16 %v4038
      %v4055 = vunpack.c.l.bf16 %v4039
      %v4056 = vunpack.c.l.bf16 %v4040
      %v4057 = vunpack.c.l.bf16 %v4041
      %v4058 = vunpack.c.l.bf16 %v4042
      %v4059 = vunpack.c.l.bf16 %v4043
      %v4060 = vunpack.c.l.bf16 %v4044
      %v4061 = vunpack.c.l.bf16 %v4045
      %v4062 = vunpack.c.l.bf16 %v4046
      %v4063 = vunpack.c.l.bf16 %v4047
      %v4064 = vunpack.c.l.bf16 %v4048
      %v4065 = vunpack.c.l.bf16 %v4049
      %v4066 = vunpack.c.l.bf16 %v4050
      %v4067 = vunpack.c.l.bf16 %v4051
      %v4068 = vunpack.c.l.bf16 %v4052
      %v4069 = vmul.f32 %v3941, %v1500
      %v4070 = vmul.f32 %v3942, %v1500
      %v4071 = vmul.f32 %v4053, %v1500
      %v4072 = vmul.f32 %v3943, %v1500
      %v4073 = vmul.f32 %v3944, %v1500
      %v4074 = vmul.f32 %v4054, %v1500
      %v4075 = vmul.f32 %v3945, %v1500
      %v4076 = vmul.f32 %v3946, %v1500
      %v4077 = vmul.f32 %v4055, %v1500
      %v4078 = vmul.f32 %v3947, %v1500
      %v4079 = vmul.f32 %v3948, %v1500
      %v4080 = vmul.f32 %v4056, %v1500
      %v4081 = vmul.f32 %v3949, %v1500
      %v4082 = vmul.f32 %v3950, %v1500
      %v4083 = vmul.f32 %v4057, %v1500
      %v4084 = vmul.f32 %v3951, %v1500
      %v4085 = vmul.f32 %v3952, %v1500
      %v4086 = vmul.f32 %v4058, %v1500
      %v4087 = vmul.f32 %v3953, %v1500
      %v4088 = vmul.f32 %v3954, %v1500
      %v4089 = vmul.f32 %v4059, %v1500
      %v4090 = vmul.f32 %v3955, %v1500
      %v4091 = vmul.f32 %v3956, %v1500
      %v4092 = vmul.f32 %v4060, %v1500
      %v4093 = vmul.f32 %v3957, %v1500
      %v4094 = vmul.f32 %v3958, %v1500
      %v4095 = vmul.f32 %v4061, %v1500
      %v4096 = vmul.f32 %v3959, %v1500
      %v4097 = vmul.f32 %v3960, %v1500
      %v4098 = vmul.f32 %v4062, %v1500
      %v4099 = vmul.f32 %v3961, %v1500
      %v4100 = vmul.f32 %v3962, %v1500
      %v4101 = vmul.f32 %v4063, %v1500
      %v4102 = vmul.f32 %v3963, %v1500
      %v4103 = vmul.f32 %v3964, %v1500
      %v4104 = vmul.f32 %v4064, %v1500
      %v4105 = vmul.f32 %v3965, %v1500
      %v4106 = vmul.f32 %v3966, %v1500
      %v4107 = vmul.f32 %v4065, %v1500
      %v4108 = vmul.f32 %v3967, %v1500
      %v4109 = vmul.f32 %v3968, %v1500
      %v4110 = vmul.f32 %v4066, %v1500
      %v4111 = vmul.f32 %v3969, %v1500
      %v4112 = vmul.f32 %v3970, %v1500
      %v4113 = vmul.f32 %v4067, %v1500
      %v4114 = vmul.f32 %v3971, %v1500
      %v4115 = vmul.f32 %v3972, %v1500
      %v4116 = vmul.f32 %v4068, %v1500
      %v4165 = vrot.slane %v4069, 1
      %v4166 = vrot.slane %v4070, 1
      %v4167 = vsel %vm911, %v4165, %v4166
      %v4168 = vrot.slane %v4071, 1
      %v4169 = vsel %vm911, %v4166, %v4168
      %v4170 = vrot.slane %v4072, 1
      %v4171 = vrot.slane %v4073, 1
      %v4172 = vsel %vm911, %v4170, %v4171
      %v4173 = vrot.slane %v4074, 1
      %v4174 = vsel %vm911, %v4171, %v4173
      %v4175 = vrot.slane %v4075, 1
      %v4176 = vrot.slane %v4076, 1
      %v4177 = vsel %vm911, %v4175, %v4176
      %v4178 = vrot.slane %v4077, 1
      %v4179 = vsel %vm911, %v4176, %v4178
      %v4180 = vrot.slane %v4078, 1
      %v4181 = vrot.slane %v4079, 1
      %v4182 = vsel %vm911, %v4180, %v4181
      %v4183 = vrot.slane %v4080, 1
      %v4184 = vsel %vm911, %v4181, %v4183
      %v4185 = vrot.slane %v4081, 1
      %v4186 = vrot.slane %v4082, 1
      %v4187 = vsel %vm911, %v4185, %v4186
      %v4188 = vrot.slane %v4083, 1
      %v4189 = vsel %vm911, %v4186, %v4188
      %v4190 = vrot.slane %v4084, 1
      %v4191 = vrot.slane %v4085, 1
      %v4192 = vsel %vm911, %v4190, %v4191
      %v4193 = vrot.slane %v4086, 1
      %v4194 = vsel %vm911, %v4191, %v4193
      %v4195 = vrot.slane %v4087, 1
      %v4196 = vrot.slane %v4088, 1
      %v4197 = vsel %vm911, %v4195, %v4196
      %v4198 = vrot.slane %v4089, 1
      %v4199 = vsel %vm911, %v4196, %v4198
      %v4200 = vrot.slane %v4090, 1
      %v4201 = vrot.slane %v4091, 1
      %v4202 = vsel %vm911, %v4200, %v4201
      %v4203 = vrot.slane %v4092, 1
      %v4204 = vsel %vm911, %v4201, %v4203
      %v4205 = vrot.slane %v4093, 1
      %v4206 = vrot.slane %v4094, 1
      %v4207 = vsel %vm911, %v4205, %v4206
      %v4208 = vrot.slane %v4095, 1
      %v4209 = vsel %vm911, %v4206, %v4208
      %v4210 = vrot.slane %v4096, 1
      %v4211 = vrot.slane %v4097, 1
      %v4212 = vsel %vm911, %v4210, %v4211
      %v4213 = vrot.slane %v4098, 1
      %v4214 = vsel %vm911, %v4211, %v4213
      %v4215 = vrot.slane %v4099, 1
      %v4216 = vrot.slane %v4100, 1
      %v4217 = vsel %vm911, %v4215, %v4216
      %v4218 = vrot.slane %v4101, 1
      %v4219 = vsel %vm911, %v4216, %v4218
      %v4220 = vrot.slane %v4102, 1
      %v4221 = vrot.slane %v4103, 1
      %v4222 = vsel %vm911, %v4220, %v4221
      %v4223 = vrot.slane %v4104, 1
      %v4224 = vsel %vm911, %v4221, %v4223
      %v4225 = vrot.slane %v4105, 1
      %v4226 = vrot.slane %v4106, 1
      %v4227 = vsel %vm911, %v4225, %v4226
      %v4228 = vrot.slane %v4107, 1
      %v4229 = vsel %vm911, %v4226, %v4228
      %v4230 = vrot.slane %v4108, 1
      %v4231 = vrot.slane %v4109, 1
      %v4232 = vsel %vm911, %v4230, %v4231
      %v4233 = vrot.slane %v4110, 1
      %v4234 = vsel %vm911, %v4231, %v4233
      %v4235 = vrot.slane %v4111, 1
      %v4236 = vrot.slane %v4112, 1
      %v4237 = vsel %vm911, %v4235, %v4236
      %v4238 = vrot.slane %v4113, 1
      %v4239 = vsel %vm911, %v4236, %v4238
      %v4240 = vrot.slane %v4114, 1
      %v4241 = vrot.slane %v4115, 1
      %v4242 = vsel %vm911, %v4240, %v4241
      %v4243 = vrot.slane %v4116, 1
      %v4244 = vsel %vm911, %v4241, %v4243
      %v4277 = vadd.f32 %v4005, %v4167
      %v4278 = vadd.f32 %v4006, %v4169
      %v4279 = vadd.f32 %v4007, %v4172
      %v4280 = vadd.f32 %v4008, %v4174
      %v4281 = vadd.f32 %v4009, %v4177
      %v4282 = vadd.f32 %v4010, %v4179
      %v4283 = vadd.f32 %v4011, %v4182
      %v4284 = vadd.f32 %v4012, %v4184
      %v4285 = vadd.f32 %v4013, %v4187
      %v4286 = vadd.f32 %v4014, %v4189
      %v4287 = vadd.f32 %v4015, %v4192
      %v4288 = vadd.f32 %v4016, %v4194
      %v4289 = vadd.f32 %v4017, %v4197
      %v4290 = vadd.f32 %v4018, %v4199
      %v4291 = vadd.f32 %v4019, %v4202
      %v4292 = vadd.f32 %v4020, %v4204
      %v4293 = vadd.f32 %v4021, %v4207
      %v4294 = vadd.f32 %v4022, %v4209
      %v4295 = vadd.f32 %v4023, %v4212
      %v4296 = vadd.f32 %v4024, %v4214
      %v4297 = vadd.f32 %v4025, %v4217
      %v4298 = vadd.f32 %v4026, %v4219
      %v4299 = vadd.f32 %v4027, %v4222
      %v4300 = vadd.f32 %v4028, %v4224
      %v4301 = vadd.f32 %v4029, %v4227
      %v4302 = vadd.f32 %v4030, %v4229
      %v4303 = vadd.f32 %v4031, %v4232
      %v4304 = vadd.f32 %v4032, %v4234
      %v4305 = vadd.f32 %v4033, %v4237
      %v4306 = vadd.f32 %v4034, %v4239
      %v4307 = vadd.f32 %v4035, %v4242
      %v4308 = vadd.f32 %v4036, %v4244
      %v4309 = vld [vmem:[%s564] sm:$0xe]
      %v4310 = vld [vmem:[%s564 + $0xc] sm:$0xe]
      %v4311 = vld [vmem:[%s564 + $0x18] sm:$0xe]
      %v4312 = vld [vmem:[%s564 + $0x24] sm:$0xe]
      %v4313 = vld [vmem:[%s564 + $0x30] sm:$0xe]
      %v4314 = vld [vmem:[%s564 + $0x3c] sm:$0xe]
      %v4315 = vld [vmem:[%s564 + $0x48] sm:$0xe]
      %v4316 = vld [vmem:[%s564 + $0x54] sm:$0xe]
      %v4317 = vld [vmem:[%s564 + $0x60] sm:$0xe]
      %v4318 = vld [vmem:[%s564 + $0x6c] sm:$0xe]
      %v4319 = vld [vmem:[%s564 + $0x78] sm:$0xe]
      %v4320 = vld [vmem:[%s564 + $0x84] sm:$0xe]
      %v4321 = vld [vmem:[%s564 + $0x90] sm:$0xe]
      %v4322 = vld [vmem:[%s564 + $0x9c] sm:$0xe]
      %v4323 = vld [vmem:[%s564 + $0xa8] sm:$0xe]
      %v4324 = vld [vmem:[%s564 + $0xb4] sm:$0xe]
      %v4325 = vunpack.c.l.bf16 %v4309
      %v4326 = vunpack.c.l.bf16 %v4310
      %v4327 = vunpack.c.l.bf16 %v4311
      %v4328 = vunpack.c.l.bf16 %v4312
      %v4329 = vunpack.c.l.bf16 %v4313
      %v4330 = vunpack.c.l.bf16 %v4314
      %v4331 = vunpack.c.l.bf16 %v4315
      %v4332 = vunpack.c.l.bf16 %v4316
      %v4333 = vunpack.c.l.bf16 %v4317
      %v4334 = vunpack.c.l.bf16 %v4318
      %v4335 = vunpack.c.l.bf16 %v4319
      %v4336 = vunpack.c.l.bf16 %v4320
      %v4337 = vunpack.c.l.bf16 %v4321
      %v4338 = vunpack.c.l.bf16 %v4322
      %v4339 = vunpack.c.l.bf16 %v4323
      %v4340 = vunpack.c.l.bf16 %v4324
      %v4341 = vmul.f32 %v4325, %v1776
      %v4342 = vmul.f32 %v3942, %v1776
      %v4343 = vmul.f32 %v4053, %v1776
      %v4344 = vmul.f32 %v4326, %v1776
      %v4345 = vmul.f32 %v3944, %v1776
      %v4346 = vmul.f32 %v4054, %v1776
      %v4347 = vmul.f32 %v4327, %v1776
      %v4348 = vmul.f32 %v3946, %v1776
      %v4349 = vmul.f32 %v4055, %v1776
      %v4350 = vmul.f32 %v4328, %v1776
      %v4351 = vmul.f32 %v3948, %v1776
      %v4352 = vmul.f32 %v4056, %v1776
      %v4353 = vmul.f32 %v4329, %v1776
      %v4354 = vmul.f32 %v3950, %v1776
      %v4355 = vmul.f32 %v4057, %v1776
      %v4356 = vmul.f32 %v4330, %v1776
      %v4357 = vmul.f32 %v3952, %v1776
      %v4358 = vmul.f32 %v4058, %v1776
      %v4359 = vmul.f32 %v4331, %v1776
      %v4360 = vmul.f32 %v3954, %v1776
      %v4361 = vmul.f32 %v4059, %v1776
      %v4362 = vmul.f32 %v4332, %v1776
      %v4363 = vmul.f32 %v3956, %v1776
      %v4364 = vmul.f32 %v4060, %v1776
      %v4365 = vmul.f32 %v4333, %v1776
      %v4366 = vmul.f32 %v3958, %v1776
      %v4367 = vmul.f32 %v4061, %v1776
      %v4368 = vmul.f32 %v4334, %v1776
      %v4369 = vmul.f32 %v3960, %v1776
      %v4370 = vmul.f32 %v4062, %v1776
      %v4371 = vmul.f32 %v4335, %v1776
      %v4372 = vmul.f32 %v3962, %v1776
      %v4373 = vmul.f32 %v4063, %v1776
      %v4374 = vmul.f32 %v4336, %v1776
      %v4375 = vmul.f32 %v3964, %v1776
      %v4376 = vmul.f32 %v4064, %v1776
      %v4377 = vmul.f32 %v4337, %v1776
      %v4378 = vmul.f32 %v3966, %v1776
      %v4379 = vmul.f32 %v4065, %v1776
      %v4380 = vmul.f32 %v4338, %v1776
      %v4381 = vmul.f32 %v3968, %v1776
      %v4382 = vmul.f32 %v4066, %v1776
      %v4383 = vmul.f32 %v4339, %v1776
      %v4384 = vmul.f32 %v3970, %v1776
      %v4385 = vmul.f32 %v4067, %v1776
      %v4386 = vmul.f32 %v4340, %v1776
      %v4387 = vmul.f32 %v3972, %v1776
      %v4388 = vmul.f32 %v4068, %v1776
      %v4437 = vrot.slane %v4341, 2
      %v4438 = vrot.slane %v4342, 2
      %v4439 = vsel %vm1188, %v4437, %v4438
      %v4440 = vrot.slane %v4343, 2
      %v4441 = vsel %vm1188, %v4438, %v4440
      %v4442 = vrot.slane %v4344, 2
      %v4443 = vrot.slane %v4345, 2
      %v4444 = vsel %vm1188, %v4442, %v4443
      %v4445 = vrot.slane %v4346, 2
      %v4446 = vsel %vm1188, %v4443, %v4445
      %v4447 = vrot.slane %v4347, 2
      %v4448 = vrot.slane %v4348, 2
      %v4449 = vsel %vm1188, %v4447, %v4448
      %v4450 = vrot.slane %v4349, 2
      %v4451 = vsel %vm1188, %v4448, %v4450
      %v4452 = vrot.slane %v4350, 2
      %v4453 = vrot.slane %v4351, 2
      %v4454 = vsel %vm1188, %v4452, %v4453
      %v4455 = vrot.slane %v4352, 2
      %v4456 = vsel %vm1188, %v4453, %v4455
      %v4457 = vrot.slane %v4353, 2
      %v4458 = vrot.slane %v4354, 2
      %v4459 = vsel %vm1188, %v4457, %v4458
      %v4460 = vrot.slane %v4355, 2
      %v4461 = vsel %vm1188, %v4458, %v4460
      %v4462 = vrot.slane %v4356, 2
      %v4463 = vrot.slane %v4357, 2
      %v4464 = vsel %vm1188, %v4462, %v4463
      %v4465 = vrot.slane %v4358, 2
      %v4466 = vsel %vm1188, %v4463, %v4465
      %v4467 = vrot.slane %v4359, 2
      %v4468 = vrot.slane %v4360, 2
      %v4469 = vsel %vm1188, %v4467, %v4468
      %v4470 = vrot.slane %v4361, 2
      %v4471 = vsel %vm1188, %v4468, %v4470
      %v4472 = vrot.slane %v4362, 2
      %v4473 = vrot.slane %v4363, 2
      %v4474 = vsel %vm1188, %v4472, %v4473
      %v4475 = vrot.slane %v4364, 2
      %v4476 = vsel %vm1188, %v4473, %v4475
      %v4477 = vrot.slane %v4365, 2
      %v4478 = vrot.slane %v4366, 2
      %v4479 = vsel %vm1188, %v4477, %v4478
      %v4480 = vrot.slane %v4367, 2
      %v4481 = vsel %vm1188, %v4478, %v4480
      %v4482 = vrot.slane %v4368, 2
      %v4483 = vrot.slane %v4369, 2
      %v4484 = vsel %vm1188, %v4482, %v4483
      %v4485 = vrot.slane %v4370, 2
      %v4486 = vsel %vm1188, %v4483, %v4485
      %v4487 = vrot.slane %v4371, 2
      %v4488 = vrot.slane %v4372, 2
      %v4489 = vsel %vm1188, %v4487, %v4488
      %v4490 = vrot.slane %v4373, 2
      %v4491 = vsel %vm1188, %v4488, %v4490
      %v4492 = vrot.slane %v4374, 2
      %v4493 = vrot.slane %v4375, 2
      %v4494 = vsel %vm1188, %v4492, %v4493
      %v4495 = vrot.slane %v4376, 2
      %v4496 = vsel %vm1188, %v4493, %v4495
      %v4497 = vrot.slane %v4377, 2
      %v4498 = vrot.slane %v4378, 2
      %v4499 = vsel %vm1188, %v4497, %v4498
      %v4500 = vrot.slane %v4379, 2
      %v4501 = vsel %vm1188, %v4498, %v4500
      %v4502 = vrot.slane %v4380, 2
      %v4503 = vrot.slane %v4381, 2
      %v4504 = vsel %vm1188, %v4502, %v4503
      %v4505 = vrot.slane %v4382, 2
      %v4506 = vsel %vm1188, %v4503, %v4505
      %v4507 = vrot.slane %v4383, 2
      %v4508 = vrot.slane %v4384, 2
      %v4509 = vsel %vm1188, %v4507, %v4508
      %v4510 = vrot.slane %v4385, 2
      %v4511 = vsel %vm1188, %v4508, %v4510
      %v4512 = vrot.slane %v4386, 2
      %v4513 = vrot.slane %v4387, 2
      %v4514 = vsel %vm1188, %v4512, %v4513
      %v4515 = vrot.slane %v4388, 2
      %v4516 = vsel %vm1188, %v4513, %v4515
      %v4549 = vadd.f32 %v4277, %v4439
      %v4550 = vadd.f32 %v4278, %v4441
      %v4551 = vadd.f32 %v4279, %v4444
      %v4552 = vadd.f32 %v4280, %v4446
      %v4553 = vadd.f32 %v4281, %v4449
      %v4554 = vadd.f32 %v4282, %v4451
      %v4555 = vadd.f32 %v4283, %v4454
      %v4556 = vadd.f32 %v4284, %v4456
      %v4557 = vadd.f32 %v4285, %v4459
      %v4558 = vadd.f32 %v4286, %v4461
      %v4559 = vadd.f32 %v4287, %v4464
      %v4560 = vadd.f32 %v4288, %v4466
      %v4561 = vadd.f32 %v4289, %v4469
      %v4562 = vadd.f32 %v4290, %v4471
      %v4563 = vadd.f32 %v4291, %v4474
      %v4564 = vadd.f32 %v4292, %v4476
      %v4565 = vadd.f32 %v4293, %v4479
      %v4566 = vadd.f32 %v4294, %v4481
      %v4567 = vadd.f32 %v4295, %v4484
      %v4568 = vadd.f32 %v4296, %v4486
      %v4569 = vadd.f32 %v4297, %v4489
      %v4570 = vadd.f32 %v4298, %v4491
      %v4571 = vadd.f32 %v4299, %v4494
      %v4572 = vadd.f32 %v4300, %v4496
      %v4573 = vadd.f32 %v4301, %v4499
      %v4574 = vadd.f32 %v4302, %v4501
      %v4575 = vadd.f32 %v4303, %v4504
      %v4576 = vadd.f32 %v4304, %v4506
      %v4577 = vadd.f32 %v4305, %v4509
      %v4578 = vadd.f32 %v4306, %v4511
      %v4579 = vadd.f32 %v4307, %v4514
      %v4580 = vadd.f32 %v4308, %v4516
      %v4581 = vld [vmem:[%s2017] sm:$0xf]
      %v4582 = vld [vmem:[%s2017 + $0x4] sm:$0xf]
      %v4583 = vld [vmem:[%s2017 + $0xc] sm:$0xf]
      %v4584 = vld [vmem:[%s2017 + $0x10] sm:$0xf]
      %v4585 = vld [vmem:[%s2017 + $0x18] sm:$0xf]
      %v4586 = vld [vmem:[%s2017 + $0x1c] sm:$0xf]
      %v4587 = vld [vmem:[%s2017 + $0x24] sm:$0xf]
      %v4588 = vld [vmem:[%s2017 + $0x28] sm:$0xf]
      %v4589 = vld [vmem:[%s2017 + $0x30] sm:$0xf]
      %v4590 = vld [vmem:[%s2017 + $0x34] sm:$0xf]
      %v4591 = vld [vmem:[%s2017 + $0x3c] sm:$0xf]
      %v4592 = vld [vmem:[%s2017 + $0x40] sm:$0xf]
      %v4593 = vld [vmem:[%s2017 + $0x48] sm:$0xf]
      %v4594 = vld [vmem:[%s2017 + $0x4c] sm:$0xf]
      %v4595 = vld [vmem:[%s2017 + $0x54] sm:$0xf]
      %v4596 = vld [vmem:[%s2017 + $0x58] sm:$0xf]
      %v4597 = vld [vmem:[%s2017 + $0x60] sm:$0xf]
      %v4598 = vld [vmem:[%s2017 + $0x64] sm:$0xf]
      %v4599 = vld [vmem:[%s2017 + $0x6c] sm:$0xf]
      %v4600 = vld [vmem:[%s2017 + $0x70] sm:$0xf]
      %v4601 = vld [vmem:[%s2017 + $0x78] sm:$0xf]
      %v4602 = vld [vmem:[%s2017 + $0x7c] sm:$0xf]
      %v4603 = vld [vmem:[%s2017 + $0x84] sm:$0xf]
      %v4604 = vld [vmem:[%s2017 + $0x88] sm:$0xf]
      %v4605 = vld [vmem:[%s2017 + $0x90] sm:$0xf]
      %v4606 = vld [vmem:[%s2017 + $0x94] sm:$0xf]
      %v4607 = vld [vmem:[%s2017 + $0x9c] sm:$0xf]
      %v4608 = vld [vmem:[%s2017 + $0xa0] sm:$0xf]
      %v4609 = vld [vmem:[%s2017 + $0xa8] sm:$0xf]
      %v4610 = vld [vmem:[%s2017 + $0xac] sm:$0xf]
      %v4611 = vld [vmem:[%s2017 + $0xb4] sm:$0xf]
      %v4612 = vld [vmem:[%s2017 + $0xb8] sm:$0xf]
      %v4613 = vunpack.c.l.bf16 %v4581
      %v4614 = vunpack.c.l.bf16 %v4582
      %v4615 = vunpack.c.l.bf16 %v4583
      %v4616 = vunpack.c.l.bf16 %v4584
      %v4617 = vunpack.c.l.bf16 %v4585
      %v4618 = vunpack.c.l.bf16 %v4586
      %v4619 = vunpack.c.l.bf16 %v4587
      %v4620 = vunpack.c.l.bf16 %v4588
      %v4621 = vunpack.c.l.bf16 %v4589
      %v4622 = vunpack.c.l.bf16 %v4590
      %v4623 = vunpack.c.l.bf16 %v4591
      %v4624 = vunpack.c.l.bf16 %v4592
      %v4625 = vunpack.c.l.bf16 %v4593
      %v4626 = vunpack.c.l.bf16 %v4594
      %v4627 = vunpack.c.l.bf16 %v4595
      %v4628 = vunpack.c.l.bf16 %v4596
      %v4629 = vunpack.c.l.bf16 %v4597
      %v4630 = vunpack.c.l.bf16 %v4598
      %v4631 = vunpack.c.l.bf16 %v4599
      %v4632 = vunpack.c.l.bf16 %v4600
      %v4633 = vunpack.c.l.bf16 %v4601
      %v4634 = vunpack.c.l.bf16 %v4602
      %v4635 = vunpack.c.l.bf16 %v4603
      %v4636 = vunpack.c.l.bf16 %v4604
      %v4637 = vunpack.c.l.bf16 %v4605
      %v4638 = vunpack.c.l.bf16 %v4606
      %v4639 = vunpack.c.l.bf16 %v4607
      %v4640 = vunpack.c.l.bf16 %v4608
      %v4641 = vunpack.c.l.bf16 %v4609
      %v4642 = vunpack.c.l.bf16 %v4610
      %v4643 = vunpack.c.l.bf16 %v4611
      %v4644 = vunpack.c.l.bf16 %v4612
      %v4645 = vmul.f32 %v4613, %v2085
      %v4646 = vmul.f32 %v4614, %v2085
      %v4647 = vmul.f32 %v4615, %v2085
      %v4648 = vmul.f32 %v4616, %v2085
      %v4649 = vmul.f32 %v4617, %v2085
      %v4650 = vmul.f32 %v4618, %v2085
      %v4651 = vmul.f32 %v4619, %v2085
      %v4652 = vmul.f32 %v4620, %v2085
      %v4653 = vmul.f32 %v4621, %v2085
      %v4654 = vmul.f32 %v4622, %v2085
      %v4655 = vmul.f32 %v4623, %v2085
      %v4656 = vmul.f32 %v4624, %v2085
      %v4657 = vmul.f32 %v4625, %v2085
      %v4658 = vmul.f32 %v4626, %v2085
      %v4659 = vmul.f32 %v4627, %v2085
      %v4660 = vmul.f32 %v4628, %v2085
      %v4661 = vmul.f32 %v4629, %v2085
      %v4662 = vmul.f32 %v4630, %v2085
      %v4663 = vmul.f32 %v4631, %v2085
      %v4664 = vmul.f32 %v4632, %v2085
      %v4665 = vmul.f32 %v4633, %v2085
      %v4666 = vmul.f32 %v4634, %v2085
      %v4667 = vmul.f32 %v4635, %v2085
      %v4668 = vmul.f32 %v4636, %v2085
      %v4669 = vmul.f32 %v4637, %v2085
      %v4670 = vmul.f32 %v4638, %v2085
      %v4671 = vmul.f32 %v4639, %v2085
      %v4672 = vmul.f32 %v4640, %v2085
      %v4673 = vmul.f32 %v4641, %v2085
      %v4674 = vmul.f32 %v4642, %v2085
      %v4675 = vmul.f32 %v4643, %v2085
      %v4676 = vmul.f32 %v4644, %v2085
      %v4677 = vadd.f32 %v4549, %v4645
      %v4678 = vadd.f32 %v4550, %v4646
      %v4679 = vadd.f32 %v4551, %v4647
      %v4680 = vadd.f32 %v4552, %v4648
      %v4681 = vadd.f32 %v4553, %v4649
      %v4682 = vadd.f32 %v4554, %v4650
      %v4683 = vadd.f32 %v4555, %v4651
      %v4684 = vadd.f32 %v4556, %v4652
      %v4685 = vadd.f32 %v4557, %v4653
      %v4686 = vadd.f32 %v4558, %v4654
      %v4687 = vadd.f32 %v4559, %v4655
      %v4688 = vadd.f32 %v4560, %v4656
      %v4689 = vadd.f32 %v4561, %v4657
      %v4690 = vadd.f32 %v4562, %v4658
      %v4691 = vadd.f32 %v4563, %v4659
      %v4692 = vadd.f32 %v4564, %v4660
      %v4693 = vadd.f32 %v4565, %v4661
      %v4694 = vadd.f32 %v4566, %v4662
      %v4695 = vadd.f32 %v4567, %v4663
      %v4696 = vadd.f32 %v4568, %v4664
      %v4697 = vadd.f32 %v4569, %v4665
      %v4698 = vadd.f32 %v4570, %v4666
      %v4699 = vadd.f32 %v4571, %v4667
      %v4700 = vadd.f32 %v4572, %v4668
      %v4701 = vadd.f32 %v4573, %v4669
      %v4702 = vadd.f32 %v4574, %v4670
      %v4703 = vadd.f32 %v4575, %v4671
      %v4704 = vadd.f32 %v4576, %v4672
      %v4705 = vadd.f32 %v4577, %v4673
      %v4706 = vadd.f32 %v4578, %v4674
      %v4707 = vadd.f32 %v4579, %v4675
      %v4708 = vadd.f32 %v4580, %v4676
      %v4709 = vld [vmem:[%s2017 + $0x8] sm:$0x1]
      %v4710 = vld [vmem:[%s2017 + $0x14] sm:$0x1]
      %v4711 = vld [vmem:[%s2017 + $0x20] sm:$0x1]
      %v4712 = vld [vmem:[%s2017 + $0x2c] sm:$0x1]
      %v4713 = vld [vmem:[%s2017 + $0x38] sm:$0x1]
      %v4714 = vld [vmem:[%s2017 + $0x44] sm:$0x1]
      %v4715 = vld [vmem:[%s2017 + $0x50] sm:$0x1]
      %v4716 = vld [vmem:[%s2017 + $0x5c] sm:$0x1]
      %v4717 = vld [vmem:[%s2017 + $0x68] sm:$0x1]
      %v4718 = vld [vmem:[%s2017 + $0x74] sm:$0x1]
      %v4719 = vld [vmem:[%s2017 + $0x80] sm:$0x1]
      %v4720 = vld [vmem:[%s2017 + $0x8c] sm:$0x1]
      %v4721 = vld [vmem:[%s2017 + $0x98] sm:$0x1]
      %v4722 = vld [vmem:[%s2017 + $0xa4] sm:$0x1]
      %v4723 = vld [vmem:[%s2017 + $0xb0] sm:$0x1]
      %v4724 = vld [vmem:[%s2017 + $0xbc] sm:$0x1]
      %v4725 = vunpack.c.l.bf16 %v4709
      %v4726 = vunpack.c.l.bf16 %v4710
      %v4727 = vunpack.c.l.bf16 %v4711
      %v4728 = vunpack.c.l.bf16 %v4712
      %v4729 = vunpack.c.l.bf16 %v4713
      %v4730 = vunpack.c.l.bf16 %v4714
      %v4731 = vunpack.c.l.bf16 %v4715
      %v4732 = vunpack.c.l.bf16 %v4716
      %v4733 = vunpack.c.l.bf16 %v4717
      %v4734 = vunpack.c.l.bf16 %v4718
      %v4735 = vunpack.c.l.bf16 %v4719
      %v4736 = vunpack.c.l.bf16 %v4720
      %v4737 = vunpack.c.l.bf16 %v4721
      %v4738 = vunpack.c.l.bf16 %v4722
      %v4739 = vunpack.c.l.bf16 %v4723
      %v4740 = vunpack.c.l.bf16 %v4724
      %v4741 = vmul.f32 %v4613, %v2185
      %v4742 = vmul.f32 %v4614, %v2185
      %v4743 = vmul.f32 %v4725, %v2185
      %v4744 = vmul.f32 %v4615, %v2185
      %v4745 = vmul.f32 %v4616, %v2185
      %v4746 = vmul.f32 %v4726, %v2185
      %v4747 = vmul.f32 %v4617, %v2185
      %v4748 = vmul.f32 %v4618, %v2185
      %v4749 = vmul.f32 %v4727, %v2185
      %v4750 = vmul.f32 %v4619, %v2185
      %v4751 = vmul.f32 %v4620, %v2185
      %v4752 = vmul.f32 %v4728, %v2185
      %v4753 = vmul.f32 %v4621, %v2185
      %v4754 = vmul.f32 %v4622, %v2185
      %v4755 = vmul.f32 %v4729, %v2185
      %v4756 = vmul.f32 %v4623, %v2185
      %v4757 = vmul.f32 %v4624, %v2185
      %v4758 = vmul.f32 %v4730, %v2185
      %v4759 = vmul.f32 %v4625, %v2185
      %v4760 = vmul.f32 %v4626, %v2185
      %v4761 = vmul.f32 %v4731, %v2185
      %v4762 = vmul.f32 %v4627, %v2185
      %v4763 = vmul.f32 %v4628, %v2185
      %v4764 = vmul.f32 %v4732, %v2185
      %v4765 = vmul.f32 %v4629, %v2185
      %v4766 = vmul.f32 %v4630, %v2185
      %v4767 = vmul.f32 %v4733, %v2185
      %v4768 = vmul.f32 %v4631, %v2185
      %v4769 = vmul.f32 %v4632, %v2185
      %v4770 = vmul.f32 %v4734, %v2185
      %v4771 = vmul.f32 %v4633, %v2185
      %v4772 = vmul.f32 %v4634, %v2185
      %v4773 = vmul.f32 %v4735, %v2185
      %v4774 = vmul.f32 %v4635, %v2185
      %v4775 = vmul.f32 %v4636, %v2185
      %v4776 = vmul.f32 %v4736, %v2185
      %v4777 = vmul.f32 %v4637, %v2185
      %v4778 = vmul.f32 %v4638, %v2185
      %v4779 = vmul.f32 %v4737, %v2185
      %v4780 = vmul.f32 %v4639, %v2185
      %v4781 = vmul.f32 %v4640, %v2185
      %v4782 = vmul.f32 %v4738, %v2185
      %v4783 = vmul.f32 %v4641, %v2185
      %v4784 = vmul.f32 %v4642, %v2185
      %v4785 = vmul.f32 %v4739, %v2185
      %v4786 = vmul.f32 %v4643, %v2185
      %v4787 = vmul.f32 %v4644, %v2185
      %v4788 = vmul.f32 %v4740, %v2185
      %v4837 = vrot.slane %v4741, 1
      %v4838 = vrot.slane %v4742, 1
      %v4839 = vsel %vm911, %v4837, %v4838
      %v4840 = vrot.slane %v4743, 1
      %v4841 = vsel %vm911, %v4838, %v4840
      %v4842 = vrot.slane %v4744, 1
      %v4843 = vrot.slane %v4745, 1
      %v4844 = vsel %vm911, %v4842, %v4843
      %v4845 = vrot.slane %v4746, 1
      %v4846 = vsel %vm911, %v4843, %v4845
      %v4847 = vrot.slane %v4747, 1
      %v4848 = vrot.slane %v4748, 1
      %v4849 = vsel %vm911, %v4847, %v4848
      %v4850 = vrot.slane %v4749, 1
      %v4851 = vsel %vm911, %v4848, %v4850
      %v4852 = vrot.slane %v4750, 1
      %v4853 = vrot.slane %v4751, 1
      %v4854 = vsel %vm911, %v4852, %v4853
      %v4855 = vrot.slane %v4752, 1
      %v4856 = vsel %vm911, %v4853, %v4855
      %v4857 = vrot.slane %v4753, 1
      %v4858 = vrot.slane %v4754, 1
      %v4859 = vsel %vm911, %v4857, %v4858
      %v4860 = vrot.slane %v4755, 1
      %v4861 = vsel %vm911, %v4858, %v4860
      %v4862 = vrot.slane %v4756, 1
      %v4863 = vrot.slane %v4757, 1
      %v4864 = vsel %vm911, %v4862, %v4863
      %v4865 = vrot.slane %v4758, 1
      %v4866 = vsel %vm911, %v4863, %v4865
      %v4867 = vrot.slane %v4759, 1
      %v4868 = vrot.slane %v4760, 1
      %v4869 = vsel %vm911, %v4867, %v4868
      %v4870 = vrot.slane %v4761, 1
      %v4871 = vsel %vm911, %v4868, %v4870
      %v4872 = vrot.slane %v4762, 1
      %v4873 = vrot.slane %v4763, 1
      %v4874 = vsel %vm911, %v4872, %v4873
      %v4875 = vrot.slane %v4764, 1
      %v4876 = vsel %vm911, %v4873, %v4875
      %v4877 = vrot.slane %v4765, 1
      %v4878 = vrot.slane %v4766, 1
      %v4879 = vsel %vm911, %v4877, %v4878
      %v4880 = vrot.slane %v4767, 1
      %v4881 = vsel %vm911, %v4878, %v4880
      %v4882 = vrot.slane %v4768, 1
      %v4883 = vrot.slane %v4769, 1
      %v4884 = vsel %vm911, %v4882, %v4883
      %v4885 = vrot.slane %v4770, 1
      %v4886 = vsel %vm911, %v4883, %v4885
      %v4887 = vrot.slane %v4771, 1
      %v4888 = vrot.slane %v4772, 1
      %v4889 = vsel %vm911, %v4887, %v4888
      %v4890 = vrot.slane %v4773, 1
      %v4891 = vsel %vm911, %v4888, %v4890
      %v4892 = vrot.slane %v4774, 1
      %v4893 = vrot.slane %v4775, 1
      %v4894 = vsel %vm911, %v4892, %v4893
      %v4895 = vrot.slane %v4776, 1
      %v4896 = vsel %vm911, %v4893, %v4895
      %v4897 = vrot.slane %v4777, 1
      %v4898 = vrot.slane %v4778, 1
      %v4899 = vsel %vm911, %v4897, %v4898
      %v4900 = vrot.slane %v4779, 1
      %v4901 = vsel %vm911, %v4898, %v4900
      %v4902 = vrot.slane %v4780, 1
      %v4903 = vrot.slane %v4781, 1
      %v4904 = vsel %vm911, %v4902, %v4903
      %v4905 = vrot.slane %v4782, 1
      %v4906 = vsel %vm911, %v4903, %v4905
      %v4907 = vrot.slane %v4783, 1
      %v4908 = vrot.slane %v4784, 1
      %v4909 = vsel %vm911, %v4907, %v4908
      %v4910 = vrot.slane %v4785, 1
      %v4911 = vsel %vm911, %v4908, %v4910
      %v4912 = vrot.slane %v4786, 1
      %v4913 = vrot.slane %v4787, 1
      %v4914 = vsel %vm911, %v4912, %v4913
      %v4915 = vrot.slane %v4788, 1
      %v4916 = vsel %vm911, %v4913, %v4915
      %v4949 = vadd.f32 %v4677, %v4839
      %v4950 = vadd.f32 %v4678, %v4841
      %v4951 = vadd.f32 %v4679, %v4844
      %v4952 = vadd.f32 %v4680, %v4846
      %v4953 = vadd.f32 %v4681, %v4849
      %v4954 = vadd.f32 %v4682, %v4851
      %v4955 = vadd.f32 %v4683, %v4854
      %v4956 = vadd.f32 %v4684, %v4856
      %v4957 = vadd.f32 %v4685, %v4859
      %v4958 = vadd.f32 %v4686, %v4861
      %v4959 = vadd.f32 %v4687, %v4864
      %v4960 = vadd.f32 %v4688, %v4866
      %v4961 = vadd.f32 %v4689, %v4869
      %v4962 = vadd.f32 %v4690, %v4871
      %v4963 = vadd.f32 %v4691, %v4874
      %v4964 = vadd.f32 %v4692, %v4876
      %v4965 = vadd.f32 %v4693, %v4879
      %v4966 = vadd.f32 %v4694, %v4881
      %v4967 = vadd.f32 %v4695, %v4884
      %v4968 = vadd.f32 %v4696, %v4886
      %v4969 = vadd.f32 %v4697, %v4889
      %v4970 = vadd.f32 %v4698, %v4891
      %v4971 = vadd.f32 %v4699, %v4894
      %v4972 = vadd.f32 %v4700, %v4896
      %v4973 = vadd.f32 %v4701, %v4899
      %v4974 = vadd.f32 %v4702, %v4901
      %v4975 = vadd.f32 %v4703, %v4904
      %v4976 = vadd.f32 %v4704, %v4906
      %v4977 = vadd.f32 %v4705, %v4909
      %v4978 = vadd.f32 %v4706, %v4911
      %v4979 = vadd.f32 %v4707, %v4914
      %v4980 = vadd.f32 %v4708, %v4916
      %v4981 = vld [vmem:[%s2017] sm:$0xe]
      %v4982 = vld [vmem:[%s2017 + $0xc] sm:$0xe]
      %v4983 = vld [vmem:[%s2017 + $0x18] sm:$0xe]
      %v4984 = vld [vmem:[%s2017 + $0x24] sm:$0xe]
      %v4985 = vld [vmem:[%s2017 + $0x30] sm:$0xe]
      %v4986 = vld [vmem:[%s2017 + $0x3c] sm:$0xe]
      %v4987 = vld [vmem:[%s2017 + $0x48] sm:$0xe]
      %v4988 = vld [vmem:[%s2017 + $0x54] sm:$0xe]
      %v4989 = vld [vmem:[%s2017 + $0x60] sm:$0xe]
      %v4990 = vld [vmem:[%s2017 + $0x6c] sm:$0xe]
      %v4991 = vld [vmem:[%s2017 + $0x78] sm:$0xe]
      %v4992 = vld [vmem:[%s2017 + $0x84] sm:$0xe]
      %v4993 = vld [vmem:[%s2017 + $0x90] sm:$0xe]
      %v4994 = vld [vmem:[%s2017 + $0x9c] sm:$0xe]
      %v4995 = vld [vmem:[%s2017 + $0xa8] sm:$0xe]
      %v4996 = vld [vmem:[%s2017 + $0xb4] sm:$0xe]
      %v4997 = vunpack.c.l.bf16 %v4981
      %v4998 = vunpack.c.l.bf16 %v4982
      %v4999 = vunpack.c.l.bf16 %v4983
      %v5000 = vunpack.c.l.bf16 %v4984
      %v5001 = vunpack.c.l.bf16 %v4985
      %v5002 = vunpack.c.l.bf16 %v4986
      %v5003 = vunpack.c.l.bf16 %v4987
      %v5004 = vunpack.c.l.bf16 %v4988
      %v5005 = vunpack.c.l.bf16 %v4989
      %v5006 = vunpack.c.l.bf16 %v4990
      %v5007 = vunpack.c.l.bf16 %v4991
      %v5008 = vunpack.c.l.bf16 %v4992
      %v5009 = vunpack.c.l.bf16 %v4993
      %v5010 = vunpack.c.l.bf16 %v4994
      %v5011 = vunpack.c.l.bf16 %v4995
      %v5012 = vunpack.c.l.bf16 %v4996
      %v5013 = vmul.f32 %v4997, %v2461
      %v5014 = vmul.f32 %v4614, %v2461
      %v5015 = vmul.f32 %v4725, %v2461
      %v5016 = vmul.f32 %v4998, %v2461
      %v5017 = vmul.f32 %v4616, %v2461
      %v5018 = vmul.f32 %v4726, %v2461
      %v5019 = vmul.f32 %v4999, %v2461
      %v5020 = vmul.f32 %v4618, %v2461
      %v5021 = vmul.f32 %v4727, %v2461
      %v5022 = vmul.f32 %v5000, %v2461
      %v5023 = vmul.f32 %v4620, %v2461
      %v5024 = vmul.f32 %v4728, %v2461
      %v5025 = vmul.f32 %v5001, %v2461
      %v5026 = vmul.f32 %v4622, %v2461
      %v5027 = vmul.f32 %v4729, %v2461
      %v5028 = vmul.f32 %v5002, %v2461
      %v5029 = vmul.f32 %v4624, %v2461
      %v5030 = vmul.f32 %v4730, %v2461
      %v5031 = vmul.f32 %v5003, %v2461
      %v5032 = vmul.f32 %v4626, %v2461
      %v5033 = vmul.f32 %v4731, %v2461
      %v5034 = vmul.f32 %v5004, %v2461
      %v5035 = vmul.f32 %v4628, %v2461
      %v5036 = vmul.f32 %v4732, %v2461
      %v5037 = vmul.f32 %v5005, %v2461
      %v5038 = vmul.f32 %v4630, %v2461
      %v5039 = vmul.f32 %v4733, %v2461
      %v5040 = vmul.f32 %v5006, %v2461
      %v5041 = vmul.f32 %v4632, %v2461
      %v5042 = vmul.f32 %v4734, %v2461
      %v5043 = vmul.f32 %v5007, %v2461
      %v5044 = vmul.f32 %v4634, %v2461
      %v5045 = vmul.f32 %v4735, %v2461
      %v5046 = vmul.f32 %v5008, %v2461
      %v5047 = vmul.f32 %v4636, %v2461
      %v5048 = vmul.f32 %v4736, %v2461
      %v5049 = vmul.f32 %v5009, %v2461
      %v5050 = vmul.f32 %v4638, %v2461
      %v5051 = vmul.f32 %v4737, %v2461
      %v5052 = vmul.f32 %v5010, %v2461
      %v5053 = vmul.f32 %v4640, %v2461
      %v5054 = vmul.f32 %v4738, %v2461
      %v5055 = vmul.f32 %v5011, %v2461
      %v5056 = vmul.f32 %v4642, %v2461
      %v5057 = vmul.f32 %v4739, %v2461
      %v5058 = vmul.f32 %v5012, %v2461
      %v5059 = vmul.f32 %v4644, %v2461
      %v5060 = vmul.f32 %v4740, %v2461
      %v5109 = vrot.slane %v5013, 2
      %v5110 = vrot.slane %v5014, 2
      %v5111 = vsel %vm1188, %v5109, %v5110
      %v5112 = vrot.slane %v5015, 2
      %v5113 = vsel %vm1188, %v5110, %v5112
      %v5114 = vrot.slane %v5016, 2
      %v5115 = vrot.slane %v5017, 2
      %v5116 = vsel %vm1188, %v5114, %v5115
      %v5117 = vrot.slane %v5018, 2
      %v5118 = vsel %vm1188, %v5115, %v5117
      %v5119 = vrot.slane %v5019, 2
      %v5120 = vrot.slane %v5020, 2
      %v5121 = vsel %vm1188, %v5119, %v5120
      %v5122 = vrot.slane %v5021, 2
      %v5123 = vsel %vm1188, %v5120, %v5122
      %v5124 = vrot.slane %v5022, 2
      %v5125 = vrot.slane %v5023, 2
      %v5126 = vsel %vm1188, %v5124, %v5125
      %v5127 = vrot.slane %v5024, 2
      %v5128 = vsel %vm1188, %v5125, %v5127
      %v5129 = vrot.slane %v5025, 2
      %v5130 = vrot.slane %v5026, 2
      %v5131 = vsel %vm1188, %v5129, %v5130
      %v5132 = vrot.slane %v5027, 2
      %v5133 = vsel %vm1188, %v5130, %v5132
      %v5134 = vrot.slane %v5028, 2
      %v5135 = vrot.slane %v5029, 2
      %v5136 = vsel %vm1188, %v5134, %v5135
      %v5137 = vrot.slane %v5030, 2
      %v5138 = vsel %vm1188, %v5135, %v5137
      %v5139 = vrot.slane %v5031, 2
      %v5140 = vrot.slane %v5032, 2
      %v5141 = vsel %vm1188, %v5139, %v5140
      %v5142 = vrot.slane %v5033, 2
      %v5143 = vsel %vm1188, %v5140, %v5142
      %v5144 = vrot.slane %v5034, 2
      %v5145 = vrot.slane %v5035, 2
      %v5146 = vsel %vm1188, %v5144, %v5145
      %v5147 = vrot.slane %v5036, 2
      %v5148 = vsel %vm1188, %v5145, %v5147
      %v5149 = vrot.slane %v5037, 2
      %v5150 = vrot.slane %v5038, 2
      %v5151 = vsel %vm1188, %v5149, %v5150
      %v5152 = vrot.slane %v5039, 2
      %v5153 = vsel %vm1188, %v5150, %v5152
      %v5154 = vrot.slane %v5040, 2
      %v5155 = vrot.slane %v5041, 2
      %v5156 = vsel %vm1188, %v5154, %v5155
      %v5157 = vrot.slane %v5042, 2
      %v5158 = vsel %vm1188, %v5155, %v5157
      %v5159 = vrot.slane %v5043, 2
      %v5160 = vrot.slane %v5044, 2
      %v5161 = vsel %vm1188, %v5159, %v5160
      %v5162 = vrot.slane %v5045, 2
      %v5163 = vsel %vm1188, %v5160, %v5162
      %v5164 = vrot.slane %v5046, 2
      %v5165 = vrot.slane %v5047, 2
      %v5166 = vsel %vm1188, %v5164, %v5165
      %v5167 = vrot.slane %v5048, 2
      %v5168 = vsel %vm1188, %v5165, %v5167
      %v5169 = vrot.slane %v5049, 2
      %v5170 = vrot.slane %v5050, 2
      %v5171 = vsel %vm1188, %v5169, %v5170
      %v5172 = vrot.slane %v5051, 2
      %v5173 = vsel %vm1188, %v5170, %v5172
      %v5174 = vrot.slane %v5052, 2
      %v5175 = vrot.slane %v5053, 2
      %v5176 = vsel %vm1188, %v5174, %v5175
      %v5177 = vrot.slane %v5054, 2
      %v5178 = vsel %vm1188, %v5175, %v5177
      %v5179 = vrot.slane %v5055, 2
      %v5180 = vrot.slane %v5056, 2
      %v5181 = vsel %vm1188, %v5179, %v5180
      %v5182 = vrot.slane %v5057, 2
      %v5183 = vsel %vm1188, %v5180, %v5182
      %v5184 = vrot.slane %v5058, 2
      %v5185 = vrot.slane %v5059, 2
      %v5186 = vsel %vm1188, %v5184, %v5185
      %v5187 = vrot.slane %v5060, 2
      %v5188 = vsel %vm1188, %v5185, %v5187
      %v5221 = vadd.f32 %v4949, %v5111
      %v5222 = vadd.f32 %v4950, %v5113
      %v5223 = vadd.f32 %v4951, %v5116
      %v5224 = vadd.f32 %v4952, %v5118
      %v5225 = vadd.f32 %v4953, %v5121
      %v5226 = vadd.f32 %v4954, %v5123
      %v5227 = vadd.f32 %v4955, %v5126
      %v5228 = vadd.f32 %v4956, %v5128
      %v5229 = vadd.f32 %v4957, %v5131
      %v5230 = vadd.f32 %v4958, %v5133
      %v5231 = vadd.f32 %v4959, %v5136
      %v5232 = vadd.f32 %v4960, %v5138
      %v5233 = vadd.f32 %v4961, %v5141
      %v5234 = vadd.f32 %v4962, %v5143
      %v5235 = vadd.f32 %v4963, %v5146
      %v5236 = vadd.f32 %v4964, %v5148
      %v5237 = vadd.f32 %v4965, %v5151
      %v5238 = vadd.f32 %v4966, %v5153
      %v5239 = vadd.f32 %v4967, %v5156
      %v5240 = vadd.f32 %v4968, %v5158
      %v5241 = vadd.f32 %v4969, %v5161
      %v5242 = vadd.f32 %v4970, %v5163
      %v5243 = vadd.f32 %v4971, %v5166
      %v5244 = vadd.f32 %v4972, %v5168
      %v5245 = vadd.f32 %v4973, %v5171
      %v5246 = vadd.f32 %v4974, %v5173
      %v5247 = vadd.f32 %v4975, %v5176
      %v5248 = vadd.f32 %v4976, %v5178
      %v5249 = vadd.f32 %v4977, %v5181
      %v5250 = vadd.f32 %v4978, %v5183
      %v5251 = vadd.f32 %v4979, %v5186
      %v5252 = vadd.f32 %v4980, %v5188
      %v5253 = vadd.f32 %v5221, %v2706
      %v5254 = vadd.f32 %v5222, %v2706
      %v5255 = vadd.f32 %v5223, %v2706
      %v5256 = vadd.f32 %v5224, %v2706
      %v5257 = vadd.f32 %v5225, %v2706
      %v5258 = vadd.f32 %v5226, %v2706
      %v5259 = vadd.f32 %v5227, %v2706
      %v5260 = vadd.f32 %v5228, %v2706
      %v5261 = vadd.f32 %v5229, %v2706
      %v5262 = vadd.f32 %v5230, %v2706
      %v5263 = vadd.f32 %v5231, %v2706
      %v5264 = vadd.f32 %v5232, %v2706
      %v5265 = vadd.f32 %v5233, %v2706
      %v5266 = vadd.f32 %v5234, %v2706
      %v5267 = vadd.f32 %v5235, %v2706
      %v5268 = vadd.f32 %v5236, %v2706
      %v5269 = vadd.f32 %v5237, %v2706
      %v5270 = vadd.f32 %v5238, %v2706
      %v5271 = vadd.f32 %v5239, %v2706
      %v5272 = vadd.f32 %v5240, %v2706
      %v5273 = vadd.f32 %v5241, %v2706
      %v5274 = vadd.f32 %v5242, %v2706
      %v5275 = vadd.f32 %v5243, %v2706
      %v5276 = vadd.f32 %v5244, %v2706
      %v5277 = vadd.f32 %v5245, %v2706
      %v5278 = vadd.f32 %v5246, %v2706
      %v5279 = vadd.f32 %v5247, %v2706
      %v5280 = vadd.f32 %v5248, %v2706
      %v5281 = vadd.f32 %v5249, %v2706
      %v5282 = vadd.f32 %v5250, %v2706
      %v5283 = vadd.f32 %v5251, %v2706
      %v5284 = vadd.f32 %v5252, %v2706
      %v5285 = vmax.f32 %v5253, 0.0
      %v5286 = vmax.f32 %v5254, 0.0
      %v5287 = vmax.f32 %v5255, 0.0
      %v5288 = vmax.f32 %v5256, 0.0
      %v5289 = vmax.f32 %v5257, 0.0
      %v5290 = vmax.f32 %v5258, 0.0
      %v5291 = vmax.f32 %v5259, 0.0
      %v5292 = vmax.f32 %v5260, 0.0
      %v5293 = vmax.f32 %v5261, 0.0
      %v5294 = vmax.f32 %v5262, 0.0
      %v5295 = vmax.f32 %v5263, 0.0
      %v5296 = vmax.f32 %v5264, 0.0
      %v5297 = vmax.f32 %v5265, 0.0
      %v5298 = vmax.f32 %v5266, 0.0
      %v5299 = vmax.f32 %v5267, 0.0
      %v5300 = vmax.f32 %v5268, 0.0
      %v5301 = vmax.f32 %v5269, 0.0
      %v5302 = vmax.f32 %v5270, 0.0
      %v5303 = vmax.f32 %v5271, 0.0
      %v5304 = vmax.f32 %v5272, 0.0
      %v5305 = vmax.f32 %v5273, 0.0
      %v5306 = vmax.f32 %v5274, 0.0
      %v5307 = vmax.f32 %v5275, 0.0
      %v5308 = vmax.f32 %v5276, 0.0
      %v5309 = vmax.f32 %v5277, 0.0
      %v5310 = vmax.f32 %v5278, 0.0
      %v5311 = vmax.f32 %v5279, 0.0
      %v5312 = vmax.f32 %v5280, 0.0
      %v5313 = vmax.f32 %v5281, 0.0
      %v5314 = vmax.f32 %v5282, 0.0
      %v5315 = vmax.f32 %v5283, 0.0
      %v5316 = vmax.f32 %v5284, 0.0
      %v5317 = vpack.c.bf16 %v5286, %v5285
      %v5318 = vpack.c.bf16 %v5288, %v5287
      %v5319 = vpack.c.bf16 %v5290, %v5289
      %v5320 = vpack.c.bf16 %v5292, %v5291
      %v5321 = vpack.c.bf16 %v5294, %v5293
      %v5322 = vpack.c.bf16 %v5296, %v5295
      %v5323 = vpack.c.bf16 %v5298, %v5297
      %v5324 = vpack.c.bf16 %v5300, %v5299
      %v5325 = vpack.c.bf16 %v5302, %v5301
      %v5326 = vpack.c.bf16 %v5304, %v5303
      %v5327 = vpack.c.bf16 %v5306, %v5305
      %v5328 = vpack.c.bf16 %v5308, %v5307
      %v5329 = vpack.c.bf16 %v5310, %v5309
      %v5330 = vpack.c.bf16 %v5312, %v5311
      %v5331 = vpack.c.bf16 %v5314, %v5313
      %v5332 = vpack.c.bf16 %v5316, %v5315
      %5333 = vst [vmem:[#allocation3 + $0x80] sm:$0xff] %v5317
      %5334 = vst [vmem:[#allocation3 + $0x88] sm:$0xff] %v5318
      %5335 = vst [vmem:[#allocation3 + $0x90] sm:$0xff] %v5319
      %5336 = vst [vmem:[#allocation3 + $0x98] sm:$0xff] %v5320
      %5337 = vst [vmem:[#allocation3 + $0xa0] sm:$0xff] %v5321
      %5338 = vst [vmem:[#allocation3 + $0xa8] sm:$0xff] %v5322
      %5339 = vst [vmem:[#allocation3 + $0xb0] sm:$0xff] %v5323
      %5340 = vst [vmem:[#allocation3 + $0xb8] sm:$0xff] %v5324
      %5341 = vst [vmem:[#allocation3 + $0xc0] sm:$0xff] %v5325
      %5342 = vst [vmem:[#allocation3 + $0xc8] sm:$0xff] %v5326
      %5343 = vst [vmem:[#allocation3 + $0xd0] sm:$0xff] %v5327
      %5344 = vst [vmem:[#allocation3 + $0xd8] sm:$0xff] %v5328
      %5345 = vst [vmem:[#allocation3 + $0xe0] sm:$0xff] %v5329
      %5346 = vst [vmem:[#allocation3 + $0xe8] sm:$0xff] %v5330
      %5347 = vst [vmem:[#allocation3 + $0xf0] sm:$0xff] %v5331
      %5348 = vst [vmem:[#allocation3 + $0xf8] sm:$0xff] %v5332
    $region37: #{tpu_custom_call.1} parent=1 // pred_fallthru
      _
    %v5349 = vld [vmem:[#allocation3] sm:$0xff]
    %v5350 = vld [vmem:[#allocation3 + $0x8] sm:$0xff]
    %v5351 = vld [vmem:[#allocation3 + $0x10] sm:$0xff]
    %v5352 = vld [vmem:[#allocation3 + $0x18] sm:$0xff]
    %v5353 = vld [vmem:[#allocation3 + $0x20] sm:$0xff]
    %v5354 = vld [vmem:[#allocation3 + $0x28] sm:$0xff]
    %v5355 = vld [vmem:[#allocation3 + $0x30] sm:$0xff]
    %v5356 = vld [vmem:[#allocation3 + $0x38] sm:$0xff]
    %v5357 = vld [vmem:[#allocation3 + $0x40] sm:$0xff]
    %v5358 = vld [vmem:[#allocation3 + $0x48] sm:$0xff]
    %v5359 = vld [vmem:[#allocation3 + $0x50] sm:$0xff]
    %v5360 = vld [vmem:[#allocation3 + $0x58] sm:$0xff]
    %v5361 = vld [vmem:[#allocation3 + $0x60] sm:$0xff]
    %v5362 = vld [vmem:[#allocation3 + $0x68] sm:$0xff]
    %v5363 = vld [vmem:[#allocation3 + $0x70] sm:$0xff]
    %v5364 = vld [vmem:[#allocation3 + $0x78] sm:$0xff]
    %v5365 = vld [vmem:[#allocation3 + $0x80] sm:$0xff]
    %v5366 = vld [vmem:[#allocation3 + $0x88] sm:$0xff]
    %v5367 = vld [vmem:[#allocation3 + $0x90] sm:$0xff]
    %v5368 = vld [vmem:[#allocation3 + $0x98] sm:$0xff]
    %v5369 = vld [vmem:[#allocation3 + $0xa0] sm:$0xff]
    %v5370 = vld [vmem:[#allocation3 + $0xa8] sm:$0xff]
    %v5371 = vld [vmem:[#allocation3 + $0xb0] sm:$0xff]
    %v5372 = vld [vmem:[#allocation3 + $0xb8] sm:$0xff]
    %v5373 = vld [vmem:[#allocation3 + $0xc0] sm:$0xff]
    %v5374 = vld [vmem:[#allocation3 + $0xc8] sm:$0xff]
    %v5375 = vld [vmem:[#allocation3 + $0xd0] sm:$0xff]
    %v5376 = vld [vmem:[#allocation3 + $0xd8] sm:$0xff]
    %v5377 = vld [vmem:[#allocation3 + $0xe0] sm:$0xff]
    %v5378 = vld [vmem:[#allocation3 + $0xe8] sm:$0xff]
    %v5379 = vld [vmem:[#allocation3 + $0xf0] sm:$0xff]
    %v5380 = vld [vmem:[#allocation3 + $0xf8] sm:$0xff]
    %v5381 = vld [vmem:[#allocation9] sm:$0xf]
    %v5382 = vld [vmem:[#allocation9 + $0x4] sm:$0xf]
    %v5383 = vld [vmem:[#allocation9 + $0x8] sm:$0xf]
    %v5384 = vld [vmem:[#allocation9 + $0xc] sm:$0xf]
    %v5385 = vld [vmem:[#allocation9 + $0x10] sm:$0xf]
    %v5386 = vld [vmem:[#allocation9 + $0x14] sm:$0xf]
    %v5387 = vld [vmem:[#allocation9 + $0x18] sm:$0xf]
    %v5388 = vld [vmem:[#allocation9 + $0x1c] sm:$0xf]
    %v5389 = vld [vmem:[#allocation9 + $0x20] sm:$0xf]
    %v5390 = vld [vmem:[#allocation9 + $0x24] sm:$0xf]
    %v5391 = vld [vmem:[#allocation9 + $0x28] sm:$0xf]
    %v5392 = vld [vmem:[#allocation9 + $0x2c] sm:$0xf]
    %v5393 = vld [vmem:[#allocation9 + $0x30] sm:$0xf]
    %v5394 = vld [vmem:[#allocation9 + $0x34] sm:$0xf]
    %v5395 = vld [vmem:[#allocation9 + $0x38] sm:$0xf]
    %v5396 = vld [vmem:[#allocation9 + $0x3c] sm:$0xf]
    %v5397 = vld [vmem:[%s78] sm:$0x1]
    %v5399 = vlaneseq
    %v5400 = vshrl.u32 %v5399, 7
    %v5401 = vsub.s32 0, %v5400
    %v5402 = vrot.slane %v5397, %v5401
    %v5420 = vunpack.c.l.b16 %v5381
    %v5421 = vunpack.c.l.b16 %v5382
    %v5422 = vunpack.c.l.b16 %v5383
    %v5423 = vunpack.c.l.b16 %v5384
    %v5424 = vunpack.c.l.b16 %v5385
    %v5425 = vunpack.c.l.b16 %v5386
    %v5426 = vunpack.c.l.b16 %v5387
    %v5427 = vunpack.c.l.b16 %v5388
    %v5428 = vunpack.c.l.b16 %v5389
    %v5429 = vunpack.c.l.b16 %v5390
    %v5430 = vunpack.c.l.b16 %v5391
    %v5431 = vunpack.c.l.b16 %v5392
    %v5432 = vunpack.c.l.b16 %v5393
    %v5433 = vunpack.c.l.b16 %v5394
    %v5434 = vunpack.c.l.b16 %v5395
    %v5435 = vunpack.c.l.b16 %v5396
    %v5436 = vpack.c.b16 %v5421, %v5420
    %v5437 = vpack.c.b16 %v5423, %v5422
    %v5438 = vpack.c.b16 %v5425, %v5424
    %v5439 = vpack.c.b16 %v5427, %v5426
    %v5440 = vpack.c.b16 %v5429, %v5428
    %v5441 = vpack.c.b16 %v5431, %v5430
    %v5442 = vpack.c.b16 %v5433, %v5432
    %v5443 = vpack.c.b16 %v5435, %v5434
    %5452 = vmatprep.subr.bf16.mxu0 0
    %5453 = vmatpush1.bf16.msra.mxu0 %v5436
    %5454 = vmatprep.subr.bf16.mxu0 0
    %5455 = vmatpush1.bf16.msra.mxu0 %v5437
    %5456 = vmatprep.subr.bf16.mxu0 0
    %5457 = vmatpush1.bf16.msra.mxu0 %v5438
    %5458 = vmatprep.subr.bf16.mxu0 0
    %5459 = vmatpush1.bf16.msra.mxu0 %v5439
    %5460 = vmatprep.subr.bf16.mxu0 0
    %5461 = vmatpush1.bf16.msra.mxu0 %v5440
    %5462 = vmatprep.subr.bf16.mxu0 0
    %5463 = vmatpush1.bf16.msra.mxu0 %v5441
    %5464 = vmatprep.subr.bf16.mxu0 0
    %5465 = vmatpush1.bf16.msra.mxu0 %v5442
    %5466 = vmatprep.subr.bf16.mxu0 0
    %5467 = vmatpush1.bf16.msra.mxu0 %v5443
    %5468 = vmatprep.subr.bf16.mxu0 0
    %5469 = vmatpush1.bf16.msra.mxu0 0
    %5470 = vmatprep.subr.bf16.mxu0 0
    %5471 = vmatpush1.bf16.msra.mxu0 0
    %5472 = vmatprep.subr.bf16.mxu0 0
    %5473 = vmatpush1.bf16.msra.mxu0 0
    %5474 = vmatprep.subr.bf16.mxu0 0
    %5475 = vmatpush1.bf16.msra.mxu0 0
    %5476 = vmatprep.subr.bf16.mxu0 0
    %5477 = vmatpush1.bf16.msra.mxu0 0
    %5478 = vmatprep.subr.bf16.mxu0 0
    %5479 = vmatpush1.bf16.msra.mxu0 0
    %5480 = vmatprep.subr.bf16.mxu0 0
    %5481 = vmatpush1.bf16.msra.mxu0 0
    %5482 = vmatprep.subr.bf16.mxu0 0
    %5483 = vmatpush1.bf16.msra.mxu0 0
    %5484 = vmatprep.mubr.bf16.mxu0 0
    %5485 = vmatmul.mubr.bf16.gmra.mrb[0].mxu0 %v5349
    %v5486 = vpop.f32.mrb[0].mxu0
    %v5487 = vadd.f32 %v5402, %v5486
    %v5488 = vpop.f32.mrb[0].mxu0
    %v5489 = vpop.f32.mrb[0].mxu0
    %v5490 = vadd.f32 %v5402, %v5489
    %v5491 = vpop.f32.mrb[0].mxu0
    %5492 = vmatprep.mubr.bf16.mxu0 0
    %5493 = vmatmul.mubr.bf16.gmra.mrb[0].mxu0 %v5350
    %v5494 = vpop.f32.mrb[0].mxu0
    %v5495 = vadd.f32 %v5402, %v5494
    %v5496 = vpop.f32.mrb[0].mxu0
    %v5497 = vpop.f32.mrb[0].mxu0
    %v5498 = vadd.f32 %v5402, %v5497
    %v5499 = vpop.f32.mrb[0].mxu0
    %5500 = vmatprep.mubr.bf16.mxu0 0
    %5501 = vmatmul.mubr.bf16.gmra.mrb[0].mxu0 %v5351
    %v5502 = vpop.f32.mrb[0].mxu0
    %v5503 = vadd.f32 %v5402, %v5502
    %v5504 = vpop.f32.mrb[0].mxu0
    %v5505 = vpop.f32.mrb[0].mxu0
    %v5506 = vadd.f32 %v5402, %v5505
    %v5507 = vpop.f32.mrb[0].mxu0
    %5508 = vmatprep.mubr.bf16.mxu0 0
    %5509 = vmatmul.mubr.bf16.gmra.mrb[0].mxu0 %v5352
    %v5510 = vpop.f32.mrb[0].mxu0
    %v5511 = vadd.f32 %v5402, %v5510
    %v5512 = vpop.f32.mrb[0].mxu0
    %v5513 = vpop.f32.mrb[0].mxu0
    %v5514 = vadd.f32 %v5402, %v5513
    %v5515 = vpop.f32.mrb[0].mxu0
    %5516 = vmatprep.mubr.bf16.mxu0 0
    %5517 = vmatmul.mubr.bf16.gmra.mrb[0].mxu0 %v5353
    %v5518 = vpop.f32.mrb[0].mxu0
    %v5519 = vadd.f32 %v5402, %v5518
    %v5520 = vpop.f32.mrb[0].mxu0
    %v5521 = vpop.f32.mrb[0].mxu0
    %v5522 = vadd.f32 %v5402, %v5521
    %v5523 = vpop.f32.mrb[0].mxu0
    %5524 = vmatprep.mubr.bf16.mxu0 0
    %5525 = vmatmul.mubr.bf16.gmra.mrb[0].mxu0 %v5354
    %v5526 = vpop.f32.mrb[0].mxu0
    %v5527 = vadd.f32 %v5402, %v5526
    %v5528 = vpop.f32.mrb[0].mxu0
    %v5529 = vpop.f32.mrb[0].mxu0
    %v5530 = vadd.f32 %v5402, %v5529
    %v5531 = vpop.f32.mrb[0].mxu0
    %5532 = vmatprep.mubr.bf16.mxu0 0
    %5533 = vmatmul.mubr.bf16.gmra.mrb[0].mxu0 %v5355
    %v5534 = vpop.f32.mrb[0].mxu0
    %v5535 = vadd.f32 %v5402, %v5534
    %v5536 = vpop.f32.mrb[0].mxu0
    %v5537 = vpop.f32.mrb[0].mxu0
    %v5538 = vadd.f32 %v5402, %v5537
    %v5539 = vpop.f32.mrb[0].mxu0
    %5540 = vmatprep.mubr.bf16.mxu0 0
    %5541 = vmatmul.mubr.bf16.gmra.mrb[0].mxu0 %v5356
    %v5542 = vpop.f32.mrb[0].mxu0
    %v5543 = vadd.f32 %v5402, %v5542
    %v5544 = vpop.f32.mrb[0].mxu0
    %v5545 = vpop.f32.mrb[0].mxu0
    %v5546 = vadd.f32 %v5402, %v5545
    %v5547 = vpop.f32.mrb[0].mxu0
    %5548 = vmatprep.mubr.bf16.mxu0 0
    %5549 = vmatmul.mubr.bf16.gmra.mrb[0].mxu0 %v5357
    %v5550 = vpop.f32.mrb[0].mxu0
    %v5551 = vadd.f32 %v5402, %v5550
    %v5552 = vpop.f32.mrb[0].mxu0
    %v5553 = vpop.f32.mrb[0].mxu0
    %v5554 = vadd.f32 %v5402, %v5553
    %v5555 = vpop.f32.mrb[0].mxu0
    %5556 = vmatprep.mubr.bf16.mxu0 0
    %5557 = vmatmul.mubr.bf16.gmra.mrb[0].mxu0 %v5358
    %v5558 = vpop.f32.mrb[0].mxu0
    %v5559 = vadd.f32 %v5402, %v5558
    %v5560 = vpop.f32.mrb[0].mxu0
    %v5561 = vpop.f32.mrb[0].mxu0
    %v5562 = vadd.f32 %v5402, %v5561
    %v5563 = vpop.f32.mrb[0].mxu0
    %5564 = vmatprep.mubr.bf16.mxu0 0
    %5565 = vmatmul.mubr.bf16.gmra.mrb[0].mxu0 %v5359
    %v5566 = vpop.f32.mrb[0].mxu0
    %v5567 = vadd.f32 %v5402, %v5566
    %v5568 = vpop.f32.mrb[0].mxu0
    %v5569 = vpop.f32.mrb[0].mxu0
    %v5570 = vadd.f32 %v5402, %v5569
    %v5571 = vpop.f32.mrb[0].mxu0
    %5572 = vmatprep.mubr.bf16.mxu0 0
    %5573 = vmatmul.mubr.bf16.gmra.mrb[0].mxu0 %v5360
    %v5574 = vpop.f32.mrb[0].mxu0
    %v5575 = vadd.f32 %v5402, %v5574
    %v5576 = vpop.f32.mrb[0].mxu0
    %v5577 = vpop.f32.mrb[0].mxu0
    %v5578 = vadd.f32 %v5402, %v5577
    %v5579 = vpop.f32.mrb[0].mxu0
    %5580 = vmatprep.mubr.bf16.mxu0 0
    %5581 = vmatmul.mubr.bf16.gmra.mrb[0].mxu0 %v5361
    %v5582 = vpop.f32.mrb[0].mxu0
    %v5583 = vadd.f32 %v5402, %v5582
    %v5584 = vpop.f32.mrb[0].mxu0
    %v5585 = vpop.f32.mrb[0].mxu0
    %v5586 = vadd.f32 %v5402, %v5585
    %v5587 = vpop.f32.mrb[0].mxu0
    %5588 = vmatprep.mubr.bf16.mxu0 0
    %5589 = vmatmul.mubr.bf16.gmra.mrb[0].mxu0 %v5362
    %v5590 = vpop.f32.mrb[0].mxu0
    %v5591 = vadd.f32 %v5402, %v5590
    %v5592 = vpop.f32.mrb[0].mxu0
    %v5593 = vpop.f32.mrb[0].mxu0
    %v5594 = vadd.f32 %v5402, %v5593
    %v5595 = vpop.f32.mrb[0].mxu0
    %5596 = vmatprep.mubr.bf16.mxu0 0
    %5597 = vmatmul.mubr.bf16.gmra.mrb[0].mxu0 %v5363
    %v5598 = vpop.f32.mrb[0].mxu0
    %v5599 = vadd.f32 %v5402, %v5598
    %v5600 = vpop.f32.mrb[0].mxu0
    %v5601 = vpop.f32.mrb[0].mxu0
    %v5602 = vadd.f32 %v5402, %v5601
    %v5603 = vpop.f32.mrb[0].mxu0
    %5604 = vmatprep.mubr.bf16.mxu0 0
    %5605 = vmatmul.mubr.bf16.gmra.mrb[0].mxu0 %v5364
    %v5606 = vpop.f32.mrb[0].mxu0
    %v5607 = vadd.f32 %v5402, %v5606
    %v5608 = vpop.f32.mrb[0].mxu0
    %v5609 = vpop.f32.mrb[0].mxu0
    %v5610 = vadd.f32 %v5402, %v5609
    %v5611 = vpop.f32.mrb[0].mxu0
    %5612 = vmatprep.mubr.bf16.mxu0 0
    %5613 = vmatmul.mubr.bf16.gmra.mrb[0].mxu0 %v5365
    %v5614 = vpop.f32.mrb[0].mxu0
    %v5615 = vadd.f32 %v5402, %v5614
    %v5616 = vpop.f32.mrb[0].mxu0
    %v5617 = vpop.f32.mrb[0].mxu0
    %v5618 = vadd.f32 %v5402, %v5617
    %v5619 = vpop.f32.mrb[0].mxu0
    %5620 = vmatprep.mubr.bf16.mxu0 0
    %5621 = vmatmul.mubr.bf16.gmra.mrb[0].mxu0 %v5366
    %v5622 = vpop.f32.mrb[0].mxu0
    %v5623 = vadd.f32 %v5402, %v5622
    %v5624 = vpop.f32.mrb[0].mxu0
    %v5625 = vpop.f32.mrb[0].mxu0
    %v5626 = vadd.f32 %v5402, %v5625
    %v5627 = vpop.f32.mrb[0].mxu0
    %5628 = vmatprep.mubr.bf16.mxu0 0
    %5629 = vmatmul.mubr.bf16.gmra.mrb[0].mxu0 %v5367
    %v5630 = vpop.f32.mrb[0].mxu0
    %v5631 = vadd.f32 %v5402, %v5630
    %v5632 = vpop.f32.mrb[0].mxu0
    %v5633 = vpop.f32.mrb[0].mxu0
    %v5634 = vadd.f32 %v5402, %v5633
    %v5635 = vpop.f32.mrb[0].mxu0
    %5636 = vmatprep.mubr.bf16.mxu0 0
    %5637 = vmatmul.mubr.bf16.gmra.mrb[0].mxu0 %v5368
    %v5638 = vpop.f32.mrb[0].mxu0
    %v5639 = vadd.f32 %v5402, %v5638
    %v5640 = vpop.f32.mrb[0].mxu0
    %v5641 = vpop.f32.mrb[0].mxu0
    %v5642 = vadd.f32 %v5402, %v5641
    %v5643 = vpop.f32.mrb[0].mxu0
    %5644 = vmatprep.mubr.bf16.mxu0 0
    %5645 = vmatmul.mubr.bf16.gmra.mrb[0].mxu0 %v5369
    %v5646 = vpop.f32.mrb[0].mxu0
    %v5647 = vadd.f32 %v5402, %v5646
    %v5648 = vpop.f32.mrb[0].mxu0
    %v5649 = vpop.f32.mrb[0].mxu0
    %v5650 = vadd.f32 %v5402, %v5649
    %v5651 = vpop.f32.mrb[0].mxu0
    %5652 = vmatprep.mubr.bf16.mxu0 0
    %5653 = vmatmul.mubr.bf16.gmra.mrb[0].mxu0 %v5370
    %v5654 = vpop.f32.mrb[0].mxu0
    %v5655 = vadd.f32 %v5402, %v5654
    %v5656 = vpop.f32.mrb[0].mxu0
    %v5657 = vpop.f32.mrb[0].mxu0
    %v5658 = vadd.f32 %v5402, %v5657
    %v5659 = vpop.f32.mrb[0].mxu0
    %5660 = vmatprep.mubr.bf16.mxu0 0
    %5661 = vmatmul.mubr.bf16.gmra.mrb[0].mxu0 %v5371
    %v5662 = vpop.f32.mrb[0].mxu0
    %v5663 = vadd.f32 %v5402, %v5662
    %v5664 = vpop.f32.mrb[0].mxu0
    %v5665 = vpop.f32.mrb[0].mxu0
    %v5666 = vadd.f32 %v5402, %v5665
    %v5667 = vpop.f32.mrb[0].mxu0
    %5668 = vmatprep.mubr.bf16.mxu0 0
    %5669 = vmatmul.mubr.bf16.gmra.mrb[0].mxu0 %v5372
    %v5670 = vpop.f32.mrb[0].mxu0
    %v5671 = vadd.f32 %v5402, %v5670
    %v5672 = vpop.f32.mrb[0].mxu0
    %v5673 = vpop.f32.mrb[0].mxu0
    %v5674 = vadd.f32 %v5402, %v5673
    %v5675 = vpop.f32.mrb[0].mxu0
    %5676 = vmatprep.mubr.bf16.mxu0 0
    %5677 = vmatmul.mubr.bf16.gmra.mrb[0].mxu0 %v5373
    %v5678 = vpop.f32.mrb[0].mxu0
    %v5679 = vadd.f32 %v5402, %v5678
    %v5680 = vpop.f32.mrb[0].mxu0
    %v5681 = vpop.f32.mrb[0].mxu0
    %v5682 = vadd.f32 %v5402, %v5681
    %v5683 = vpop.f32.mrb[0].mxu0
    %5684 = vmatprep.mubr.bf16.mxu0 0
    %5685 = vmatmul.mubr.bf16.gmra.mrb[0].mxu0 %v5374
    %v5686 = vpop.f32.mrb[0].mxu0
    %v5687 = vadd.f32 %v5402, %v5686
    %v5688 = vpop.f32.mrb[0].mxu0
    %v5689 = vpop.f32.mrb[0].mxu0
    %v5690 = vadd.f32 %v5402, %v5689
    %v5691 = vpop.f32.mrb[0].mxu0
    %5692 = vmatprep.mubr.bf16.mxu0 0
    %5693 = vmatmul.mubr.bf16.gmra.mrb[0].mxu0 %v5375
    %v5694 = vpop.f32.mrb[0].mxu0
    %v5695 = vadd.f32 %v5402, %v5694
    %v5696 = vpop.f32.mrb[0].mxu0
    %v5697 = vpop.f32.mrb[0].mxu0
    %v5698 = vadd.f32 %v5402, %v5697
    %v5699 = vpop.f32.mrb[0].mxu0
    %5700 = vmatprep.mubr.bf16.mxu0 0
    %5701 = vmatmul.mubr.bf16.gmra.mrb[0].mxu0 %v5376
    %v5702 = vpop.f32.mrb[0].mxu0
    %v5703 = vadd.f32 %v5402, %v5702
    %v5704 = vpop.f32.mrb[0].mxu0
    %v5705 = vpop.f32.mrb[0].mxu0
    %v5706 = vadd.f32 %v5402, %v5705
    %v5707 = vpop.f32.mrb[0].mxu0
    %5708 = vmatprep.mubr.bf16.mxu0 0
    %5709 = vmatmul.mubr.bf16.gmra.mrb[0].mxu0 %v5377
    %v5710 = vpop.f32.mrb[0].mxu0
    %v5711 = vadd.f32 %v5402, %v5710
    %v5712 = vpop.f32.mrb[0].mxu0
    %v5713 = vpop.f32.mrb[0].mxu0
    %v5714 = vadd.f32 %v5402, %v5713
    %v5715 = vpop.f32.mrb[0].mxu0
    %5716 = vmatprep.mubr.bf16.mxu0 0
    %5717 = vmatmul.mubr.bf16.gmra.mrb[0].mxu0 %v5378
    %v5718 = vpop.f32.mrb[0].mxu0
    %v5719 = vadd.f32 %v5402, %v5718
    %v5720 = vpop.f32.mrb[0].mxu0
    %v5721 = vpop.f32.mrb[0].mxu0
    %v5722 = vadd.f32 %v5402, %v5721
    %v5723 = vpop.f32.mrb[0].mxu0
    %5724 = vmatprep.mubr.bf16.mxu0 0
    %5725 = vmatmul.mubr.bf16.gmra.mrb[0].mxu0 %v5379
    %v5726 = vpop.f32.mrb[0].mxu0
    %v5727 = vadd.f32 %v5402, %v5726
    %v5728 = vpop.f32.mrb[0].mxu0
    %v5729 = vpop.f32.mrb[0].mxu0
    %v5730 = vadd.f32 %v5402, %v5729
    %v5731 = vpop.f32.mrb[0].mxu0
    %5732 = vmatprep.mubr.bf16.mxu0 0
    %5733 = vmatmul.mubr.bf16.gmra.mrb[0].mxu0 %v5380
    %v5734 = vpop.f32.mrb[0].mxu0
    %v5735 = vadd.f32 %v5402, %v5734
    %v5736 = vpop.f32.mrb[0].mxu0
    %v5737 = vpop.f32.mrb[0].mxu0
    %v5738 = vadd.f32 %v5402, %v5737
    %v5739 = vpop.f32.mrb[0].mxu0
    %5740 = vdwg.mxu0
    %v5741 = vmax.f32 %v5487, 0.0
    %v5742 = vmax.f32 %v5490, 0.0
    %v5743 = vmax.f32 %v5495, 0.0
    %v5744 = vmax.f32 %v5498, 0.0
    %v5745 = vmax.f32 %v5503, 0.0
    %v5746 = vmax.f32 %v5506, 0.0
    %v5747 = vmax.f32 %v5511, 0.0
    %v5748 = vmax.f32 %v5514, 0.0
    %v5749 = vmax.f32 %v5519, 0.0
    %v5750 = vmax.f32 %v5522, 0.0
    %v5751 = vmax.f32 %v5527, 0.0
    %v5752 = vmax.f32 %v5530, 0.0
    %v5753 = vmax.f32 %v5535, 0.0
    %v5754 = vmax.f32 %v5538, 0.0
    %v5755 = vmax.f32 %v5543, 0.0
    %v5756 = vmax.f32 %v5546, 0.0
    %v5757 = vmax.f32 %v5551, 0.0
    %v5758 = vmax.f32 %v5554, 0.0
    %v5759 = vmax.f32 %v5559, 0.0
    %v5760 = vmax.f32 %v5562, 0.0
    %v5761 = vmax.f32 %v5567, 0.0
    %v5762 = vmax.f32 %v5570, 0.0
    %v5763 = vmax.f32 %v5575, 0.0
    %v5764 = vmax.f32 %v5578, 0.0
    %v5765 = vmax.f32 %v5583, 0.0
    %v5766 = vmax.f32 %v5586, 0.0
    %v5767 = vmax.f32 %v5591, 0.0
    %v5768 = vmax.f32 %v5594, 0.0
    %v5769 = vmax.f32 %v5599, 0.0
    %v5770 = vmax.f32 %v5602, 0.0
    %v5771 = vmax.f32 %v5607, 0.0
    %v5772 = vmax.f32 %v5610, 0.0
    %v5773 = vmax.f32 %v5615, 0.0
    %v5774 = vmax.f32 %v5618, 0.0
    %v5775 = vmax.f32 %v5623, 0.0
    %v5776 = vmax.f32 %v5626, 0.0
    %v5777 = vmax.f32 %v5631, 0.0
    %v5778 = vmax.f32 %v5634, 0.0
    %v5779 = vmax.f32 %v5639, 0.0
    %v5780 = vmax.f32 %v5642, 0.0
    %v5781 = vmax.f32 %v5647, 0.0
    %v5782 = vmax.f32 %v5650, 0.0
    %v5783 = vmax.f32 %v5655, 0.0
    %v5784 = vmax.f32 %v5658, 0.0
    %v5785 = vmax.f32 %v5663, 0.0
    %v5786 = vmax.f32 %v5666, 0.0
    %v5787 = vmax.f32 %v5671, 0.0
    %v5788 = vmax.f32 %v5674, 0.0
    %v5789 = vmax.f32 %v5679, 0.0
    %v5790 = vmax.f32 %v5682, 0.0
    %v5791 = vmax.f32 %v5687, 0.0
    %v5792 = vmax.f32 %v5690, 0.0
    %v5793 = vmax.f32 %v5695, 0.0
    %v5794 = vmax.f32 %v5698, 0.0
    %v5795 = vmax.f32 %v5703, 0.0
    %v5796 = vmax.f32 %v5706, 0.0
    %v5797 = vmax.f32 %v5711, 0.0
    %v5798 = vmax.f32 %v5714, 0.0
    %v5799 = vmax.f32 %v5719, 0.0
    %v5800 = vmax.f32 %v5722, 0.0
    %v5801 = vmax.f32 %v5727, 0.0
    %v5802 = vmax.f32 %v5730, 0.0
    %v5803 = vmax.f32 %v5735, 0.0
    %v5804 = vmax.f32 %v5738, 0.0
    %5805 = vst [vmem:[#allocation10] sm:$0xff] %v5741
    %5806 = vst [vmem:[#allocation10 + $0x8] sm:$0xff] %v5742
    %5807 = vst [vmem:[#allocation10 + $0x10] sm:$0xff] %v5743
    %5808 = vst [vmem:[#allocation10 + $0x18] sm:$0xff] %v5744
    %5809 = vst [vmem:[#allocation10 + $0x20] sm:$0xff] %v5745
    %5810 = vst [vmem:[#allocation10 + $0x28] sm:$0xff] %v5746
    %5811 = vst [vmem:[#allocation10 + $0x30] sm:$0xff] %v5747
    %5812 = vst [vmem:[#allocation10 + $0x38] sm:$0xff] %v5748
    %5813 = vst [vmem:[#allocation10 + $0x40] sm:$0xff] %v5749
    %5814 = vst [vmem:[#allocation10 + $0x48] sm:$0xff] %v5750
    %5815 = vst [vmem:[#allocation10 + $0x50] sm:$0xff] %v5751
    %5816 = vst [vmem:[#allocation10 + $0x58] sm:$0xff] %v5752
    %5817 = vst [vmem:[#allocation10 + $0x60] sm:$0xff] %v5753
    %5818 = vst [vmem:[#allocation10 + $0x68] sm:$0xff] %v5754
    %5819 = vst [vmem:[#allocation10 + $0x70] sm:$0xff] %v5755
    %5820 = vst [vmem:[#allocation10 + $0x78] sm:$0xff] %v5756
    %5821 = vst [vmem:[#allocation10 + $0x80] sm:$0xff] %v5757
    %5822 = vst [vmem:[#allocation10 + $0x88] sm:$0xff] %v5758
    %5823 = vst [vmem:[#allocation10 + $0x90] sm:$0xff] %v5759
    %5824 = vst [vmem:[#allocation10 + $0x98] sm:$0xff] %v5760
    %5825 = vst [vmem:[#allocation10 + $0xa0] sm:$0xff] %v5761
    %5826 = vst [vmem:[#allocation10 + $0xa8] sm:$0xff] %v5762
    %5827 = vst [vmem:[#allocation10 + $0xb0] sm:$0xff] %v5763
    %5828 = vst [vmem:[#allocation10 + $0xb8] sm:$0xff] %v5764
    %5829 = vst [vmem:[#allocation10 + $0xc0] sm:$0xff] %v5765
    %5830 = vst [vmem:[#allocation10 + $0xc8] sm:$0xff] %v5766
    %5831 = vst [vmem:[#allocation10 + $0xd0] sm:$0xff] %v5767
    %5832 = vst [vmem:[#allocation10 + $0xd8] sm:$0xff] %v5768
    %5833 = vst [vmem:[#allocation10 + $0xe0] sm:$0xff] %v5769
    %5834 = vst [vmem:[#allocation10 + $0xe8] sm:$0xff] %v5770
    %5835 = vst [vmem:[#allocation10 + $0xf0] sm:$0xff] %v5771
    %5836 = vst [vmem:[#allocation10 + $0xf8] sm:$0xff] %v5772
    %5837 = vst [vmem:[#allocation10 + $0x100] sm:$0xff] %v5773
    %5838 = vst [vmem:[#allocation10 + $0x108] sm:$0xff] %v5774
    %5839 = vst [vmem:[#allocation10 + $0x110] sm:$0xff] %v5775
    %5840 = vst [vmem:[#allocation10 + $0x118] sm:$0xff] %v5776
    %5841 = vst [vmem:[#allocation10 + $0x120] sm:$0xff] %v5777
    %5842 = vst [vmem:[#allocation10 + $0x128] sm:$0xff] %v5778
    %5843 = vst [vmem:[#allocation10 + $0x130] sm:$0xff] %v5779
    %5844 = vst [vmem:[#allocation10 + $0x138] sm:$0xff] %v5780
    %5845 = vst [vmem:[#allocation10 + $0x140] sm:$0xff] %v5781
    %5846 = vst [vmem:[#allocation10 + $0x148] sm:$0xff] %v5782
    %5847 = vst [vmem:[#allocation10 + $0x150] sm:$0xff] %v5783
    %5848 = vst [vmem:[#allocation10 + $0x158] sm:$0xff] %v5784
    %5849 = vst [vmem:[#allocation10 + $0x160] sm:$0xff] %v5785
    %5850 = vst [vmem:[#allocation10 + $0x168] sm:$0xff] %v5786
    %5851 = vst [vmem:[#allocation10 + $0x170] sm:$0xff] %v5787
    %5852 = vst [vmem:[#allocation10 + $0x178] sm:$0xff] %v5788
    %5853 = vst [vmem:[#allocation10 + $0x180] sm:$0xff] %v5789
    %5854 = vst [vmem:[#allocation10 + $0x188] sm:$0xff] %v5790
    %5855 = vst [vmem:[#allocation10 + $0x190] sm:$0xff] %v5791
    %5856 = vst [vmem:[#allocation10 + $0x198] sm:$0xff] %v5792
    %5857 = vst [vmem:[#allocation10 + $0x1a0] sm:$0xff] %v5793
    %5858 = vst [vmem:[#allocation10 + $0x1a8] sm:$0xff] %v5794
    %5859 = vst [vmem:[#allocation10 + $0x1b0] sm:$0xff] %v5795
    %5860 = vst [vmem:[#allocation10 + $0x1b8] sm:$0xff] %v5796
    %5861 = vst [vmem:[#allocation10 + $0x1c0] sm:$0xff] %v5797
    %5862 = vst [vmem:[#allocation10 + $0x1c8] sm:$0xff] %v5798
    %5863 = vst [vmem:[#allocation10 + $0x1d0] sm:$0xff] %v5799
    %5864 = vst [vmem:[#allocation10 + $0x1d8] sm:$0xff] %v5800
    %5865 = vst [vmem:[#allocation10 + $0x1e0] sm:$0xff] %v5801
    %5866 = vst [vmem:[#allocation10 + $0x1e8] sm:$0xff] %v5802
    %5867 = vst [vmem:[#allocation10 + $0x1f0] sm:$0xff] %v5803
    %5868 = vst [vmem:[#allocation10 + $0x1f8] sm:$0xff] %v5804
    // Predicated region
    $region38: #{tpu_custom_call.1} parent=1 // pred_check
      _
    $region39: #{tpu_custom_call.1} parent=1 // pred_check_branch
      %5870 = sbr.rel (0) target = $region41
    $region40: #{tpu_custom_call.1} parent=1 // pred_region
      %s5871 = sadd.s32 0, 0
      %s5873 = ssub.s32 8192, 8192
      %5874 = vsyncadd [#allocation6], %s5873
      %s5875 = smul.addr %s5871, 128
      %s5876 = scalar_lea.hbm %s5, %s5875
      %s5877 = sshll.u32 [#allocation10], 4
      %s5878 = int_to_ptr.vmem [resolvable:$true] %s5877
      %5883 = dma.vmem_to_hbm [thread:$0]  %s5878, 8192, %s5876, [#allocation6], 128, 128, 8
    $region41: #{tpu_custom_call.1} parent=1 // pred_fallthru
      _
    // Predicated region
    $region42: #{tpu_custom_call.1} parent=1 // pred_check
      _
    $region43: #{tpu_custom_call.1} parent=1 // pred_check_branch
      %5885 = sbr.rel (0) target = $region45
    $region44: #{tpu_custom_call.1} parent=1 // pred_region
      %5886 = dma.done [#allocation6], 8192
    $region45: #{tpu_custom_call.1} parent=1 // pred_fallthru
      _
    %5887 = vsyncpa [#allocation5], 1
    %5888 = vsyncpa [#allocation8], 1
    %5889 = vsyncpa [#allocation6], 1

</llo_original>
